<compile_context>
chip_gen: v7x
topology: tpu7x:2x2x1
jax: 0.10.0
libtpu: 0.0.40
codegen_flags: <defaults>
</compile_context>

<pallas_src>
from functools import partial

import jax
import jax.numpy as jnp
from jax import lax
from jax.experimental import pallas as pl
from jax.experimental.pallas import tpu as pltpu


def _pick_tile(dim, candidates=(1024, 512, 256, 128)):
    """Largest candidate tile (multiple of 128) that divides `dim`, else the full dim."""
    for t in candidates:
        if dim % t == 0:
            return t
    return dim


def _vmem_limit(estimate_bytes):
    """Scoped-VMEM limit: 2x the estimate, clamped to a per-generation safe ceiling."""
    kind = jax.devices()[0].device_kind.lower()
    # v5e/v6e have 128 MiB physical VMEM; v7x only 64 MiB -> stay <= ~56 MiB there.
    cap = (100 << 20) if ("v5" in kind or "v6" in kind) else (56 << 20)
    return int(min(max(2 * estimate_bytes, 8 << 20), cap))


# ----------------------------------------------------------------------------
# Kernel A: fused [Conv1d(k=1) + BN(train stats) + LeakyReLU(0.1)] x mlp_num
# ----------------------------------------------------------------------------
def fused_mlp_kernel(x_ref, w0_ref, wrest_ref, gamma_ref, beta_ref, o_ref,
                     h_scr, sum_scr, sq_scr, *, num_layers, m_total, n_tiles):
    # x_ref:     [1, C_in, tn]          streamed input tile (read only in phase 0)
    # w0_ref:    [ch, C_in]             first conv weight
    # wrest_ref: [max(L-1,1), ch, ch]   remaining conv weights (dummy if L == 1)
    # gamma/beta_ref: [L, ch, 1]        BN affine per layer
    # o_ref:     [1, ch, tn]            output tile (written only in phase L)
    # h_scr:     [B*Nt, ch, tn]         single pre-BN activation slab, overwritten in place
    # sum_scr/sq_scr: [L, ch, 1]        per-layer full-batch BN statistics
    L = num_layers
    p = pl.program_id(0)      # phase: 0..L
    b = pl.program_id(1)      # batch
    n = pl.program_id(2)      # N tile
    slot = b * n_tiles + n

    @pl.when((p == 0) & (b == 0) & (n == 0))
    def _init():
        sum_scr[...] = jnp.zeros_like(sum_scr)
        sq_scr[...] = jnp.zeros_like(sq_scr)

    # Phase 0: first conv on the streamed-in x tile.
    @pl.when(p == 0)
    def _layer0():
        y = jnp.dot(w0_ref[...], x_ref[0], preferred_element_type=jnp.float32)
        h_scr[slot] = y
        sum_scr[0] = sum_scr[0] + jnp.sum(y, axis=1, keepdims=True)
        sq_scr[0] = sq_scr[0] + jnp.sum(y * y, axis=1, keepdims=True)

    # Phases 1..L: BN(prev layer, full B*N stats, biased var like torch training) +
    # LeakyReLU(0.1); then either the next conv (overwriting the same scratch slot)
    # or emit the finished tile at p == L.
    @pl.when(p >= 1)
    def _rest():
        prev = p - 1
        yprev = h_scr[slot]
        mean = sum_scr[prev] * (1.0 / m_total)
        var = jnp.maximum(sq_scr[prev] * (1.0 / m_total) - mean * mean, 0.0)
        hn = (yprev - mean) * lax.rsqrt(var + 1e-5)
        hn = hn * gamma_ref[prev] + beta_ref[prev]
        h = jnp.where(hn > 0, hn, 0.1 * hn)                           # LeakyReLU(0.1)

        @pl.when(p <= L - 1)
        def _mid():
            y = jnp.dot(wrest_ref[p - 1], h, preferred_element_type=jnp.float32)
            h_scr[slot] = y                                           # in-place overwrite
            sum_scr[p] = sum_scr[p] + jnp.sum(y, axis=1, keepdims=True)
            sq_scr[p] = sq_scr[p] + jnp.sum(y * y, axis=1, keepdims=True)

        @pl.when(p == L)
        def _emit():
            o_ref[0] = h


def fused_mlp(x, weights, gammas, betas):
    # x: [B, C_in, N] -> [B, ch, N]; weights[0]: [ch, C_in]; weights[i>0]: [ch, ch]
    B, Cin, N = x.shape
    L = len(weights)
    ch = weights[0].shape[0]
    tn = _pick_tile(N)
    Nt = N // tn

    w0 = weights[0]
    wrest = (jnp.stack(weights[1:], axis=0) if L > 1
             else jnp.zeros((1, ch, ch), jnp.float32))                # dummy, never used
    n_rest = wrest.shape[0]
    gam = jnp.stack(gammas, axis=0).reshape(L, ch, 1)
    bet = jnp.stack(betas, axis=0).reshape(L, ch, 1)

    kernel = partial(fused_mlp_kernel, num_layers=L, m_total=float(B * N), n_tiles=Nt)

    # VMEM budget: activation slab + double-buffered in/out tiles + params + stats.
    est = (B * N * ch * 4
           + 2 * (Cin * tn + ch * tn) * 4
           + (ch * Cin + n_rest * ch * ch + 4 * L * ch) * 4)
    limit = _vmem_limit(est)

    # Input is fetched only in phase 0 (pinned to block 0 afterwards); output blocks
    # are pinned to block 0 until the final phase, so only real data is written back.
    # TODO(synk): v7x megacore — split B/N across the 2 TCs with per-core partial BN
    #             stats combined via CMEM; currently the whole grid runs on one core.
    return pl.pallas_call(
        kernel,
        out_shape=jax.ShapeDtypeStruct((B, ch, N), jnp.float32),
        grid=(L + 1, B, Nt),
        in_specs=[
            pl.BlockSpec((1, Cin, tn),
                         lambda p, b, n: (jnp.where(p == 0, b, 0), 0,
                                          jnp.where(p == 0, n, 0))),
            pl.BlockSpec((ch, Cin), lambda p, b, n: (0, 0)),
            pl.BlockSpec((n_rest, ch, ch), lambda p, b, n: (0, 0, 0)),
            pl.BlockSpec((L, ch, 1), lambda p, b, n: (0, 0, 0)),
            pl.BlockSpec((L, ch, 1), lambda p, b, n: (0, 0, 0)),
        ],
        out_specs=pl.BlockSpec(
            (1, ch, tn),
            lambda p, b, n: (jnp.where(p == L, b, 0), 0, jnp.where(p == L, n, 0))),
        scratch_shapes=[
            pltpu.VMEM((B * Nt, ch, tn), jnp.float32),   # single pre-BN activation slab
            pltpu.VMEM((L, ch, 1), jnp.float32),         # per-layer sum
            pltpu.VMEM((L, ch, 1), jnp.float32),         # per-layer sum of squares
        ],
        # BN stats couple all (b, n) tiles -> whole grid sequential on one core.
        compiler_params=pltpu.CompilerParams(
            dimension_semantics=("arbitrary", "arbitrary", "arbitrary"),
            vmem_limit_bytes=limit),
    )(x, w0, wrest, gam, bet)


# ----------------------------------------------------------------------------
# Kernel B: pairwise_distance[b, i, j] = -||x_i - x_j||^2  (as in knn()),
#           tiled over BOTH query rows and key columns.
# ----------------------------------------------------------------------------
def pairwise_dist_kernel(xi_ref, xj_ref, o_ref):
    # xi_ref: [1, C, ti] query block; xj_ref: [1, C, tj] key block; o_ref: [1, ti, tj]
    xi = xi_ref[0]                                                    # [C, ti]
    xj = xj_ref[0]                                                    # [C, tj]
    g = lax.dot_general(xi, xj, (((0,), (0,)), ((), ())),
                        preferred_element_type=jnp.float32)           # [ti, tj]
    sq_i = jnp.sum(xi * xi, axis=0, keepdims=True)                    # [1, ti]
    sq_j = jnp.sum(xj * xj, axis=0, keepdims=True)                    # [1, tj]
    o_ref[0] = 2.0 * g - jnp.transpose(sq_i) - sq_j


def pairwise_distance(x):
    # x: [B, C, N] -> [B, N, N]  (f32 so knn index ordering matches the reference)
    B, C, N = x.shape
    ti = _pick_tile(N, (256, 128))
    tj = _pick_tile(N, (1024, 512, 256, 128))
    limit = _vmem_limit(2 * (ti * tj + C * ti + C * tj) * 4)
    # TODO(synk): for large N, fuse a streaming per-row top-(k+1) across the j tiles
    #             instead of materializing [B, N, N] and calling lax.top_k.
    return pl.pallas_call(
        pairwise_dist_kernel,
        out_shape=jax.ShapeDtypeStruct((B, N, N), jnp.float32),
        grid=(B, N // ti, N // tj),
        in_specs=[
            pl.BlockSpec((1, C, ti), lambda b, i, j: (b, 0, i)),
            pl.BlockSpec((1, C, tj), lambda b, i, j: (b, 0, j)),
        ],
        out_specs=pl.BlockSpec((1, ti, tj), lambda b, i, j: (b, i, j)),
        compiler_params=pltpu.CompilerParams(
            dimension_semantics=("parallel", "parallel", "parallel"),
            vmem_limit_bytes=limit),
    )(x, x)


# ----------------------------------------------------------------------------
# Kernel C: neighbor_normal + max over k, per batch, tiled over the target axis.
#   res[c, n, j] = (W0 @ pts)[c, idx[j, n]] - (W0 @ pts)[c, n]   (conv0 linearity)
#   std is the per-batch unbiased std over all N*K*Ch residuals (torch.std default),
#   accumulated with a Welford chunk merge across (tile, j) chunks.
#   max over k of (alpha * res/(std+1e-5) + beta) is reconstructed from running
#   elementwise max/min of res (scale > 0 -> sign(alpha) picks max vs min).
# ----------------------------------------------------------------------------
def neighbor_normal_max_kernel(pts_ref, idx_ref, w0t_ref, alpha_ref, beta_ref, o_ref,
                               ptsw_scr, mx_scr, mn_scr, stat_scr,
                               *, n_pts, k_nb, n_tiles, tile_n):
    # pts_ref:  [1, C, N]       full points of batch b (gather source)
    # idx_ref:  [1, K, tile_n]  neighbor indices for this target tile
    # w0t_ref:  [Ch, C]; alpha/beta_ref: [Ch, 1]
    # o_ref:    [1, Ch, N]      written only on the last tile of each batch
    # ptsw_scr: [Ch, N] bf16    conv0(points), computed once per batch
    # mx_scr/mn_scr: [Nt, Ch, tile_n] f32 running max / min over k
    # stat_scr: [3, 1, 1] f32   Welford (count, mean, M2) over all residuals of batch b
    t = pl.program_id(1)
    ch = w0t_ref.shape[0]

    @pl.when(t == 0)
    def _start_batch():
        ptsw_f32 = jnp.dot(w0t_ref[...], pts_ref[0],
                           preferred_element_type=jnp.float32)        # conv0 once (linearity)
        ptsw_scr[...] = ptsw_f32.astype(ptsw_scr.dtype)
        stat_scr[...] = jnp.zeros_like(stat_scr)

    col0 = t * tile_n
    rows = lax.broadcasted_iota(jnp.int32, (n_pts, tile_n), 0)          # source point id
    cols = col0 + lax.broadcasted_iota(jnp.int32, (n_pts, tile_n), 1)   # global target id
    eye = (rows == cols).astype(jnp.bfloat16)                           # hoisted out of k loop
    ptsw = ptsw_scr[...]                                                # [Ch, N] bf16

    chunk_n = float(ch * tile_n)                                        # elems per (tile, j) chunk

    def body(j, carry):
        mx, mn, cnt, mean, m2 = carry
        sel = idx_ref[0, pl.ds(j, 1), :]                                # [1, tile_n]
        # (onehot_j - I): neighbor gather + center subtraction fused in one bf16 matmul.
        gm = (rows == sel).astype(jnp.bfloat16) - eye                   # [N, tile_n]
        r = jnp.dot(ptsw, gm, preferred_element_type=jnp.float32)       # [Ch, tile_n]
        mx = jnp.maximum(mx, r)
        mn = jnp.minimum(mn, r)
        # Welford chunk merge (avoids sum/sumsq cancellation for the std).
        c_mean = jnp.sum(r, keepdims=True) * (1.0 / chunk_n)            # [1, 1]
        diff = r - c_mean
        c_m2 = jnp.sum(diff * diff, keepdims=True)                      # [1, 1]
        tot = cnt + chunk_n
        delta = c_mean - mean
        mean = mean + delta * (chunk_n / tot)
        m2 = m2 + c_m2 + delta * delta * (cnt * (chunk_n / tot))
        return mx, mn, tot, mean, m2

    init = (jnp.full((ch, tile_n), -jnp.inf, jnp.float32),
            jnp.full((ch, tile_n), jnp.inf, jnp.float32),
            stat_scr[0], stat_scr[1], stat_scr[2])
    mx, mn, cnt, mean, m2 = lax.fori_loop(0, k_nb, body, init, unroll=(k_nb <= 8))

    mx_scr[t] = mx
    mn_scr[t] = mn
    stat_scr[0] = cnt
    stat_scr[1] = mean
    stat_scr[2] = m2

    # Last tile of this batch: std + affine + max reconstruction, emit [Ch, N].
    @pl.when(t == n_tiles - 1)
    def _finalize():
        count = stat_scr[0]                                             # [1, 1]
        std = jnp.sqrt(stat_scr[2] / (count - 1.0))                     # unbiased (torch.std)
        scale = 1.0 / (std + 1e-5)                                      # [1, 1], > 0
        alpha = alpha_ref[...]                                          # [Ch, 1]
        beta = beta_ref[...]
        a_scaled = alpha * scale
        for tt in range(n_tiles):                                       # static unroll, cheap VPU
            base = jnp.where(alpha >= 0, mx_scr[tt], mn_scr[tt])        # sign(alpha) -> max/min
            o_ref[0, :, pl.ds(tt * tile_n, tile_n)] = base * a_scaled + beta


def neighbor_normal_max(xyz, idx, w0t, alpha, beta):
    # xyz: [B, C, N]; idx: [B, N, K] int32 -> [B, Ch, N] (channel-major, no wrapper transpose)
    B, C, N = xyz.shape
    K = idx.shape[-1]
    Ch = w0t.shape[0]
    tile_n = _pick_tile(N, (512, 256, 128))
    Nt = N // tile_n
    idx_t = jnp.transpose(idx, (0, 2, 1)).astype(jnp.int32)             # [B, K, N] (small)

    kernel = partial(neighbor_normal_max_kernel,
                     n_pts=N, k_nb=K, n_tiles=Nt, tile_n=tile_n)

    est = (Ch * N * 2                       # ptsw_scr (bf16)
           + 2 * Ch * N * 4                 # mx / mn scratch
           + 2 * (C * N + K * tile_n + Ch * N) * 4   # double-buffered in/out blocks
           + 3 * N * tile_n * 4)            # iota / one-hot transients (upper bound)
    limit = _vmem_limit(est)

    return pl.pallas_call(
        kernel,
        out_shape=jax.ShapeDtypeStruct((B, Ch, N), jnp.float32),
        grid=(B, Nt),
        in_specs=[
            pl.BlockSpec((1, C, N), lambda b, t: (b, 0, 0)),
            pl.BlockSpec((1, K, tile_n), lambda b, t: (b, 0, t)),
            pl.BlockSpec((Ch, C), lambda b, t: (0, 0)),
            pl.BlockSpec((Ch, 1), lambda b, t: (0, 0)),
            pl.BlockSpec((Ch, 1), lambda b, t: (0, 0)),
        ],
        out_specs=pl.BlockSpec((1, Ch, N), lambda b, t: (b, 0, 0)),
        scratch_shapes=[
            pltpu.VMEM((Ch, N), jnp.bfloat16),            # conv0(points), per batch
            pltpu.VMEM((Nt, Ch, tile_n), jnp.float32),    # running max over k
            pltpu.VMEM((Nt, Ch, tile_n), jnp.float32),    # running min over k
            pltpu.VMEM((3, 1, 1), jnp.float32),           # Welford (count, mean, M2)
        ],
        compiler_params=pltpu.CompilerParams(
            dimension_semantics=("parallel", "arbitrary"),
            vmem_limit_bytes=limit),
    )(xyz, idx_t, w0t, alpha.reshape(Ch, 1), beta.reshape(Ch, 1))


# ----------------------------------------------------------------------------
# Full Input_embedding forward
# ----------------------------------------------------------------------------
def input_embedding_forward(xyz, params, k):
    # xyz: [B, C_in, N] -> (point_feature [B, out_channels, N], idx [B, N, k])
    x = fused_mlp(xyz, params["w"], params["gamma"], params["beta"])    # [B, out/2, N]

    pd = pairwise_distance(xyz)                                         # [B, N, N]
    # TODO(synk): top-k index selection has no clean Pallas equivalent; done with lax.top_k.
    _, idx_full = jax.lax.top_k(pd, k + 1)                              # knn uses k+1, slices :k
    idx = idx_full[..., :k].astype(jnp.int32)                           # [B, N, k]

    grouped = neighbor_normal_max(xyz, idx, params["w0t"],
                                  params["alpha"], params["beta0"])     # [B, out/2, N]

    point_feature = jnp.concatenate((x, grouped), axis=-2)              # [B, out_channels, N]
    return point_feature, idx


# ----------------------------------------------------------------------------
# Deterministic parameter init (shapes from Input_embedding.__init__)
# ----------------------------------------------------------------------------
def init_params(key, in_channels, out_channels, mlp_num):
    ch = out_channels // 2
    keys = jax.random.split(key, mlp_num + 1)
    ws, gammas, betas = [], [], []
    cin = in_channels
    for i in range(mlp_num):
        ws.append(jax.random.normal(keys[i], (ch, cin), jnp.float32) * 0.1)  # Conv1d [out, in]
        gammas.append(jnp.ones((ch,), jnp.float32))                          # BN weight
        betas.append(jnp.zeros((ch,), jnp.float32))                          # BN bias
        cin = ch
    w0t = jax.random.normal(keys[-1], (ch, in_channels), jnp.float32) * 0.1  # conv0 [out, in]
    alpha = jnp.ones((ch,), jnp.float32)                                     # affine_alpha
    beta0 = jnp.zeros((ch,), jnp.float32)                                    # affine_beta
    return {"w": ws, "gamma": gammas, "beta": betas,
            "w0t": w0t, "alpha": alpha, "beta0": beta0}


if __name__ == "__main__":
    B, C_in, N = 2, 3, 32
    out_channels, k, mlp_num = 32, 4, 2

    key = jax.random.PRNGKey(0)
    kx, kp = jax.random.split(key)
    xyz = jax.random.normal(kx, (B, C_in, N), jnp.float32)
    params = init_params(kp, C_in, out_channels, mlp_num)

    fwd = jax.jit(partial(input_embedding_forward, k=k))
    point_feature, idx = fwd(xyz, params)
    jax.block_until_ready((point_feature, idx))

    assert point_feature.shape == (B, out_channels, N), point_feature.shape
    assert idx.shape == (B, N, k), idx.shape
    assert bool(jnp.all(jnp.isfinite(point_feature)))
    print("KERNEL_OK")
</pallas_src>

<mosaic_0001>
module attributes {stable_mosaic.version = 11 : i64} {
  func.func @pairwise_dist_kernel(%arg0: i32, %arg1: i32, %arg2: i32, %arg3: memref<1x3x32xf32, #tpu.memory_space<vmem>>, %arg4: memref<1x3x32xf32, #tpu.memory_space<vmem>>, %arg5: memref<1x32x32xf32, #tpu.memory_space<vmem>>) attributes {dimension_semantics = [#tpu.dimension_semantics<parallel>, #tpu.dimension_semantics<parallel>, #tpu.dimension_semantics<parallel>], iteration_bounds = array<i64: 2, 1, 1>, scalar_prefetch = 0 : i64, scratch_operands = 0 : i64, tpu.core_type = #tpu.core_type<tc>, window_params = [{transform_indices = @transform_0, window_bounds = array<i64: 1, 3, 32>}, {transform_indices = @transform_1, window_bounds = array<i64: 1, 3, 32>}, {transform_indices = @transform_2, window_bounds = array<i64: 1, 32, 32>}]} {
    %c0 = arith.constant 0 : index
    %c0_0 = arith.constant 0 : index
    %c0_1 = arith.constant 0 : index
    %0 = vector.load %arg3[%c0, %c0_0, %c0_1] : memref<1x3x32xf32, #tpu.memory_space<vmem>>, vector<1x3x32xf32>
    %1 = vector.shape_cast %0 : vector<1x3x32xf32> to vector<3x32xf32>
    %c0_2 = arith.constant 0 : index
    %c0_3 = arith.constant 0 : index
    %c0_4 = arith.constant 0 : index
    %2 = vector.load %arg4[%c0_2, %c0_3, %c0_4] : memref<1x3x32xf32, #tpu.memory_space<vmem>>, vector<1x3x32xf32>
    %3 = vector.shape_cast %2 : vector<1x3x32xf32> to vector<3x32xf32>
    %cst = arith.constant dense<0.000000e+00> : vector<32x32xf32>
    %4 = tpu.matmul %1, %3, %cst {dimension_numbers = #tpu.dot_dimension_numbers<[0], [0], [1], [1], [0, 1, 1, 1], [], []>} : vector<3x32xf32>, vector<3x32xf32>, vector<32x32xf32> -> vector<32x32xf32>
    %5 = arith.mulf %1, %1 : vector<3x32xf32>
    %cst_5 = arith.constant dense<0.000000e+00> : vector<32xf32>
    %6 = vector.multi_reduction <add>, %5, %cst_5 [0] : vector<3x32xf32> to vector<32xf32>
    %7 = vector.shape_cast %6 : vector<32xf32> to vector<1x32xf32>
    %8 = arith.mulf %3, %3 : vector<3x32xf32>
    %cst_6 = arith.constant dense<0.000000e+00> : vector<32xf32>
    %9 = vector.multi_reduction <add>, %8, %cst_6 [0] : vector<3x32xf32> to vector<32xf32>
    %10 = vector.shape_cast %9 : vector<32xf32> to vector<1x32xf32>
    %cst_7 = arith.constant 2.000000e+00 : f32
    %11 = vector.broadcast %cst_7 : f32 to vector<32x32xf32>
    %12 = arith.mulf %11, %4 : vector<32x32xf32>
    %13 = tpu.transpose %7, [1, 0] : vector<1x32xf32> -> vector<32x1xf32>
    %14 = vector.broadcast %13 : vector<32x1xf32> to vector<32x32xf32>
    %15 = arith.subf %12, %14 : vector<32x32xf32>
    %16 = vector.broadcast %10 : vector<1x32xf32> to vector<32x32xf32>
    %17 = arith.subf %15, %16 : vector<32x32xf32>
    %c0_8 = arith.constant 0 : index
    %c0_9 = arith.constant 0 : index
    %c0_10 = arith.constant 0 : index
    %18 = vector.load %arg5[%c0_8, %c0_9, %c0_10] : memref<1x32x32xf32, #tpu.memory_space<vmem>>, vector<1x32x32xf32>
    %19 = vector.shape_cast %18 : vector<1x32x32xf32> to vector<32x32xf32>
    %20 = vector.shape_cast %17 : vector<32x32xf32> to vector<1x32x32xf32>
    tpu.vector_store %arg5[%c0_8, %c0_9, %c0_10], %20 {strides = array<i32>} : memref<1x32x32xf32, #tpu.memory_space<vmem>>, vector<1x32x32xf32>,
    return
  }
  func.func @transform_0(%arg0: i32, %arg1: i32, %arg2: i32) -> (i32, i32, i32) {
    %c0_i32 = arith.constant 0 : i32
    %c0_i32_0 = arith.constant 0 : i32
    return %arg0, %c0_i32, %arg1 : i32, i32, i32
  }
  func.func @transform_1(%arg0: i32, %arg1: i32, %arg2: i32) -> (i32, i32, i32) {
    %c0_i32 = arith.constant 0 : i32
    %c0_i32_0 = arith.constant 0 : i32
    return %arg0, %c0_i32, %arg2 : i32, i32, i32
  }
  func.func @transform_2(%arg0: i32, %arg1: i32, %arg2: i32) -> (i32, i32, i32) {
    %c0_i32 = arith.constant 0 : i32
    return %arg0, %arg1, %arg2 : i32, i32, i32
  }
}

module attributes {stable_mosaic.version = 11 : i64} {
  func.func @neighbor_normal_max_kernel(%arg0: i32, %arg1: i32, %arg2: memref<1x3x32xf32, #tpu.memory_space<vmem>>, %arg3: memref<1x4x32xi32, #tpu.memory_space<vmem>>, %arg4: memref<16x3xf32, #tpu.memory_space<vmem>>, %arg5: memref<16x1xf32, #tpu.memory_space<vmem>>, %arg6: memref<16x1xf32, #tpu.memory_space<vmem>>, %arg7: memref<1x16x32xf32, #tpu.memory_space<vmem>>, %arg8: memref<16x32xbf16, #tpu.memory_space<vmem>>, %arg9: memref<1x16x32xf32, #tpu.memory_space<vmem>>, %arg10: memref<1x16x32xf32, #tpu.memory_space<vmem>>, %arg11: memref<3x1x1xf32, #tpu.memory_space<vmem>>) attributes {dimension_semantics = [#tpu.dimension_semantics<parallel>, #tpu.dimension_semantics<arbitrary>], iteration_bounds = array<i64: 2, 1>, scalar_prefetch = 0 : i64, scratch_operands = 4 : i64, tpu.core_type = #tpu.core_type<tc>, window_params = [{transform_indices = @transform_0, window_bounds = array<i64: 1, 3, 32>}, {transform_indices = @transform_1, window_bounds = array<i64: 1, 4, 32>}, {pipeline_mode = #tpu.pipeline_mode<synchronous>, transform_indices = @transform_2, window_bounds = array<i64: 16, 3>}, {pipeline_mode = #tpu.pipeline_mode<synchronous>, transform_indices = @transform_3, window_bounds = array<i64: 16, 1>}, {pipeline_mode = #tpu.pipeline_mode<synchronous>, transform_indices = @transform_4, window_bounds = array<i64: 16, 1>}, {transform_indices = @transform_5, window_bounds = array<i64: 1, 16, 32>}]} {
    %c0_i32 = arith.constant 0 : i32
    %0 = arith.cmpi eq, %arg1, %c0_i32 : i32
    %1 = arith.extui %0 : i1 to i32
    %c0_i32_0 = arith.constant 0 : i32
    %2 = arith.cmpi ne, %1, %c0_i32_0 : i32
    scf.if %2 {
      %c0_62 = arith.constant 0 : index
      %c0_63 = arith.constant 0 : index
      %205 = vector.load %arg4[%c0_62, %c0_63] : memref<16x3xf32, #tpu.memory_space<vmem>>, vector<16x3xf32>
      %c0_64 = arith.constant 0 : index
      %c0_65 = arith.constant 0 : index
      %c0_66 = arith.constant 0 : index
      %206 = vector.load %arg2[%c0_64, %c0_65, %c0_66] : memref<1x3x32xf32, #tpu.memory_space<vmem>>, vector<1x3x32xf32>
      %207 = vector.shape_cast %206 : vector<1x3x32xf32> to vector<3x32xf32>
      %cst_67 = arith.constant dense<0.000000e+00> : vector<16x32xf32>
      %208 = tpu.matmul %205, %207, %cst_67 {dimension_numbers = #tpu.dot_dimension_numbers<[1], [0], [0], [1], [0, 0, 1, 1], [], []>} : vector<16x3xf32>, vector<3x32xf32>, vector<16x32xf32> -> vector<16x32xf32>
      %209 = arith.truncf %208 : vector<16x32xf32> to vector<16x32xbf16>
      %c0_68 = arith.constant 0 : index
      %c0_69 = arith.constant 0 : index
      %210 = vector.load %arg8[%c0_68, %c0_69] : memref<16x32xbf16, #tpu.memory_space<vmem>>, vector<16x32xbf16>
      tpu.vector_store %arg8[%c0_68, %c0_69], %209 {strides = array<i32>} : memref<16x32xbf16, #tpu.memory_space<vmem>>, vector<16x32xbf16>,
      %cst_70 = arith.constant 0.000000e+00 : f32
      %211 = vector.broadcast %cst_70 : f32 to vector<3x1x1xf32>
      %c0_71 = arith.constant 0 : index
      %c0_72 = arith.constant 0 : index
      %c0_73 = arith.constant 0 : index
      %212 = vector.load %arg11[%c0_71, %c0_72, %c0_73] : memref<3x1x1xf32, #tpu.memory_space<vmem>>, vector<3x1x1xf32>
      tpu.vector_store %arg11[%c0_71, %c0_72, %c0_73], %211 {strides = array<i32>} : memref<3x1x1xf32, #tpu.memory_space<vmem>>, vector<3x1x1xf32>,
    } else {
    }
    %c32_i32 = arith.constant 32 : i32
    %3 = arith.muli %arg1, %c32_i32 : i32
    %4 = tpu.iota {dimensions = array<i32: 0>} : vector<32x32xi32>
    %5 = tpu.iota {dimensions = array<i32: 1>} : vector<32x32xi32>
    %6 = vector.broadcast %3 : i32 to vector<32x32xi32>
    %7 = arith.addi %6, %5 : vector<32x32xi32>
    %8 = arith.cmpi eq, %4, %7 : vector<32x32xi32>
    %9 = arith.extui %8 : vector<32x32xi1> to vector<32x32xi32>
    %10 = arith.sitofp %9 : vector<32x32xi32> to vector<32x32xf32>
    %11 = arith.truncf %10 : vector<32x32xf32> to vector<32x32xbf16>
    %c0 = arith.constant 0 : index
    %c0_1 = arith.constant 0 : index
    %12 = vector.load %arg8[%c0, %c0_1] : memref<16x32xbf16, #tpu.memory_space<vmem>>, vector<16x32xbf16>
    %cst = arith.constant 0xFF800000 : f32
    %13 = vector.broadcast %cst : f32 to vector<16x32xf32>
    %cst_2 = arith.constant 0x7F800000 : f32
    %14 = vector.broadcast %cst_2 : f32 to vector<16x32xf32>
    %c0_3 = arith.constant 0 : index
    %c0_4 = arith.constant 0 : index
    %c0_5 = arith.constant 0 : index
    %15 = vector.load %arg11[%c0_3, %c0_4, %c0_5] : memref<3x1x1xf32, #tpu.memory_space<vmem>>, vector<1x1x1xf32>
    %16 = vector.shape_cast %15 : vector<1x1x1xf32> to vector<1x1xf32>
    %c1 = arith.constant 1 : index
    %c0_6 = arith.constant 0 : index
    %c0_7 = arith.constant 0 : index
    %17 = vector.load %arg11[%c1, %c0_6, %c0_7] : memref<3x1x1xf32, #tpu.memory_space<vmem>>, vector<1x1x1xf32>
    %18 = vector.shape_cast %17 : vector<1x1x1xf32> to vector<1x1xf32>
    %c2 = arith.constant 2 : index
    %c0_8 = arith.constant 0 : index
    %c0_9 = arith.constant 0 : index
    %19 = vector.load %arg11[%c2, %c0_8, %c0_9] : memref<3x1x1xf32, #tpu.memory_space<vmem>>, vector<1x1x1xf32>
    %20 = vector.shape_cast %19 : vector<1x1x1xf32> to vector<1x1xf32>
    %c0_i32_10 = arith.constant 0 : i32
    %c0_11 = arith.constant 0 : index
    %21 = arith.index_cast %c0_i32_10 : i32 to index
    %c0_12 = arith.constant 0 : index
    %22 = vector.load %arg3[%c0_11, %21, %c0_12] : memref<1x4x32xi32, #tpu.memory_space<vmem>>, vector<1x1x32xi32>
    %23 = vector.shape_cast %22 : vector<1x1x32xi32> to vector<1x32xi32>
    %24 = vector.broadcast %23 : vector<1x32xi32> to vector<32x32xi32>
    %25 = arith.cmpi eq, %4, %24 : vector<32x32xi32>
    %26 = arith.extui %25 : vector<32x32xi1> to vector<32x32xi32>
    %27 = arith.sitofp %26 : vector<32x32xi32> to vector<32x32xf32>
    %28 = arith.truncf %27 : vector<32x32xf32> to vector<32x32xbf16>
    %29 = arith.subf %28, %11 : vector<32x32xbf16>
    %cst_13 = arith.constant dense<0.000000e+00> : vector<16x32xf32>
    %30 = tpu.matmul %12, %29, %cst_13 {dimension_numbers = #tpu.dot_dimension_numbers<[1], [0], [0], [1], [0, 0, 1, 1], [], []>} : vector<16x32xbf16>, vector<32x32xbf16>, vector<16x32xf32> -> vector<16x32xf32>
    %31 = arith.maximumf %13, %30 : vector<16x32xf32>
    %32 = arith.minimumf %14, %30 : vector<16x32xf32>
    %33 = vector.shape_cast %30 : vector<16x32xf32> to vector<1x16x32xf32>
    %cst_14 = arith.constant dense<0.000000e+00> : vector<1xf32>
    %34 = vector.multi_reduction <add>, %33, %cst_14 [1, 2] : vector<1x16x32xf32> to vector<1xf32>
    %35 = vector.shape_cast %34 : vector<1xf32> to vector<1x1x1xf32>
    %36 = vector.extract %35[0, 0, 0] : f32 from vector<1x1x1xf32>
    %37 = vector.broadcast %36 : f32 to vector<1x1xf32>
    %cst_15 = arith.constant 0.001953125 : f32
    %38 = vector.broadcast %cst_15 : f32 to vector<1x1xf32>
    %39 = arith.mulf %37, %38 : vector<1x1xf32>
    %40 = vector.broadcast %39 : vector<1x1xf32> to vector<16x32xf32>
    %41 = arith.subf %30, %40 : vector<16x32xf32>
    %42 = arith.mulf %41, %41 : vector<16x32xf32>
    %43 = vector.shape_cast %42 : vector<16x32xf32> to vector<1x16x32xf32>
    %cst_16 = arith.constant dense<0.000000e+00> : vector<1xf32>
    %44 = vector.multi_reduction <add>, %43, %cst_16 [1, 2] : vector<1x16x32xf32> to vector<1xf32>
    %45 = vector.shape_cast %44 : vector<1xf32> to vector<1x1x1xf32>
    %46 = vector.extract %45[0, 0, 0] : f32 from vector<1x1x1xf32>
    %47 = vector.broadcast %46 : f32 to vector<1x1xf32>
    %cst_17 = arith.constant 5.120000e+02 : f32
    %48 = vector.broadcast %cst_17 : f32 to vector<1x1xf32>
    %49 = arith.addf %16, %48 : vector<1x1xf32>
    %50 = arith.subf %39, %18 : vector<1x1xf32>
    %cst_18 = arith.constant 5.120000e+02 : f32
    %51 = vector.broadcast %cst_18 : f32 to vector<1x1xf32>
    %52 = arith.divf %51, %49 : vector<1x1xf32>
    %53 = arith.mulf %50, %52 : vector<1x1xf32>
    %54 = arith.addf %18, %53 : vector<1x1xf32>
    %55 = arith.addf %20, %47 : vector<1x1xf32>
    %56 = arith.mulf %50, %50 : vector<1x1xf32>
    %cst_19 = arith.constant 5.120000e+02 : f32
    %57 = vector.broadcast %cst_19 : f32 to vector<1x1xf32>
    %58 = arith.divf %57, %49 : vector<1x1xf32>
    %59 = arith.mulf %16, %58 : vector<1x1xf32>
    %60 = arith.mulf %56, %59 : vector<1x1xf32>
    %61 = arith.addf %55, %60 : vector<1x1xf32>
    %c1_i32 = arith.constant 1 : i32
    %c0_20 = arith.constant 0 : index
    %62 = arith.index_cast %c1_i32 : i32 to index
    %c0_21 = arith.constant 0 : index
    %63 = vector.load %arg3[%c0_20, %62, %c0_21] : memref<1x4x32xi32, #tpu.memory_space<vmem>>, vector<1x1x32xi32>
    %64 = vector.shape_cast %63 : vector<1x1x32xi32> to vector<1x32xi32>
    %65 = vector.broadcast %64 : vector<1x32xi32> to vector<32x32xi32>
    %66 = arith.cmpi eq, %4, %65 : vector<32x32xi32>
    %67 = arith.extui %66 : vector<32x32xi1> to vector<32x32xi32>
    %68 = arith.sitofp %67 : vector<32x32xi32> to vector<32x32xf32>
    %69 = arith.truncf %68 : vector<32x32xf32> to vector<32x32xbf16>
    %70 = arith.subf %69, %11 : vector<32x32xbf16>
    %cst_22 = arith.constant dense<0.000000e+00> : vector<16x32xf32>
    %71 = tpu.matmul %12, %70, %cst_22 {dimension_numbers = #tpu.dot_dimension_numbers<[1], [0], [0], [1], [0, 0, 1, 1], [], []>} : vector<16x32xbf16>, vector<32x32xbf16>, vector<16x32xf32> -> vector<16x32xf32>
    %72 = arith.maximumf %31, %71 : vector<16x32xf32>
    %73 = arith.minimumf %32, %71 : vector<16x32xf32>
    %74 = vector.shape_cast %71 : vector<16x32xf32> to vector<1x16x32xf32>
    %cst_23 = arith.constant dense<0.000000e+00> : vector<1xf32>
    %75 = vector.multi_reduction <add>, %74, %cst_23 [1, 2] : vector<1x16x32xf32> to vector<1xf32>
    %76 = vector.shape_cast %75 : vector<1xf32> to vector<1x1x1xf32>
    %77 = vector.extract %76[0, 0, 0] : f32 from vector<1x1x1xf32>
    %78 = vector.broadcast %77 : f32 to vector<1x1xf32>
    %cst_24 = arith.constant 0.001953125 : f32
    %79 = vector.broadcast %cst_24 : f32 to vector<1x1xf32>
    %80 = arith.mulf %78, %79 : vector<1x1xf32>
    %81 = vector.broadcast %80 : vector<1x1xf32> to vector<16x32xf32>
    %82 = arith.subf %71, %81 : vector<16x32xf32>
    %83 = arith.mulf %82, %82 : vector<16x32xf32>
    %84 = vector.shape_cast %83 : vector<16x32xf32> to vector<1x16x32xf32>
    %cst_25 = arith.constant dense<0.000000e+00> : vector<1xf32>
    %85 = vector.multi_reduction <add>, %84, %cst_25 [1, 2] : vector<1x16x32xf32> to vector<1xf32>
    %86 = vector.shape_cast %85 : vector<1xf32> to vector<1x1x1xf32>
    %87 = vector.extract %86[0, 0, 0] : f32 from vector<1x1x1xf32>
    %88 = vector.broadcast %87 : f32 to vector<1x1xf32>
    %cst_26 = arith.constant 5.120000e+02 : f32
    %89 = vector.broadcast %cst_26 : f32 to vector<1x1xf32>
    %90 = arith.addf %49, %89 : vector<1x1xf32>
    %91 = arith.subf %80, %54 : vector<1x1xf32>
    %cst_27 = arith.constant 5.120000e+02 : f32
    %92 = vector.broadcast %cst_27 : f32 to vector<1x1xf32>
    %93 = arith.divf %92, %90 : vector<1x1xf32>
    %94 = arith.mulf %91, %93 : vector<1x1xf32>
    %95 = arith.addf %54, %94 : vector<1x1xf32>
    %96 = arith.addf %61, %88 : vector<1x1xf32>
    %97 = arith.mulf %91, %91 : vector<1x1xf32>
    %cst_28 = arith.constant 5.120000e+02 : f32
    %98 = vector.broadcast %cst_28 : f32 to vector<1x1xf32>
    %99 = arith.divf %98, %90 : vector<1x1xf32>
    %100 = arith.mulf %49, %99 : vector<1x1xf32>
    %101 = arith.mulf %97, %100 : vector<1x1xf32>
    %102 = arith.addf %96, %101 : vector<1x1xf32>
    %c2_i32 = arith.constant 2 : i32
    %c0_29 = arith.constant 0 : index
    %103 = arith.index_cast %c2_i32 : i32 to index
    %c0_30 = arith.constant 0 : index
    %104 = vector.load %arg3[%c0_29, %103, %c0_30] : memref<1x4x32xi32, #tpu.memory_space<vmem>>, vector<1x1x32xi32>
    %105 = vector.shape_cast %104 : vector<1x1x32xi32> to vector<1x32xi32>
    %106 = vector.broadcast %105 : vector<1x32xi32> to vector<32x32xi32>
    %107 = arith.cmpi eq, %4, %106 : vector<32x32xi32>
    %108 = arith.extui %107 : vector<32x32xi1> to vector<32x32xi32>
    %109 = arith.sitofp %108 : vector<32x32xi32> to vector<32x32xf32>
    %110 = arith.truncf %109 : vector<32x32xf32> to vector<32x32xbf16>
    %111 = arith.subf %110, %11 : vector<32x32xbf16>
    %cst_31 = arith.constant dense<0.000000e+00> : vector<16x32xf32>
    %112 = tpu.matmul %12, %111, %cst_31 {dimension_numbers = #tpu.dot_dimension_numbers<[1], [0], [0], [1], [0, 0, 1, 1], [], []>} : vector<16x32xbf16>, vector<32x32xbf16>, vector<16x32xf32> -> vector<16x32xf32>
    %113 = arith.maximumf %72, %112 : vector<16x32xf32>
    %114 = arith.minimumf %73, %112 : vector<16x32xf32>
    %115 = vector.shape_cast %112 : vector<16x32xf32> to vector<1x16x32xf32>
    %cst_32 = arith.constant dense<0.000000e+00> : vector<1xf32>
    %116 = vector.multi_reduction <add>, %115, %cst_32 [1, 2] : vector<1x16x32xf32> to vector<1xf32>
    %117 = vector.shape_cast %116 : vector<1xf32> to vector<1x1x1xf32>
    %118 = vector.extract %117[0, 0, 0] : f32 from vector<1x1x1xf32>
    %119 = vector.broadcast %118 : f32 to vector<1x1xf32>
    %cst_33 = arith.constant 0.001953125 : f32
    %120 = vector.broadcast %cst_33 : f32 to vector<1x1xf32>
    %121 = arith.mulf %119, %120 : vector<1x1xf32>
    %122 = vector.broadcast %121 : vector<1x1xf32> to vector<16x32xf32>
    %123 = arith.subf %112, %122 : vector<16x32xf32>
    %124 = arith.mulf %123, %123 : vector<16x32xf32>
    %125 = vector.shape_cast %124 : vector<16x32xf32> to vector<1x16x32xf32>
    %cst_34 = arith.constant dense<0.000000e+00> : vector<1xf32>
    %126 = vector.multi_reduction <add>, %125, %cst_34 [1, 2] : vector<1x16x32xf32> to vector<1xf32>
    %127 = vector.shape_cast %126 : vector<1xf32> to vector<1x1x1xf32>
    %128 = vector.extract %127[0, 0, 0] : f32 from vector<1x1x1xf32>
    %129 = vector.broadcast %128 : f32 to vector<1x1xf32>
    %cst_35 = arith.constant 5.120000e+02 : f32
    %130 = vector.broadcast %cst_35 : f32 to vector<1x1xf32>
    %131 = arith.addf %90, %130 : vector<1x1xf32>
    %132 = arith.subf %121, %95 : vector<1x1xf32>
    %cst_36 = arith.constant 5.120000e+02 : f32
    %133 = vector.broadcast %cst_36 : f32 to vector<1x1xf32>
    %134 = arith.divf %133, %131 : vector<1x1xf32>
    %135 = arith.mulf %132, %134 : vector<1x1xf32>
    %136 = arith.addf %95, %135 : vector<1x1xf32>
    %137 = arith.addf %102, %129 : vector<1x1xf32>
    %138 = arith.mulf %132, %132 : vector<1x1xf32>
    %cst_37 = arith.constant 5.120000e+02 : f32
    %139 = vector.broadcast %cst_37 : f32 to vector<1x1xf32>
    %140 = arith.divf %139, %131 : vector<1x1xf32>
    %141 = arith.mulf %90, %140 : vector<1x1xf32>
    %142 = arith.mulf %138, %141 : vector<1x1xf32>
    %143 = arith.addf %137, %142 : vector<1x1xf32>
    %c3_i32 = arith.constant 3 : i32
    %c0_38 = arith.constant 0 : index
    %144 = arith.index_cast %c3_i32 : i32 to index
    %c0_39 = arith.constant 0 : index
    %145 = vector.load %arg3[%c0_38, %144, %c0_39] : memref<1x4x32xi32, #tpu.memory_space<vmem>>, vector<1x1x32xi32>
    %146 = vector.shape_cast %145 : vector<1x1x32xi32> to vector<1x32xi32>
    %147 = vector.broadcast %146 : vector<1x32xi32> to vector<32x32xi32>
    %148 = arith.cmpi eq, %4, %147 : vector<32x32xi32>
    %149 = arith.extui %148 : vector<32x32xi1> to vector<32x32xi32>
    %150 = arith.sitofp %149 : vector<32x32xi32> to vector<32x32xf32>
    %151 = arith.truncf %150 : vector<32x32xf32> to vector<32x32xbf16>
    %152 = arith.subf %151, %11 : vector<32x32xbf16>
    %cst_40 = arith.constant dense<0.000000e+00> : vector<16x32xf32>
    %153 = tpu.matmul %12, %152, %cst_40 {dimension_numbers = #tpu.dot_dimension_numbers<[1], [0], [0], [1], [0, 0, 1, 1], [], []>} : vector<16x32xbf16>, vector<32x32xbf16>, vector<16x32xf32> -> vector<16x32xf32>
    %154 = arith.maximumf %113, %153 : vector<16x32xf32>
    %155 = arith.minimumf %114, %153 : vector<16x32xf32>
    %156 = vector.shape_cast %153 : vector<16x32xf32> to vector<1x16x32xf32>
    %cst_41 = arith.constant dense<0.000000e+00> : vector<1xf32>
    %157 = vector.multi_reduction <add>, %156, %cst_41 [1, 2] : vector<1x16x32xf32> to vector<1xf32>
    %158 = vector.shape_cast %157 : vector<1xf32> to vector<1x1x1xf32>
    %159 = vector.extract %158[0, 0, 0] : f32 from vector<1x1x1xf32>
    %160 = vector.broadcast %159 : f32 to vector<1x1xf32>
    %cst_42 = arith.constant 0.001953125 : f32
    %161 = vector.broadcast %cst_42 : f32 to vector<1x1xf32>
    %162 = arith.mulf %160, %161 : vector<1x1xf32>
    %163 = vector.broadcast %162 : vector<1x1xf32> to vector<16x32xf32>
    %164 = arith.subf %153, %163 : vector<16x32xf32>
    %165 = arith.mulf %164, %164 : vector<16x32xf32>
    %166 = vector.shape_cast %165 : vector<16x32xf32> to vector<1x16x32xf32>
    %cst_43 = arith.constant dense<0.000000e+00> : vector<1xf32>
    %167 = vector.multi_reduction <add>, %166, %cst_43 [1, 2] : vector<1x16x32xf32> to vector<1xf32>
    %168 = vector.shape_cast %167 : vector<1xf32> to vector<1x1x1xf32>
    %169 = vector.extract %168[0, 0, 0] : f32 from vector<1x1x1xf32>
    %170 = vector.broadcast %169 : f32 to vector<1x1xf32>
    %cst_44 = arith.constant 5.120000e+02 : f32
    %171 = vector.broadcast %cst_44 : f32 to vector<1x1xf32>
    %172 = arith.addf %131, %171 : vector<1x1xf32>
    %173 = arith.subf %162, %136 : vector<1x1xf32>
    %cst_45 = arith.constant 5.120000e+02 : f32
    %174 = vector.broadcast %cst_45 : f32 to vector<1x1xf32>
    %175 = arith.divf %174, %172 : vector<1x1xf32>
    %176 = arith.mulf %173, %175 : vector<1x1xf32>
    %177 = arith.addf %136, %176 : vector<1x1xf32>
    %178 = arith.addf %143, %170 : vector<1x1xf32>
    %179 = arith.mulf %173, %173 : vector<1x1xf32>
    %cst_46 = arith.constant 5.120000e+02 : f32
    %180 = vector.broadcast %cst_46 : f32 to vector<1x1xf32>
    %181 = arith.divf %180, %172 : vector<1x1xf32>
    %182 = arith.mulf %131, %181 : vector<1x1xf32>
    %183 = arith.mulf %179, %182 : vector<1x1xf32>
    %184 = arith.addf %178, %183 : vector<1x1xf32>
    %c4_i32 = arith.constant 4 : i32
    %185 = arith.index_cast %arg1 : i32 to index
    %c0_47 = arith.constant 0 : index
    %c0_48 = arith.constant 0 : index
    %186 = vector.load %arg9[%185, %c0_47, %c0_48] : memref<1x16x32xf32, #tpu.memory_space<vmem>>, vector<1x16x32xf32>
    %187 = vector.shape_cast %186 : vector<1x16x32xf32> to vector<16x32xf32>
    %188 = vector.shape_cast %154 : vector<16x32xf32> to vector<1x16x32xf32>
    tpu.vector_store %arg9[%185, %c0_47, %c0_48], %188 {strides = array<i32>} : memref<1x16x32xf32, #tpu.memory_space<vmem>>, vector<1x16x32xf32>,
    %189 = arith.index_cast %arg1 : i32 to index
    %c0_49 = arith.constant 0 : index
    %c0_50 = arith.constant 0 : index
    %190 = vector.load %arg10[%189, %c0_49, %c0_50] : memref<1x16x32xf32, #tpu.memory_space<vmem>>, vector<1x16x32xf32>
    %191 = vector.shape_cast %190 : vector<1x16x32xf32> to vector<16x32xf32>
    %192 = vector.shape_cast %155 : vector<16x32xf32> to vector<1x16x32xf32>
    tpu.vector_store %arg10[%189, %c0_49, %c0_50], %192 {strides = array<i32>} : memref<1x16x32xf32, #tpu.memory_space<vmem>>, vector<1x16x32xf32>,
    %c0_51 = arith.constant 0 : index
    %c0_52 = arith.constant 0 : index
    %c0_53 = arith.constant 0 : index
    %193 = vector.load %arg11[%c0_51, %c0_52, %c0_53] : memref<3x1x1xf32, #tpu.memory_space<vmem>>, vector<1x1x1xf32>
    %194 = vector.shape_cast %193 : vector<1x1x1xf32> to vector<1x1xf32>
    %195 = vector.shape_cast %172 : vector<1x1xf32> to vector<1x1x1xf32>
    tpu.vector_store %arg11[%c0_51, %c0_52, %c0_53], %195 {strides = array<i32>} : memref<3x1x1xf32, #tpu.memory_space<vmem>>, vector<1x1x1xf32>,
    %c1_54 = arith.constant 1 : index
    %c0_55 = arith.constant 0 : index
    %c0_56 = arith.constant 0 : index
    %196 = vector.load %arg11[%c1_54, %c0_55, %c0_56] : memref<3x1x1xf32, #tpu.memory_space<vmem>>, vector<1x1x1xf32>
    %197 = vector.shape_cast %196 : vector<1x1x1xf32> to vector<1x1xf32>
    %198 = vector.shape_cast %177 : vector<1x1xf32> to vector<1x1x1xf32>
    tpu.vector_store %arg11[%c1_54, %c0_55, %c0_56], %198 {strides = array<i32>} : memref<3x1x1xf32, #tpu.memory_space<vmem>>, vector<1x1x1xf32>,
    %c2_57 = arith.constant 2 : index
    %c0_58 = arith.constant 0 : index
    %c0_59 = arith.constant 0 : index
    %199 = vector.load %arg11[%c2_57, %c0_58, %c0_59] : memref<3x1x1xf32, #tpu.memory_space<vmem>>, vector<1x1x1xf32>
    %200 = vector.shape_cast %199 : vector<1x1x1xf32> to vector<1x1xf32>
    %201 = vector.shape_cast %184 : vector<1x1xf32> to vector<1x1x1xf32>
    tpu.vector_store %arg11[%c2_57, %c0_58, %c0_59], %201 {strides = array<i32>} : memref<3x1x1xf32, #tpu.memory_space<vmem>>, vector<1x1x1xf32>,
    %c0_i32_60 = arith.constant 0 : i32
    %202 = arith.cmpi eq, %arg1, %c0_i32_60 : i32
    %203 = arith.extui %202 : i1 to i32
    %c0_i32_61 = arith.constant 0 : i32
    %204 = arith.cmpi ne, %203, %c0_i32_61 : i32
    scf.if %204 {
      %c0_62 = arith.constant 0 : index
      %c0_63 = arith.constant 0 : index
      %c0_64 = arith.constant 0 : index
      %205 = vector.load %arg11[%c0_62, %c0_63, %c0_64] : memref<3x1x1xf32, #tpu.memory_space<vmem>>, vector<1x1x1xf32>
      %206 = vector.shape_cast %205 : vector<1x1x1xf32> to vector<1x1xf32>
      %c2_65 = arith.constant 2 : index
      %c0_66 = arith.constant 0 : index
      %c0_67 = arith.constant 0 : index
      %207 = vector.load %arg11[%c2_65, %c0_66, %c0_67] : memref<3x1x1xf32, #tpu.memory_space<vmem>>, vector<1x1x1xf32>
      %208 = vector.shape_cast %207 : vector<1x1x1xf32> to vector<1x1xf32>
      %cst_68 = arith.constant 1.000000e+00 : f32
      %209 = vector.broadcast %cst_68 : f32 to vector<1x1xf32>
      %210 = arith.subf %206, %209 : vector<1x1xf32>
      %211 = arith.divf %208, %210 : vector<1x1xf32>
      %212 = math.sqrt %211 : vector<1x1xf32>
      %cst_69 = arith.constant 9.99999974E-6 : f32
      %213 = vector.broadcast %cst_69 : f32 to vector<1x1xf32>
      %214 = arith.addf %212, %213 : vector<1x1xf32>
      %cst_70 = arith.constant 1.000000e+00 : f32
      %215 = vector.broadcast %cst_70 : f32 to vector<1x1xf32>
      %216 = arith.divf %215, %214 : vector<1x1xf32>
      %c0_71 = arith.constant 0 : index
      %c0_72 = arith.constant 0 : index
      %217 = vector.load %arg5[%c0_71, %c0_72] : memref<16x1xf32, #tpu.memory_space<vmem>>, vector<16x1xf32>
      %c0_73 = arith.constant 0 : index
      %c0_74 = arith.constant 0 : index
      %218 = vector.load %arg6[%c0_73, %c0_74] : memref<16x1xf32, #tpu.memory_space<vmem>>, vector<16x1xf32>
      %219 = vector.broadcast %216 : vector<1x1xf32> to vector<16x1xf32>
      %220 = arith.mulf %217, %219 : vector<16x1xf32>
      %cst_75 = arith.constant 0.000000e+00 : f32
      %221 = vector.broadcast %cst_75 : f32 to vector<16x1xf32>
      %222 = arith.cmpf oge, %217, %221 : vector<16x1xf32>
      %c0_76 = arith.constant 0 : index
      %c0_77 = arith.constant 0 : index
      %c0_78 = arith.constant 0 : index
      %223 = vector.load %arg9[%c0_76, %c0_77, %c0_78] : memref<1x16x32xf32, #tpu.memory_space<vmem>>, vector<1x16x32xf32>
      %224 = vector.shape_cast %223 : vector<1x16x32xf32> to vector<16x32xf32>
      %c0_79 = arith.constant 0 : index
      %c0_80 = arith.constant 0 : index
      %c0_81 = arith.constant 0 : index
      %225 = vector.load %arg10[%c0_79, %c0_80, %c0_81] : memref<1x16x32xf32, #tpu.memory_space<vmem>>, vector<1x16x32xf32>
      %226 = vector.shape_cast %225 : vector<1x16x32xf32> to vector<16x32xf32>
      %227 = vector.shape_cast %222 : vector<16x1xi1> to vector<16x1xi1>
      %228 = vector.broadcast %227 : vector<16x1xi1> to vector<16x32xi1>
      %229 = arith.select %228, %224, %226 : vector<16x32xi1>, vector<16x32xf32>
      %230 = vector.broadcast %220 : vector<16x1xf32> to vector<16x32xf32>
      %231 = arith.mulf %229, %230 : vector<16x32xf32>
      %232 = vector.broadcast %218 : vector<16x1xf32> to vector<16x32xf32>
      %233 = arith.addf %231, %232 : vector<16x32xf32>
      %c0_82 = arith.constant 0 : index
      %c0_83 = arith.constant 0 : index
      %c0_84 = arith.constant 0 : index
      %234 = vector.load %arg7[%c0_82, %c0_83, %c0_84] : memref<1x16x32xf32, #tpu.memory_space<vmem>>, vector<1x16x32xf32>
      %235 = vector.shape_cast %234 : vector<1x16x32xf32> to vector<16x32xf32>
      %236 = vector.shape_cast %233 : vector<16x32xf32> to vector<1x16x32xf32>
      tpu.vector_store %arg7[%c0_82, %c0_83, %c0_84], %236 {strides = array<i32>} : memref<1x16x32xf32, #tpu.memory_space<vmem>>, vector<1x16x32xf32>,
    } else {
    }
    return
  }
  func.func @transform_0(%arg0: i32, %arg1: i32) -> (i32, i32, i32) {
    %c0_i32 = arith.constant 0 : i32
    %c0_i32_0 = arith.constant 0 : i32
    %c0_i32_1 = arith.constant 0 : i32
    return %arg0, %c0_i32, %c0_i32_0 : i32, i32, i32
  }
  func.func @transform_1(%arg0: i32, %arg1: i32) -> (i32, i32, i32) {
    %c0_i32 = arith.constant 0 : i32
    %c0_i32_0 = arith.constant 0 : i32
    return %arg0, %c0_i32, %arg1 : i32, i32, i32
  }
  func.func @transform_2(%arg0: i32, %arg1: i32) -> (i32, i32) {
    %c0_i32 = arith.constant 0 : i32
    %c0_i32_0 = arith.constant 0 : i32
    %c0_i32_1 = arith.constant 0 : i32
    return %c0_i32, %c0_i32_0 : i32, i32
  }
  func.func @transform_3(%arg0: i32, %arg1: i32) -> (i32, i32) {
    %c0_i32 = arith.constant 0 : i32
    %c0_i32_0 = arith.constant 0 : i32
    %c0_i32_1 = arith.constant 0 : i32
    return %c0_i32, %c0_i32_0 : i32, i32
  }
  func.func @transform_4(%arg0: i32, %arg1: i32) -> (i32, i32) {
    %c0_i32 = arith.constant 0 : i32
    %c0_i32_0 = arith.constant 0 : i32
    %c0_i32_1 = arith.constant 0 : i32
    return %c0_i32, %c0_i32_0 : i32, i32
  }
  func.func @transform_5(%arg0: i32, %arg1: i32) -> (i32, i32, i32) {
    %c0_i32 = arith.constant 0 : i32
    %c0_i32_0 = arith.constant 0 : i32
    %c0_i32_1 = arith.constant 0 : i32
    return %arg0, %c0_i32, %c0_i32_0 : i32, i32, i32
  }
}

module attributes {stable_mosaic.version = 11 : i64} {
  func.func @fused_mlp_kernel(%arg0: i32, %arg1: i32, %arg2: i32, %arg3: memref<1x3x32xf32, #tpu.memory_space<vmem>>, %arg4: memref<16x3xf32, #tpu.memory_space<vmem>>, %arg5: memref<1x16x16xf32, #tpu.memory_space<vmem>>, %arg6: memref<2x16x1xf32, #tpu.memory_space<vmem>>, %arg7: memref<2x16x1xf32, #tpu.memory_space<vmem>>, %arg8: memref<1x16x32xf32, #tpu.memory_space<vmem>>, %arg9: memref<2x16x32xf32, #tpu.memory_space<vmem>>, %arg10: memref<2x16x1xf32, #tpu.memory_space<vmem>>, %arg11: memref<2x16x1xf32, #tpu.memory_space<vmem>>) attributes {dimension_semantics = [#tpu.dimension_semantics<arbitrary>, #tpu.dimension_semantics<arbitrary>, #tpu.dimension_semantics<arbitrary>], iteration_bounds = array<i64: 3, 2, 1>, scalar_prefetch = 0 : i64, scratch_operands = 3 : i64, tpu.core_type = #tpu.core_type<tc>, window_params = [{transform_indices = @transform_0, window_bounds = array<i64: 1, 3, 32>}, {pipeline_mode = #tpu.pipeline_mode<synchronous>, transform_indices = @transform_1, window_bounds = array<i64: 16, 3>}, {pipeline_mode = #tpu.pipeline_mode<synchronous>, transform_indices = @transform_2, window_bounds = array<i64: 1, 16, 16>}, {pipeline_mode = #tpu.pipeline_mode<synchronous>, transform_indices = @transform_3, window_bounds = array<i64: 2, 16, 1>}, {pipeline_mode = #tpu.pipeline_mode<synchronous>, transform_indices = @transform_4, window_bounds = array<i64: 2, 16, 1>}, {transform_indices = @transform_5, window_bounds = array<i64: 1, 16, 32>}]} {
    %c1_i32 = arith.constant 1 : i32
    %0 = arith.muli %arg1, %c1_i32 : i32
    %1 = arith.addi %0, %arg2 : i32
    %c0_i32 = arith.constant 0 : i32
    %2 = arith.cmpi eq, %arg0, %c0_i32 : i32
    %c0_i32_0 = arith.constant 0 : i32
    %3 = arith.cmpi eq, %arg1, %c0_i32_0 : i32
    %4 = arith.andi %2, %3 : i1
    %c0_i32_1 = arith.constant 0 : i32
    %5 = arith.cmpi eq, %arg2, %c0_i32_1 : i32
    %6 = arith.andi %4, %5 : i1
    %7 = arith.extui %6 : i1 to i32
    %c0_i32_2 = arith.constant 0 : i32
    %8 = arith.cmpi ne, %7, %c0_i32_2 : i32
    scf.if %8 {
      %cst = arith.constant 0.000000e+00 : f32
      %15 = vector.broadcast %cst : f32 to vector<2x16x1xf32>
      %c0 = arith.constant 0 : index
      %c0_7 = arith.constant 0 : index
      %c0_8 = arith.constant 0 : index
      %16 = vector.load %arg10[%c0, %c0_7, %c0_8] : memref<2x16x1xf32, #tpu.memory_space<vmem>>, vector<2x16x1xf32>
      tpu.vector_store %arg10[%c0, %c0_7, %c0_8], %15 {strides = array<i32>} : memref<2x16x1xf32, #tpu.memory_space<vmem>>, vector<2x16x1xf32>,
      %cst_9 = arith.constant 0.000000e+00 : f32
      %17 = vector.broadcast %cst_9 : f32 to vector<2x16x1xf32>
      %c0_10 = arith.constant 0 : index
      %c0_11 = arith.constant 0 : index
      %c0_12 = arith.constant 0 : index
      %18 = vector.load %arg11[%c0_10, %c0_11, %c0_12] : memref<2x16x1xf32, #tpu.memory_space<vmem>>, vector<2x16x1xf32>
      tpu.vector_store %arg11[%c0_10, %c0_11, %c0_12], %17 {strides = array<i32>} : memref<2x16x1xf32, #tpu.memory_space<vmem>>, vector<2x16x1xf32>,
    } else {
    }
    %c0_i32_3 = arith.constant 0 : i32
    %9 = arith.cmpi eq, %arg0, %c0_i32_3 : i32
    %10 = arith.extui %9 : i1 to i32
    %c0_i32_4 = arith.constant 0 : i32
    %11 = arith.cmpi ne, %10, %c0_i32_4 : i32
    scf.if %11 {
      %c0 = arith.constant 0 : index
      %c0_7 = arith.constant 0 : index
      %15 = vector.load %arg4[%c0, %c0_7] : memref<16x3xf32, #tpu.memory_space<vmem>>, vector<16x3xf32>
      %c0_8 = arith.constant 0 : index
      %c0_9 = arith.constant 0 : index
      %c0_10 = arith.constant 0 : index
      %16 = vector.load %arg3[%c0_8, %c0_9, %c0_10] : memref<1x3x32xf32, #tpu.memory_space<vmem>>, vector<1x3x32xf32>
      %17 = vector.shape_cast %16 : vector<1x3x32xf32> to vector<3x32xf32>
      %cst = arith.constant dense<0.000000e+00> : vector<16x32xf32>
      %18 = tpu.matmul %15, %17, %cst {dimension_numbers = #tpu.dot_dimension_numbers<[1], [0], [0], [1], [0, 0, 1, 1], [], []>} : vector<16x3xf32>, vector<3x32xf32>, vector<16x32xf32> -> vector<16x32xf32>
      %19 = arith.index_cast %1 : i32 to index
      %c0_11 = arith.constant 0 : index
      %c0_12 = arith.constant 0 : index
      %20 = vector.load %arg9[%19, %c0_11, %c0_12] : memref<2x16x32xf32, #tpu.memory_space<vmem>>, vector<1x16x32xf32>
      %21 = vector.shape_cast %20 : vector<1x16x32xf32> to vector<16x32xf32>
      %22 = vector.shape_cast %18 : vector<16x32xf32> to vector<1x16x32xf32>
      tpu.vector_store %arg9[%19, %c0_11, %c0_12], %22 {strides = array<i32>} : memref<2x16x32xf32, #tpu.memory_space<vmem>>, vector<1x16x32xf32>,
      %c0_13 = arith.constant 0 : index
      %c0_14 = arith.constant 0 : index
      %c0_15 = arith.constant 0 : index
      %23 = vector.load %arg10[%c0_13, %c0_14, %c0_15] : memref<2x16x1xf32, #tpu.memory_space<vmem>>, vector<1x16x1xf32>
      %24 = vector.shape_cast %23 : vector<1x16x1xf32> to vector<16x1xf32>
      %cst_16 = arith.constant dense<0.000000e+00> : vector<16xf32>
      %25 = vector.multi_reduction <add>, %18, %cst_16 [1] : vector<16x32xf32> to vector<16xf32>
      %26 = vector.shape_cast %25 : vector<16xf32> to vector<16x1xf32>
      %27 = arith.addf %24, %26 : vector<16x1xf32>
      %c0_17 = arith.constant 0 : index
      %c0_18 = arith.constant 0 : index
      %c0_19 = arith.constant 0 : index
      %28 = vector.load %arg10[%c0_17, %c0_18, %c0_19] : memref<2x16x1xf32, #tpu.memory_space<vmem>>, vector<1x16x1xf32>
      %29 = vector.shape_cast %28 : vector<1x16x1xf32> to vector<16x1xf32>
      %30 = vector.shape_cast %27 : vector<16x1xf32> to vector<1x16x1xf32>
      tpu.vector_store %arg10[%c0_17, %c0_18, %c0_19], %30 {strides = array<i32>} : memref<2x16x1xf32, #tpu.memory_space<vmem>>, vector<1x16x1xf32>,
      %c0_20 = arith.constant 0 : index
      %c0_21 = arith.constant 0 : index
      %c0_22 = arith.constant 0 : index
      %31 = vector.load %arg11[%c0_20, %c0_21, %c0_22] : memref<2x16x1xf32, #tpu.memory_space<vmem>>, vector<1x16x1xf32>
      %32 = vector.shape_cast %31 : vector<1x16x1xf32> to vector<16x1xf32>
      %33 = arith.mulf %18, %18 : vector<16x32xf32>
      %cst_23 = arith.constant dense<0.000000e+00> : vector<16xf32>
      %34 = vector.multi_reduction <add>, %33, %cst_23 [1] : vector<16x32xf32> to vector<16xf32>
      %35 = vector.shape_cast %34 : vector<16xf32> to vector<16x1xf32>
      %36 = arith.addf %32, %35 : vector<16x1xf32>
      %c0_24 = arith.constant 0 : index
      %c0_25 = arith.constant 0 : index
      %c0_26 = arith.constant 0 : index
      %37 = vector.load %arg11[%c0_24, %c0_25, %c0_26] : memref<2x16x1xf32, #tpu.memory_space<vmem>>, vector<1x16x1xf32>
      %38 = vector.shape_cast %37 : vector<1x16x1xf32> to vector<16x1xf32>
      %39 = vector.shape_cast %36 : vector<16x1xf32> to vector<1x16x1xf32>
      tpu.vector_store %arg11[%c0_24, %c0_25, %c0_26], %39 {strides = array<i32>} : memref<2x16x1xf32, #tpu.memory_space<vmem>>, vector<1x16x1xf32>,
    } else {
    }
    %c1_i32_5 = arith.constant 1 : i32
    %12 = arith.cmpi sge, %arg0, %c1_i32_5 : i32
    %13 = arith.extui %12 : i1 to i32
    %c0_i32_6 = arith.constant 0 : i32
    %14 = arith.cmpi ne, %13, %c0_i32_6 : i32
    scf.if %14 {
      %c1_i32_7 = arith.constant 1 : i32
      %15 = arith.subi %arg0, %c1_i32_7 : i32
      %16 = arith.index_cast %1 : i32 to index
      %c0 = arith.constant 0 : index
      %c0_8 = arith.constant 0 : index
      %17 = vector.load %arg9[%16, %c0, %c0_8] : memref<2x16x32xf32, #tpu.memory_space<vmem>>, vector<1x16x32xf32>
      %18 = vector.shape_cast %17 : vector<1x16x32xf32> to vector<16x32xf32>
      %19 = arith.index_cast %15 : i32 to index
      %c0_9 = arith.constant 0 : index
      %c0_10 = arith.constant 0 : index
      %20 = vector.load %arg10[%19, %c0_9, %c0_10] : memref<2x16x1xf32, #tpu.memory_space<vmem>>, vector<1x16x1xf32>
      %21 = vector.shape_cast %20 : vector<1x16x1xf32> to vector<16x1xf32>
      %cst = arith.constant 1.562500e-02 : f32
      %22 = vector.broadcast %cst : f32 to vector<16x1xf32>
      %23 = arith.mulf %21, %22 : vector<16x1xf32>
      %24 = arith.index_cast %15 : i32 to index
      %c0_11 = arith.constant 0 : index
      %c0_12 = arith.constant 0 : index
      %25 = vector.load %arg11[%24, %c0_11, %c0_12] : memref<2x16x1xf32, #tpu.memory_space<vmem>>, vector<1x16x1xf32>
      %26 = vector.shape_cast %25 : vector<1x16x1xf32> to vector<16x1xf32>
      %cst_13 = arith.constant 1.562500e-02 : f32
      %27 = vector.broadcast %cst_13 : f32 to vector<16x1xf32>
      %28 = arith.mulf %26, %27 : vector<16x1xf32>
      %29 = arith.mulf %23, %23 : vector<16x1xf32>
      %30 = arith.subf %28, %29 : vector<16x1xf32>
      %cst_14 = arith.constant 0.000000e+00 : f32
      %31 = vector.broadcast %cst_14 : f32 to vector<16x1xf32>
      %32 = arith.maximumf %30, %31 : vector<16x1xf32>
      %33 = vector.broadcast %23 : vector<16x1xf32> to vector<16x32xf32>
      %34 = arith.subf %18, %33 : vector<16x32xf32>
      %cst_15 = arith.constant 9.99999974E-6 : f32
      %35 = vector.broadcast %cst_15 : f32 to vector<16x1xf32>
      %36 = arith.addf %32, %35 : vector<16x1xf32>
      %37 = math.rsqrt %36 : vector<16x1xf32>
      %38 = vector.broadcast %37 : vector<16x1xf32> to vector<16x32xf32>
      %39 = arith.mulf %34, %38 : vector<16x32xf32>
      %40 = arith.index_cast %15 : i32 to index
      %c0_16 = arith.constant 0 : index
      %c0_17 = arith.constant 0 : index
      %41 = vector.load %arg6[%40, %c0_16, %c0_17] : memref<2x16x1xf32, #tpu.memory_space<vmem>>, vector<1x16x1xf32>
      %42 = vector.shape_cast %41 : vector<1x16x1xf32> to vector<16x1xf32>
      %43 = vector.broadcast %42 : vector<16x1xf32> to vector<16x32xf32>
      %44 = arith.mulf %39, %43 : vector<16x32xf32>
      %45 = arith.index_cast %15 : i32 to index
      %c0_18 = arith.constant 0 : index
      %c0_19 = arith.constant 0 : index
      %46 = vector.load %arg7[%45, %c0_18, %c0_19] : memref<2x16x1xf32, #tpu.memory_space<vmem>>, vector<1x16x1xf32>
      %47 = vector.shape_cast %46 : vector<1x16x1xf32> to vector<16x1xf32>
      %48 = vector.broadcast %47 : vector<16x1xf32> to vector<16x32xf32>
      %49 = arith.addf %44, %48 : vector<16x32xf32>
      %cst_20 = arith.constant 0.000000e+00 : f32
      %50 = vector.broadcast %cst_20 : f32 to vector<16x32xf32>
      %51 = arith.cmpf ogt, %49, %50 : vector<16x32xf32>
      %cst_21 = arith.constant 1.000000e-01 : f32
      %52 = vector.broadcast %cst_21 : f32 to vector<16x32xf32>
      %53 = arith.mulf %52, %49 : vector<16x32xf32>
      %54 = arith.select %51, %49, %53 : vector<16x32xi1>, vector<16x32xf32>
      %c1_i32_22 = arith.constant 1 : i32
      %55 = arith.cmpi sle, %arg0, %c1_i32_22 : i32
      %56 = arith.extui %55 : i1 to i32
      %c0_i32_23 = arith.constant 0 : i32
      %57 = arith.cmpi ne, %56, %c0_i32_23 : i32
      scf.if %57 {
        %c1_i32_25 = arith.constant 1 : i32
        %61 = arith.subi %arg0, %c1_i32_25 : i32
        %62 = arith.index_cast %61 : i32 to index
        %c0_26 = arith.constant 0 : index
        %c0_27 = arith.constant 0 : index
        %63 = vector.load %arg5[%62, %c0_26, %c0_27] : memref<1x16x16xf32, #tpu.memory_space<vmem>>, vector<1x16x16xf32>
        %64 = vector.shape_cast %63 : vector<1x16x16xf32> to vector<16x16xf32>
        %cst_28 = arith.constant dense<0.000000e+00> : vector<16x32xf32>
        %65 = tpu.matmul %64, %54, %cst_28 {dimension_numbers = #tpu.dot_dimension_numbers<[1], [0], [0], [1], [0, 0, 1, 1], [], []>} : vector<16x16xf32>, vector<16x32xf32>, vector<16x32xf32> -> vector<16x32xf32>
        %66 = arith.index_cast %1 : i32 to index
        %c0_29 = arith.constant 0 : index
        %c0_30 = arith.constant 0 : index
        %67 = vector.load %arg9[%66, %c0_29, %c0_30] : memref<2x16x32xf32, #tpu.memory_space<vmem>>, vector<1x16x32xf32>
        %68 = vector.shape_cast %67 : vector<1x16x32xf32> to vector<16x32xf32>
        %69 = vector.shape_cast %65 : vector<16x32xf32> to vector<1x16x32xf32>
        tpu.vector_store %arg9[%66, %c0_29, %c0_30], %69 {strides = array<i32>} : memref<2x16x32xf32, #tpu.memory_space<vmem>>, vector<1x16x32xf32>,
        %70 = arith.index_cast %arg0 : i32 to index
        %c0_31 = arith.constant 0 : index
        %c0_32 = arith.constant 0 : index
        %71 = vector.load %arg10[%70, %c0_31, %c0_32] : memref<2x16x1xf32, #tpu.memory_space<vmem>>, vector<1x16x1xf32>
        %72 = vector.shape_cast %71 : vector<1x16x1xf32> to vector<16x1xf32>
        %cst_33 = arith.constant dense<0.000000e+00> : vector<16xf32>
        %73 = vector.multi_reduction <add>, %65, %cst_33 [1] : vector<16x32xf32> to vector<16xf32>
        %74 = vector.shape_cast %73 : vector<16xf32> to vector<16x1xf32>
        %75 = arith.addf %72, %74 : vector<16x1xf32>
        %76 = arith.index_cast %arg0 : i32 to index
        %c0_34 = arith.constant 0 : index
        %c0_35 = arith.constant 0 : index
        %77 = vector.load %arg10[%76, %c0_34, %c0_35] : memref<2x16x1xf32, #tpu.memory_space<vmem>>, vector<1x16x1xf32>
        %78 = vector.shape_cast %77 : vector<1x16x1xf32> to vector<16x1xf32>
        %79 = vector.shape_cast %75 : vector<16x1xf32> to vector<1x16x1xf32>
        tpu.vector_store %arg10[%76, %c0_34, %c0_35], %79 {strides = array<i32>} : memref<2x16x1xf32, #tpu.memory_space<vmem>>, vector<1x16x1xf32>,
        %80 = arith.index_cast %arg0 : i32 to index
        %c0_36 = arith.constant 0 : index
        %c0_37 = arith.constant 0 : index
        %81 = vector.load %arg11[%80, %c0_36, %c0_37] : memref<2x16x1xf32, #tpu.memory_space<vmem>>, vector<1x16x1xf32>
        %82 = vector.shape_cast %81 : vector<1x16x1xf32> to vector<16x1xf32>
        %83 = arith.mulf %65, %65 : vector<16x32xf32>
        %cst_38 = arith.constant dense<0.000000e+00> : vector<16xf32>
        %84 = vector.multi_reduction <add>, %83, %cst_38 [1] : vector<16x32xf32> to vector<16xf32>
        %85 = vector.shape_cast %84 : vector<16xf32> to vector<16x1xf32>
        %86 = arith.addf %82, %85 : vector<16x1xf32>
        %87 = arith.index_cast %arg0 : i32 to index
        %c0_39 = arith.constant 0 : index
        %c0_40 = arith.constant 0 : index
        %88 = vector.load %arg11[%87, %c0_39, %c0_40] : memref<2x16x1xf32, #tpu.memory_space<vmem>>, vector<1x16x1xf32>
        %89 = vector.shape_cast %88 : vector<1x16x1xf32> to vector<16x1xf32>
        %90 = vector.shape_cast %86 : vector<16x1xf32> to vector<1x16x1xf32>
        tpu.vector_store %arg11[%87, %c0_39, %c0_40], %90 {strides = array<i32>} : memref<2x16x1xf32, #tpu.memory_space<vmem>>, vector<1x16x1xf32>,
      } else {
      }
      %c2_i32 = arith.constant 2 : i32
      %58 = arith.cmpi eq, %arg0, %c2_i32 : i32
      %59 = arith.extui %58 : i1 to i32
      %c0_i32_24 = arith.constant 0 : i32
      %60 = arith.cmpi ne, %59, %c0_i32_24 : i32
      scf.if %60 {
        %c0_25 = arith.constant 0 : index
        %c0_26 = arith.constant 0 : index
        %c0_27 = arith.constant 0 : index
        %61 = vector.load %arg8[%c0_25, %c0_26, %c0_27] : memref<1x16x32xf32, #tpu.memory_space<vmem>>, vector<1x16x32xf32>
        %62 = vector.shape_cast %61 : vector<1x16x32xf32> to vector<16x32xf32>
        %63 = vector.shape_cast %54 : vector<16x32xf32> to vector<1x16x32xf32>
        tpu.vector_store %arg8[%c0_25, %c0_26, %c0_27], %63 {strides = array<i32>} : memref<1x16x32xf32, #tpu.memory_space<vmem>>, vector<1x16x32xf32>,
      } else {
      }
    } else {
    }
    return
  }
  func.func @transform_0(%arg0: i32, %arg1: i32, %arg2: i32) -> (i32, i32, i32) {
    %c0_i32 = arith.constant 0 : i32
    %0 = arith.cmpi eq, %arg0, %c0_i32 : i32
    %c0_i32_0 = arith.constant 0 : i32
    %1 = arith.select %0, %arg1, %c0_i32_0 : i32
    %c0_i32_1 = arith.constant 0 : i32
    %2 = arith.cmpi eq, %arg0, %c0_i32_1 : i32
    %c0_i32_2 = arith.constant 0 : i32
    %3 = arith.select %2, %arg2, %c0_i32_2 : i32
    %c0_i32_3 = arith.constant 0 : i32
    %c0_i32_4 = arith.constant 0 : i32
    return %1, %c0_i32_3, %3 : i32, i32, i32
  }
  func.func @transform_1(%arg0: i32, %arg1: i32, %arg2: i32) -> (i32, i32) {
    %c0_i32 = arith.constant 0 : i32
    %c0_i32_0 = arith.constant 0 : i32
    %c0_i32_1 = arith.constant 0 : i32
    return %c0_i32, %c0_i32_0 : i32, i32
  }
  func.func @transform_2(%arg0: i32, %arg1: i32, %arg2: i32) -> (i32, i32, i32) {
    %c0_i32 = arith.constant 0 : i32
    %c0_i32_0 = arith.constant 0 : i32
    %c0_i32_1 = arith.constant 0 : i32
    %c0_i32_2 = arith.constant 0 : i32
    return %c0_i32, %c0_i32_0, %c0_i32_1 : i32, i32, i32
  }
  func.func @transform_3(%arg0: i32, %arg1: i32, %arg2: i32) -> (i32, i32, i32) {
    %c0_i32 = arith.constant 0 : i32
    %c0_i32_0 = arith.constant 0 : i32
    %c0_i32_1 = arith.constant 0 : i32
    %c0_i32_2 = arith.constant 0 : i32
    return %c0_i32, %c0_i32_0, %c0_i32_1 : i32, i32, i32
  }
  func.func @transform_4(%arg0: i32, %arg1: i32, %arg2: i32) -> (i32, i32, i32) {
    %c0_i32 = arith.constant 0 : i32
    %c0_i32_0 = arith.constant 0 : i32
    %c0_i32_1 = arith.constant 0 : i32
    %c0_i32_2 = arith.constant 0 : i32
    return %c0_i32, %c0_i32_0, %c0_i32_1 : i32, i32, i32
  }
  func.func @transform_5(%arg0: i32, %arg1: i32, %arg2: i32) -> (i32, i32, i32) {
    %c2_i32 = arith.constant 2 : i32
    %0 = arith.cmpi eq, %arg0, %c2_i32 : i32
    %c0_i32 = arith.constant 0 : i32
    %1 = arith.select %0, %arg1, %c0_i32 : i32
    %c2_i32_0 = arith.constant 2 : i32
    %2 = arith.cmpi eq, %arg0, %c2_i32_0 : i32
    %c0_i32_1 = arith.constant 0 : i32
    %3 = arith.select %2, %arg2, %c0_i32_1 : i32
    %c0_i32_2 = arith.constant 0 : i32
    %c0_i32_3 = arith.constant 0 : i32
    return %1, %c0_i32_2, %3 : i32, i32, i32
  }
}

</mosaic_0001>

<llo_original>
// kernel: input_embedding_forward.4
$region0: #{input_embedding_forward.4}
  #allocation0 [shape = 'u32[]', space=smem, size = 0x4, offset = 0x4, fixed_abs, tag = 'smem constant byte address 0x4 - core index']
  #allocation1 [shape = 'u32[144,128]{1,0:T(1,128)}', space=vmem, size = 0x12000, scoped, tag = 'internal scratch']
  %s0 = inlined_call_operand.vmem [shape: f32[2,3,32], index: 0, kind: input, shape index: {}, may-alias: {0,1}]
  %s1 = inlined_call_operand.vmem [shape: f32[2,3,32], index: 1, kind: input, shape index: {}, may-alias: {0,1}]
  %s2 = inlined_call_operand.vmem [shape: f32[2,32,32], index: 2, kind: output, shape index: {}]
  %s3 = sld [smem:[#allocation0]]
  $region41: #{input_embedding_forward.4} parent=0
    _
  %s5 = ssub.s32 1, %s3
  %s6 = scalar_select 0, %s5, %s3
  loop: start=0, step=1, limit=4
  $region2: #{input_embedding_forward.4} parent=0 // loop_pre_header
    _
  $region3: #{input_embedding_forward.4} parent=0 // loop_header
    %s8 = sphi 0, %s12
    %p9 = scmp.ge.s32.totalorder %s8, 4
    %s15 = sphi 0, %s34
    %s16 = sphi 0, %s30
    %s17 = sphi 0, %s26
    %s18 = sphi 0, %s15
    %s19 = sphi 0, %s16
    %s20 = sphi 0, %s17
    %s21 = sphi 0, %s18
    %s22 = sphi 0, %s19
    %s23 = sphi 0, %s20
    %s39 = sphi 0, %s41
    %s42 = sphi 0, %s39
    %s43 = sphi 0, %s42
    %s59 = sphi 0, %s43
    %s67 = sphi 0, %s69
    %s70 = sphi 0, %s67
    %s71 = sphi 0, %s70
    %s87 = sphi 0, %s71
    %s97 = sphi 0, %s99
    %s100 = sphi 0, %s97
    %s101 = sphi 0, %s100
    %s117 = sphi 0, %s101
  $region4: #{input_embedding_forward.4} parent=0 // loop_header_branch
    %11 = sbr.rel (%p9) target = $region8
  $region5: #{input_embedding_forward.4} parent=0 // loop_body
    %s13 = ssub.s32 %s8, 1
    %s14 = ssub.s32 %s8, 2
    %s24 = sadd.s32 1, %s17
    %p25 = scmp.ge.s32.totalorder %s24, 1
    %s26 = scalar_select %p25, 0, %s24
    %s27 = sadd.s32 1, %s16
    %s28 = scalar_select %p25, %s27, %s16
    %p29 = scmp.ge.s32.totalorder %s28, 1
    %s30 = scalar_select %p29, 0, %s28
    %s31 = sadd.s32 1, %s15
    %s32 = scalar_select %p29, %s31, %s15
    %p33 = scmp.ge.s32.totalorder %s32, 2
    %s34 = scalar_select %p33, 0, %s32
    %s35 = ssub.s32 %s15, %s34
    %s36 = ssub.s32 %s16, %s30
    %s37 = sor.u32 %s35, %s36
    %p38 = scmp.eq.s32.totalorder %s37, 0
    %s40 = sadd.s32 %s39, 1
    %s41 = scalar_select %p38, %s39, %s40
    %p44 = pneg %p38
    %p45 = scmp.eq.s32.totalorder %s8, 1
    %p46 = por %p44, %p45
    %p47 = scmp.ne.s32.totalorder %s39, %s42
    %p48 = scmp.eq.s32.totalorder %s8, 0
    %p49 = por %p47, %p48
    %p50 = scmp.ne.s32.totalorder %s39, %s42
    %p51 = scmp.eq.s32.totalorder %s13, 1
    %p52 = por %p50, %p51
    %p53 = scmp.ne.s32.totalorder %s42, %s43
    %p54 = scmp.eq.s32.totalorder %s13, 0
    %p55 = por %p53, %p54
    %p56 = scmp.ne.s32.totalorder %s42, %s43
    %p57 = scmp.eq.s32.totalorder %s14, 1
    %p58 = por %p56, %p57
    %p60 = scmp.ne.s32.totalorder %s43, %s59
    %p61 = scmp.eq.s32.totalorder %s14, 0
    %p62 = por %p60, %p61
    %s63 = ssub.s32 %s15, %s34
    %s64 = ssub.s32 %s17, %s26
    %s65 = sor.u32 %s63, %s64
    %p66 = scmp.eq.s32.totalorder %s65, 0
    %s68 = sadd.s32 %s67, 1
    %s69 = scalar_select %p66, %s67, %s68
    %p72 = pneg %p66
    %p73 = scmp.eq.s32.totalorder %s8, 1
    %p74 = por %p72, %p73
    %p75 = scmp.ne.s32.totalorder %s67, %s70
    %p76 = scmp.eq.s32.totalorder %s8, 0
    %p77 = por %p75, %p76
    %p78 = scmp.ne.s32.totalorder %s67, %s70
    %p79 = scmp.eq.s32.totalorder %s13, 1
    %p80 = por %p78, %p79
    %p81 = scmp.ne.s32.totalorder %s70, %s71
    %p82 = scmp.eq.s32.totalorder %s13, 0
    %p83 = por %p81, %p82
    %p84 = scmp.ne.s32.totalorder %s70, %s71
    %p85 = scmp.eq.s32.totalorder %s14, 1
    %p86 = por %p84, %p85
    %p88 = scmp.ne.s32.totalorder %s71, %s87
    %p89 = scmp.eq.s32.totalorder %s14, 0
    %p90 = por %p88, %p89
    %s91 = ssub.s32 %s15, %s34
    %s92 = ssub.s32 %s16, %s30
    %s93 = sor.u32 %s91, %s92
    %s94 = ssub.s32 %s17, %s26
    %s95 = sor.u32 %s93, %s94
    %p96 = scmp.eq.s32.totalorder %s95, 0
    %s98 = sadd.s32 %s97, 1
    %s99 = scalar_select %p96, %s97, %s98
    %p102 = pneg %p96
    %p103 = scmp.eq.s32.totalorder %s8, 1
    %p104 = por %p102, %p103
    %p105 = scmp.ne.s32.totalorder %s97, %s100
    %p106 = scmp.eq.s32.totalorder %s8, 0
    %p107 = por %p105, %p106
    %p108 = scmp.ne.s32.totalorder %s97, %s100
    %p109 = scmp.eq.s32.totalorder %s13, 1
    %p110 = por %p108, %p109
    %p111 = scmp.ne.s32.totalorder %s100, %s101
    %p112 = scmp.eq.s32.totalorder %s13, 0
    %p113 = por %p111, %p112
    %p114 = scmp.ne.s32.totalorder %s100, %s101
    %p115 = scmp.eq.s32.totalorder %s14, 1
    %p116 = por %p114, %p115
    %p118 = scmp.ne.s32.totalorder %s101, %s117
    %p119 = scmp.eq.s32.totalorder %s14, 0
    %p120 = por %p118, %p119
    %p121 = scmp.le.s32.totalorder 1, %s8
    %p122 = scmp.lt.s32.totalorder %s8, 3
    %p123 = pnand %p121, %p122
    %p124 = pneg %p123
    // Predicated region
    $region9: #{input_embedding_forward.4} parent=5 // pred_check
      _
    $region10: #{input_embedding_forward.4} parent=5 // pred_check_branch
      %126 = sbr.rel (%p123) target = $region12
    $region11: #{input_embedding_forward.4} parent=5 // pred_region
      %s127 = ssub.s32 %s8, 1
    $region12: #{input_embedding_forward.4} parent=5 // pred_fallthru
      _
    %p128 = scmp.lt.s32.totalorder %s8, 2
    // Predicated region
    $region13: #{input_embedding_forward.4} parent=5 // pred_check
      %p129 = pneg %p128
    $region14: #{input_embedding_forward.4} parent=5 // pred_check_branch
      %131 = sbr.rel (%p129) target = $region16
    $region15: #{input_embedding_forward.4} parent=5 // pred_region
      // Predicated region
      $region17: #{input_embedding_forward.4} parent=15 // pred_check
        %p132 = pneg %p49
      $region18: #{input_embedding_forward.4} parent=15 // pred_check_branch
        %134 = sbr.rel (%p132) target = $region20
      $region19: #{input_embedding_forward.4} parent=15 // pred_region
        %p135 = scmp.lt.s32.totalorder %s15, 1
        %s136 = scalar_select %p135, %s15, 1
        %p137 = scmp.lt.s32.totalorder %s16, 0
        %s138 = scalar_select %p137, %s16, 0
        %s139 = sadd.s32 %s138, %s136
        %s140 = smul.addr %s139, 4
        %s141 = scalar_lea.vmem %s0, %s140
      $region20: #{input_embedding_forward.4} parent=15 // pred_fallthru
        _
      // Predicated region
      $region21: #{input_embedding_forward.4} parent=15 // pred_check
        %p142 = pneg %p77
      $region22: #{input_embedding_forward.4} parent=15 // pred_check_branch
        %144 = sbr.rel (%p142) target = $region24
      $region23: #{input_embedding_forward.4} parent=15 // pred_region
        %p145 = scmp.lt.s32.totalorder %s15, 1
        %s146 = scalar_select %p145, %s15, 1
        %p147 = scmp.lt.s32.totalorder %s17, 0
        %s148 = scalar_select %p147, %s17, 0
        %s149 = sadd.s32 %s148, %s146
        %s150 = smul.addr %s149, 4
        %s151 = scalar_lea.vmem %s1, %s150
      $region24: #{input_embedding_forward.4} parent=15 // pred_fallthru
        _
    $region16: #{input_embedding_forward.4} parent=5 // pred_fallthru
      _
    %p152 = scmp.le.s32.totalorder 1, %s8
    %p153 = scmp.lt.s32.totalorder %s8, 3
    %p154 = pnand %p152, %p153
    %p155 = pneg %p154
    // Predicated region
    $region25: #{input_embedding_forward.4} parent=5 // pred_check
      _
    $region26: #{input_embedding_forward.4} parent=5 // pred_check_branch
      %157 = sbr.rel (%p154) target = $region28
    $region27: #{input_embedding_forward.4} parent=5 // pred_region
      %s158 = ssub.s32 %s8, 1
      %p159 = scmp.lt.s32.totalorder %s18, 1
      %s160 = scalar_select %p159, %s18, 1
      %p161 = scmp.lt.s32.totalorder %s19, 0
      %s162 = scalar_select %p161, %s19, 0
      %s163 = sadd.s32 %s162, %s160
      %s164 = smul.addr %s163, 4
      %s165 = scalar_lea.vmem %s0, %s164
      %p166 = pneg %p55
      %p167 = pneg %p52
      %p168 = scmp.lt.s32.totalorder %s18, 1
      %s169 = scalar_select %p168, %s18, 1
      %p170 = scmp.lt.s32.totalorder %s20, 0
      %s171 = scalar_select %p170, %s20, 0
      %s172 = sadd.s32 %s171, %s169
      %s173 = smul.addr %s172, 4
      %s174 = scalar_lea.vmem %s1, %s173
      %p175 = pneg %p83
      %p176 = pneg %p80
      %p177 = pneg %p113
      %p178 = pneg %p110
      %s179 = smul.u32 4, %s19
      %p180 = scmp.lt.s32.totalorder %s18, 1
      %s181 = scalar_select %p180, %s18, 1
      %p182 = scmp.lt.s32.totalorder %s179, 3
      %s183 = scalar_select %p182, %s179, 3
      %p184 = scmp.lt.s32.totalorder %s20, 0
      %s185 = scalar_select %p184, %s20, 0
      %s186 = sadd.s32 %s185, %s183
      %s187 = smul.addr %s181, 4
      %s188 = sadd.s32 %s186, %s187
      %s189 = smul.addr %s188, 8
      %s190 = scalar_lea.vmem %s2, %s189
      %p191 = scmp.lt.s32.totalorder %s18, 1
      %s192 = scalar_select %p191, %s18, 1
      %p193 = scmp.lt.s32.totalorder %s19, 0
      %s194 = scalar_select %p193, %s19, 0
      %s195 = sadd.s32 %s194, %s192
      %s196 = smul.addr %s195, 4
      %s197 = scalar_lea.vmem %s0, %s196
      %p198 = scmp.lt.s32.totalorder %s18, 1
      %s199 = scalar_select %p198, %s18, 1
      %p200 = scmp.lt.s32.totalorder %s20, 0
      %s201 = scalar_select %p200, %s20, 0
      %s202 = sadd.s32 %s201, %s199
      %s203 = smul.addr %s202, 4
      %s204 = scalar_lea.vmem %s1, %s203
      %s205 = smul.u32 4, %s19
      %p206 = scmp.lt.s32.totalorder %s18, 1
      %s207 = scalar_select %p206, %s18, 1
      %p208 = scmp.lt.s32.totalorder %s205, 3
      %s209 = scalar_select %p208, %s205, 3
      %p210 = scmp.lt.s32.totalorder %s20, 0
      %s211 = scalar_select %p210, %s20, 0
      %s212 = sadd.s32 %s211, %s209
      %s213 = smul.addr %s207, 4
      %s214 = sadd.s32 %s212, %s213
      %s215 = smul.addr %s214, 8
      %s216 = scalar_lea.vmem %s2, %s215
      %s217 = smul.u32 4, %s19
      %v218 = vld [vmem:[%s197] sm:$0x7]
      %v219 = vld [vmem:[%s204] sm:$0x7]
      %220 = vxpose.xlu0.b32.start [1/16] %v218, 128
      %221 = vxpose.xlu0.b32.cont [2/16] 0.0, 128
      %222 = vxpose.xlu0.b32.cont [3/16] 0.0, 128
      %223 = vxpose.xlu0.b32.cont [4/16] 0.0, 128
      %224 = vxpose.xlu0.b32.cont [5/16] 0.0, 128
      %225 = vxpose.xlu0.b32.cont [6/16] 0.0, 128
      %226 = vxpose.xlu0.b32.cont [7/16] 0.0, 128
      %227 = vxpose.xlu0.b32.cont [8/16] 0.0, 128
      %228 = vxpose.xlu0.b32.cont [9/16] 0.0, 128
      %229 = vxpose.xlu0.b32.cont [10/16] 0.0, 128
      %230 = vxpose.xlu0.b32.cont [11/16] 0.0, 128
      %231 = vxpose.xlu0.b32.cont [12/16] 0.0, 128
      %232 = vxpose.xlu0.b32.cont [13/16] 0.0, 128
      %233 = vxpose.xlu0.b32.cont [14/16] 0.0, 128
      %234 = vxpose.xlu0.b32.cont [15/16] 0.0, 128
      %235 = vxpose.xlu0.b32.end [16/16] 0.0, 128
      %v236 = vpop.trf.xlu0
      %v237 = vpop.trf.xlu0
      %v238 = vpop.trf.xlu0
      %v239 = vpop.trf.xlu0
      %v240 = vpop.trf.xlu0
      %v241 = vpop.trf.xlu0
      %v242 = vpop.trf.xlu0
      %v243 = vpop.trf.xlu0
      %v244 = vpop.trf.xlu0
      %v245 = vpop.trf.xlu0
      %v246 = vpop.trf.xlu0
      %v247 = vpop.trf.xlu0
      %v248 = vpop.trf.xlu0
      %v249 = vpop.trf.xlu0
      %v250 = vpop.trf.xlu0
      %v251 = vpop.trf.xlu0
      %vm252 = vcmask 23552
      %v254 = vsel %vm252, %v236, 0
      %v257 = vsel %vm252, %v237, 0
      %v260 = vsel %vm252, %v238, 0
      %v263 = vsel %vm252, %v239, 0
      %vm265 = vcmask 1042432
      %v267 = vsel %vm265, %v219, 0
      %269 = vmatprep.subr.mxu0 0.0
      %270 = vmatpush1.msra.mxu0 %v267
      %271 = vmatprep.subr.mxu0 0.0
      %272 = vmatpush1.msra.mxu0 0.0
      %273 = vmatprep.subr.mxu0 0.0
      %274 = vmatpush1.msra.mxu0 0.0
      %275 = vmatprep.subr.mxu0 0.0
      %276 = vmatpush1.msra.mxu0 0.0
      %277 = vmatprep.subr.mxu0 0.0
      %278 = vmatpush1.msra.mxu0 0.0
      %279 = vmatprep.subr.mxu0 0.0
      %280 = vmatpush1.msra.mxu0 0.0
      %281 = vmatprep.subr.mxu0 0.0
      %282 = vmatpush1.msra.mxu0 0.0
      %283 = vmatprep.subr.mxu0 0.0
      %284 = vmatpush1.msra.mxu0 0.0
      %285 = vmatprep.subr.mxu0 0.0
      %286 = vmatpush1.msra.mxu0 0.0
      %287 = vmatprep.subr.mxu0 0.0
      %288 = vmatpush1.msra.mxu0 0.0
      %289 = vmatprep.subr.mxu0 0.0
      %290 = vmatpush1.msra.mxu0 0.0
      %291 = vmatprep.subr.mxu0 0.0
      %292 = vmatpush1.msra.mxu0 0.0
      %293 = vmatprep.subr.mxu0 0.0
      %294 = vmatpush1.msra.mxu0 0.0
      %295 = vmatprep.subr.mxu0 0.0
      %296 = vmatpush1.msra.mxu0 0.0
      %297 = vmatprep.subr.mxu0 0.0
      %298 = vmatpush1.msra.mxu0 0.0
      %299 = vmatprep.subr.mxu0 0.0
      %300 = vmatpush1.msra.mxu0 0.0
      %301 = vmatprep.subr.mxu0 0.0
      %302 = vmatpush1.msra.mxu0 0.0
      %303 = vmatprep.subr.mxu0 0.0
      %304 = vmatpush1.msra.mxu0 0.0
      %305 = vmatprep.subr.mxu0 0.0
      %306 = vmatpush1.msra.mxu0 0.0
      %307 = vmatprep.subr.mxu0 0.0
      %308 = vmatpush1.msra.mxu0 0.0
      %309 = vmatprep.subr.mxu0 0.0
      %310 = vmatpush1.msra.mxu0 0.0
      %311 = vmatprep.subr.mxu0 0.0
      %312 = vmatpush1.msra.mxu0 0.0
      %313 = vmatprep.subr.mxu0 0.0
      %314 = vmatpush1.msra.mxu0 0.0
      %315 = vmatprep.subr.mxu0 0.0
      %316 = vmatpush1.msra.mxu0 0.0
      %317 = vmatprep.subr.mxu0 0.0
      %318 = vmatpush1.msra.mxu0 0.0
      %319 = vmatprep.subr.mxu0 0.0
      %320 = vmatpush1.msra.mxu0 0.0
      %321 = vmatprep.subr.mxu0 0.0
      %322 = vmatpush1.msra.mxu0 0.0
      %323 = vmatprep.subr.mxu0 0.0
      %324 = vmatpush1.msra.mxu0 0.0
      %325 = vmatprep.subr.mxu0 0.0
      %326 = vmatpush1.msra.mxu0 0.0
      %327 = vmatprep.subr.mxu0 0.0
      %328 = vmatpush1.msra.mxu0 0.0
      %329 = vmatprep.subr.mxu0 0.0
      %330 = vmatpush1.msra.mxu0 0.0
      %331 = vmatprep.subr.mxu0 0.0
      %332 = vmatpush1.msra.mxu0 0.0
      %333 = vmatprep.mubr.f32.mxu0 0.0
      %334 = vmatmul.mubr.f32.gmra.mrb[0].mxu0 %v254
      %v335 = vpop.f32.mrb[0].mxu0
      %v336 = vadd.f32 0.0, %v335
      %v337 = vpop.f32.mrb[0].mxu0
      %338 = vmatprep.mubr.f32.mxu0 0.0
      %339 = vmatmul.mubr.f32.gmra.mrb[0].mxu0 %v257
      %v340 = vpop.f32.mrb[0].mxu0
      %v341 = vadd.f32 0.0, %v340
      %v342 = vpop.f32.mrb[0].mxu0
      %343 = vmatprep.mubr.f32.mxu0 0.0
      %344 = vmatmul.mubr.f32.gmra.mrb[0].mxu0 %v260
      %v345 = vpop.f32.mrb[0].mxu0
      %v346 = vadd.f32 0.0, %v345
      %v347 = vpop.f32.mrb[0].mxu0
      %348 = vmatprep.mubr.f32.mxu0 0.0
      %349 = vmatmul.mubr.f32.gmra.mrb[0].mxu0 %v263
      %v350 = vpop.f32.mrb[0].mxu0
      %v351 = vadd.f32 0.0, %v350
      %v352 = vpop.f32.mrb[0].mxu0
      %353 = vdwg.mxu0
      %v354 = vmul.f32 %v218, %v218
      %vm355 = vcmask 256000
      %v356 = vsel %vm355, %v354, 0.0
      %v357 = vrot.slane %v356, 4
      %v358 = vadd.f32 %v356, %v357
      %v359 = vrot.slane %v358, 2
      %v360 = vadd.f32 %v358, %v359
      %v361 = vrot.slane %v360, 1
      %v362 = vadd.f32 %v360, %v361
      %v363 = vmul.f32 %v219, %v219
      %v364 = vsel %vm355, %v363, 0.0
      %v365 = vrot.slane %v364, 4
      %v366 = vadd.f32 %v364, %v365
      %v367 = vrot.slane %v366, 2
      %v368 = vadd.f32 %v366, %v367
      %v369 = vrot.slane %v368, 1
      %v370 = vadd.f32 %v368, %v369
      %v371 = vmul.f32 %v336, 2.0
      %v372 = vmul.f32 %v341, 2.0
      %v373 = vmul.f32 %v346, 2.0
      %v374 = vmul.f32 %v351, 2.0
      %375 = vxpose.xlu0.b32.start [1/16] %v362, 128
      %376 = vxpose.xlu0.b32.cont [2/16] 0.0, 128
      %377 = vxpose.xlu0.b32.cont [3/16] 0.0, 128
      %378 = vxpose.xlu0.b32.cont [4/16] 0.0, 128
      %379 = vxpose.xlu0.b32.cont [5/16] 0.0, 128
      %380 = vxpose.xlu0.b32.cont [6/16] 0.0, 128
      %381 = vxpose.xlu0.b32.cont [7/16] 0.0, 128
      %382 = vxpose.xlu0.b32.cont [8/16] 0.0, 128
      %383 = vxpose.xlu0.b32.cont [9/16] 0.0, 128
      %384 = vxpose.xlu0.b32.cont [10/16] 0.0, 128
      %385 = vxpose.xlu0.b32.cont [11/16] 0.0, 128
      %386 = vxpose.xlu0.b32.cont [12/16] 0.0, 128
      %387 = vxpose.xlu0.b32.cont [13/16] 0.0, 128
      %388 = vxpose.xlu0.b32.cont [14/16] 0.0, 128
      %389 = vxpose.xlu0.b32.cont [15/16] 0.0, 128
      %390 = vxpose.xlu0.b32.end [16/16] 0.0, 128
      %v391 = vpop.trf.xlu0
      %v392 = vpop.trf.xlu0
      %v393 = vpop.trf.xlu0
      %v394 = vpop.trf.xlu0
      %v395 = vpop.trf.xlu0
      %v396 = vpop.trf.xlu0
      %v397 = vpop.trf.xlu0
      %v398 = vpop.trf.xlu0
      %v399 = vpop.trf.xlu0
      %v400 = vpop.trf.xlu0
      %v401 = vpop.trf.xlu0
      %v402 = vpop.trf.xlu0
      %v403 = vpop.trf.xlu0
      %v404 = vpop.trf.xlu0
      %v405 = vpop.trf.xlu0
      %v406 = vpop.trf.xlu0
      %408 = vset.pattern.permute.xlu0 0
      %409 = vperm.xlu0 %408, %v391
      %v410 = vpop.permute.xlu0 %409
      %413 = vset.pattern.permute.xlu0 0
      %414 = vperm.xlu0 %413, %v392
      %v415 = vpop.permute.xlu0 %414
      %418 = vset.pattern.permute.xlu0 0
      %419 = vperm.xlu0 %418, %v393
      %v420 = vpop.permute.xlu0 %419
      %423 = vset.pattern.permute.xlu0 0
      %424 = vperm.xlu0 %423, %v394
      %v425 = vpop.permute.xlu0 %424
      %v427 = vsub.f32 %v371, %v410
      %v428 = vsub.f32 %v372, %v415
      %v429 = vsub.f32 %v373, %v420
      %v430 = vsub.f32 %v374, %v425
      %v431 = vsub.f32 %v427, %v370
      %v432 = vsub.f32 %v428, %v370
      %v433 = vsub.f32 %v429, %v370
      %v434 = vsub.f32 %v430, %v370
      %vm435 = vcmask 261120
      %436 = vst.msk [vmem:[%s216] sm:$0xff] %vm435, %v431
      %437 = vst.msk [vmem:[%s216 + $0x8] sm:$0xff] %vm435, %v432
      %438 = vst.msk [vmem:[%s216 + $0x10] sm:$0xff] %vm435, %v433
      %439 = vst.msk [vmem:[%s216 + $0x18] sm:$0xff] %vm435, %v434
      %s440 = smul.u32 4, %s19
      %p441 = scmp.lt.s32.totalorder %s18, 1
      %s442 = scalar_select %p441, %s18, 1
      %p443 = scmp.lt.s32.totalorder %s440, 3
      %s444 = scalar_select %p443, %s440, 3
      %p445 = scmp.lt.s32.totalorder %s20, 0
      %s446 = scalar_select %p445, %s20, 0
      %s447 = sadd.s32 %s446, %s444
      %s448 = smul.addr %s442, 4
      %s449 = sadd.s32 %s447, %s448
      %s450 = smul.addr %s449, 8
      %s451 = scalar_lea.vmem %s2, %s450
      // Predicated region
      $region29: #{input_embedding_forward.4} parent=27 // pred_check
        %p452 = pneg %p110
      $region30: #{input_embedding_forward.4} parent=27 // pred_check_branch
        %454 = sbr.rel (%p452) target = $region32
      $region31: #{input_embedding_forward.4} parent=27 // pred_region
        %s455 = smul.u32 4, %s19
      $region32: #{input_embedding_forward.4} parent=27 // pred_fallthru
        _
    $region28: #{input_embedding_forward.4} parent=5 // pred_fallthru
      _
    %p456 = scmp.le.s32.totalorder 2, %s8
    // Predicated region
    $region33: #{input_embedding_forward.4} parent=5 // pred_check
      %p457 = pneg %p456
    $region34: #{input_embedding_forward.4} parent=5 // pred_check_branch
      %459 = sbr.rel (%p457) target = $region36
    $region35: #{input_embedding_forward.4} parent=5 // pred_region
      %s460 = ssub.s32 %s8, 2
      // Predicated region
      $region37: #{input_embedding_forward.4} parent=35 // pred_check
        %p461 = pneg %p116
      $region38: #{input_embedding_forward.4} parent=35 // pred_check_branch
        %463 = sbr.rel (%p461) target = $region40
      $region39: #{input_embedding_forward.4} parent=35 // pred_region
        %s464 = smul.u32 4, %s22
        %p465 = scmp.lt.s32.totalorder %s21, 1
        %s466 = scalar_select %p465, %s21, 1
        %p467 = scmp.lt.s32.totalorder %s464, 3
        %s468 = scalar_select %p467, %s464, 3
        %p469 = scmp.lt.s32.totalorder %s23, 0
        %s470 = scalar_select %p469, %s23, 0
        %s471 = sadd.s32 %s470, %s468
        %s472 = smul.addr %s466, 4
        %s473 = sadd.s32 %s471, %s472
        %s474 = smul.addr %s473, 8
        %s475 = scalar_lea.vmem %s2, %s474
      $region40: #{input_embedding_forward.4} parent=35 // pred_fallthru
        _
    $region36: #{input_embedding_forward.4} parent=5 // pred_fallthru
      _
  $region6: #{input_embedding_forward.4} parent=0 // loop_footer
    %s12 = sadd.s32 1, %s8
  $region7: #{input_embedding_forward.4} parent=0 // loop_footer_branch
    %7 = sbr.rel target = $region3
  $region8: #{input_embedding_forward.4} parent=0 // loop_exit
    _

// kernel: input_embedding_forward.3
$region0: #{input_embedding_forward.3}
  #allocation0 [shape = 'u32[]', space=smem, size = 0x4, offset = 0x4, fixed_abs, tag = 'smem constant byte address 0x4 - core index']
  #allocation1 [shape = 'u32[144,128]{1,0:T(1,128)}', space=vmem, size = 0x12000, scoped, tag = 'internal scratch']
  #allocation2 [shape = 'f32[2,16,32]{2,1,0:T(8,128)}', space=vmem, size = 0x4000, scoped, tag = 'scratch operand']
  #allocation3 [shape = 'f32[2,16,1]{2,1,0:T(8,128)}', space=vmem, size = 0x4000, scoped, tag = 'scratch operand']
  #allocation4 [shape = 'f32[2,16,1]{2,1,0:T(8,128)}', space=vmem, size = 0x4000, scoped, tag = 'scratch operand']
  %s0 = inlined_call_operand.vmem [shape: f32[2,3,32], index: 0, kind: input, shape index: {}]
  %s1 = inlined_call_operand.vmem [shape: f32[16,3], index: 1, kind: input, shape index: {}]
  %s2 = inlined_call_operand.vmem [shape: f32[1,16,16], index: 2, kind: input, shape index: {}]
  %s3 = inlined_call_operand.vmem [shape: f32[2,16,1], index: 3, kind: input, shape index: {}]
  %s4 = inlined_call_operand.vmem [shape: f32[2,16,1], index: 4, kind: input, shape index: {}]
  %s5 = inlined_call_operand.vmem [shape: f32[2,16,32], index: 5, kind: output, shape index: {}]
  %s6 = sld [smem:[#allocation0]]
  $region73: #{input_embedding_forward.3} parent=0
    _
  %s8 = ssub.s32 1, %s6
  %s9 = scalar_select 0, %s8, %s6
  loop: start=0, step=1, limit=8
  $region2: #{input_embedding_forward.3} parent=0 // loop_pre_header
    _
  $region3: #{input_embedding_forward.3} parent=0 // loop_header
    %s11 = sphi 0, %s15
    %p12 = scmp.ge.s32.totalorder %s11, 8
    %s18 = sphi 0, %s37
    %s19 = sphi 0, %s33
    %s20 = sphi 0, %s29
    %s21 = sphi 0, %s18
    %s22 = sphi 0, %s19
    %s23 = sphi 0, %s20
    %s24 = sphi 0, %s21
    %s25 = sphi 0, %s22
    %s26 = sphi 0, %s23
    %s48 = sphi 0, %s50
    %s51 = sphi 0, %s48
    %s52 = sphi 0, %s51
    %s68 = sphi 0, %s52
    %s72 = sphi 0, %s72
    %s74 = sphi 0, %s72
    %s75 = sphi 0, %s74
    %s89 = sphi 0, %s75
    %s93 = sphi 0, %s93
    %s95 = sphi 0, %s93
    %s96 = sphi 0, %s95
    %s110 = sphi 0, %s96
    %s114 = sphi 0, %s114
    %s116 = sphi 0, %s114
    %s117 = sphi 0, %s116
    %s131 = sphi 0, %s117
    %s135 = sphi 0, %s135
    %s137 = sphi 0, %s135
    %s138 = sphi 0, %s137
    %s152 = sphi 0, %s138
    %s166 = sphi 0, %s168
    %s169 = sphi 0, %s166
    %s170 = sphi 0, %s169
    %s186 = sphi 0, %s170
  $region4: #{input_embedding_forward.3} parent=0 // loop_header_branch
    %14 = sbr.rel (%p12) target = $region8
  $region5: #{input_embedding_forward.3} parent=0 // loop_body
    %s16 = ssub.s32 %s11, 1
    %s17 = ssub.s32 %s11, 2
    %s27 = sadd.s32 1, %s20
    %p28 = scmp.ge.s32.totalorder %s27, 1
    %s29 = scalar_select %p28, 0, %s27
    %s30 = sadd.s32 1, %s19
    %s31 = scalar_select %p28, %s30, %s19
    %p32 = scmp.ge.s32.totalorder %s31, 2
    %s33 = scalar_select %p32, 0, %s31
    %s34 = sadd.s32 1, %s18
    %s35 = scalar_select %p32, %s34, %s18
    %p36 = scmp.ge.s32.totalorder %s35, 3
    %s37 = scalar_select %p36, 0, %s35
    %p38 = scmp.eq.s32.totalorder %s18, 0
    %s39 = scalar_select %p38, %s19, 0
    %s40 = scalar_select %p38, %s20, 0
    %p41 = scmp.eq.s32.totalorder %s37, 0
    %s42 = scalar_select %p41, %s33, 0
    %s43 = scalar_select %p41, %s29, 0
    %s44 = ssub.s32 %s39, %s42
    %s45 = ssub.s32 %s40, %s43
    %s46 = sor.u32 %s44, %s45
    %p47 = scmp.eq.s32.totalorder %s46, 0
    %s49 = sadd.s32 %s48, 1
    %s50 = scalar_select %p47, %s48, %s49
    %p53 = pneg %p47
    %p54 = scmp.eq.s32.totalorder %s11, 5
    %p55 = por %p53, %p54
    %p56 = scmp.ne.s32.totalorder %s48, %s51
    %p57 = scmp.eq.s32.totalorder %s11, 0
    %p58 = por %p56, %p57
    %p59 = scmp.ne.s32.totalorder %s48, %s51
    %p60 = scmp.eq.s32.totalorder %s16, 5
    %p61 = por %p59, %p60
    %p62 = scmp.ne.s32.totalorder %s51, %s52
    %p63 = scmp.eq.s32.totalorder %s16, 0
    %p64 = por %p62, %p63
    %p65 = scmp.ne.s32.totalorder %s51, %s52
    %p66 = scmp.eq.s32.totalorder %s17, 5
    %p67 = por %p65, %p66
    %p69 = scmp.ne.s32.totalorder %s52, %s68
    %p70 = scmp.eq.s32.totalorder %s17, 0
    %p71 = por %p69, %p70
    %s73 = sadd.s32 %s72, 1
    %p76 = scmp.eq.s32.totalorder %s11, 5
    %p77 = scmp.ne.s32.totalorder %s72, %s74
    %p78 = scmp.eq.s32.totalorder %s11, 0
    %p79 = por %p77, %p78
    %p80 = scmp.ne.s32.totalorder %s72, %s74
    %p81 = scmp.eq.s32.totalorder %s16, 5
    %p82 = por %p80, %p81
    %p83 = scmp.ne.s32.totalorder %s74, %s75
    %p84 = scmp.eq.s32.totalorder %s16, 0
    %p85 = por %p83, %p84
    %p86 = scmp.ne.s32.totalorder %s74, %s75
    %p87 = scmp.eq.s32.totalorder %s17, 5
    %p88 = por %p86, %p87
    %p90 = scmp.ne.s32.totalorder %s75, %s89
    %p91 = scmp.eq.s32.totalorder %s17, 0
    %p92 = por %p90, %p91
    %s94 = sadd.s32 %s93, 1
    %p97 = scmp.eq.s32.totalorder %s11, 5
    %p98 = scmp.ne.s32.totalorder %s93, %s95
    %p99 = scmp.eq.s32.totalorder %s11, 0
    %p100 = por %p98, %p99
    %p101 = scmp.ne.s32.totalorder %s93, %s95
    %p102 = scmp.eq.s32.totalorder %s16, 5
    %p103 = por %p101, %p102
    %p104 = scmp.ne.s32.totalorder %s95, %s96
    %p105 = scmp.eq.s32.totalorder %s16, 0
    %p106 = por %p104, %p105
    %p107 = scmp.ne.s32.totalorder %s95, %s96
    %p108 = scmp.eq.s32.totalorder %s17, 5
    %p109 = por %p107, %p108
    %p111 = scmp.ne.s32.totalorder %s96, %s110
    %p112 = scmp.eq.s32.totalorder %s17, 0
    %p113 = por %p111, %p112
    %s115 = sadd.s32 %s114, 1
    %p118 = scmp.eq.s32.totalorder %s11, 5
    %p119 = scmp.ne.s32.totalorder %s114, %s116
    %p120 = scmp.eq.s32.totalorder %s11, 0
    %p121 = por %p119, %p120
    %p122 = scmp.ne.s32.totalorder %s114, %s116
    %p123 = scmp.eq.s32.totalorder %s16, 5
    %p124 = por %p122, %p123
    %p125 = scmp.ne.s32.totalorder %s116, %s117
    %p126 = scmp.eq.s32.totalorder %s16, 0
    %p127 = por %p125, %p126
    %p128 = scmp.ne.s32.totalorder %s116, %s117
    %p129 = scmp.eq.s32.totalorder %s17, 5
    %p130 = por %p128, %p129
    %p132 = scmp.ne.s32.totalorder %s117, %s131
    %p133 = scmp.eq.s32.totalorder %s17, 0
    %p134 = por %p132, %p133
    %s136 = sadd.s32 %s135, 1
    %p139 = scmp.eq.s32.totalorder %s11, 5
    %p140 = scmp.ne.s32.totalorder %s135, %s137
    %p141 = scmp.eq.s32.totalorder %s11, 0
    %p142 = por %p140, %p141
    %p143 = scmp.ne.s32.totalorder %s135, %s137
    %p144 = scmp.eq.s32.totalorder %s16, 5
    %p145 = por %p143, %p144
    %p146 = scmp.ne.s32.totalorder %s137, %s138
    %p147 = scmp.eq.s32.totalorder %s16, 0
    %p148 = por %p146, %p147
    %p149 = scmp.ne.s32.totalorder %s137, %s138
    %p150 = scmp.eq.s32.totalorder %s17, 5
    %p151 = por %p149, %p150
    %p153 = scmp.ne.s32.totalorder %s138, %s152
    %p154 = scmp.eq.s32.totalorder %s17, 0
    %p155 = por %p153, %p154
    %p156 = scmp.eq.s32.totalorder %s18, 2
    %s157 = scalar_select %p156, %s19, 0
    %s158 = scalar_select %p156, %s20, 0
    %p159 = scmp.eq.s32.totalorder %s37, 2
    %s160 = scalar_select %p159, %s33, 0
    %s161 = scalar_select %p159, %s29, 0
    %s162 = ssub.s32 %s157, %s160
    %s163 = ssub.s32 %s158, %s161
    %s164 = sor.u32 %s162, %s163
    %p165 = scmp.eq.s32.totalorder %s164, 0
    %s167 = sadd.s32 %s166, 1
    %s168 = scalar_select %p165, %s166, %s167
    %p171 = pneg %p165
    %p172 = scmp.eq.s32.totalorder %s11, 5
    %p173 = por %p171, %p172
    %p174 = scmp.ne.s32.totalorder %s166, %s169
    %p175 = scmp.eq.s32.totalorder %s11, 0
    %p176 = por %p174, %p175
    %p177 = scmp.ne.s32.totalorder %s166, %s169
    %p178 = scmp.eq.s32.totalorder %s16, 5
    %p179 = por %p177, %p178
    %p180 = scmp.ne.s32.totalorder %s169, %s170
    %p181 = scmp.eq.s32.totalorder %s16, 0
    %p182 = por %p180, %p181
    %p183 = scmp.ne.s32.totalorder %s169, %s170
    %p184 = scmp.eq.s32.totalorder %s17, 5
    %p185 = por %p183, %p184
    %p187 = scmp.ne.s32.totalorder %s170, %s186
    %p188 = scmp.eq.s32.totalorder %s17, 0
    %p189 = por %p187, %p188
    %p190 = scmp.le.s32.totalorder 1, %s11
    %p191 = scmp.lt.s32.totalorder %s11, 7
    %p192 = pnand %p190, %p191
    %p193 = pneg %p192
    // Predicated region
    $region9: #{input_embedding_forward.3} parent=5 // pred_check
      _
    $region10: #{input_embedding_forward.3} parent=5 // pred_check_branch
      %195 = sbr.rel (%p192) target = $region12
    $region11: #{input_embedding_forward.3} parent=5 // pred_region
      %s196 = ssub.s32 %s11, 1
      // Predicated region
      $region13: #{input_embedding_forward.3} parent=11 // pred_check
        %p197 = pneg %p85
      $region14: #{input_embedding_forward.3} parent=11 // pred_check_branch
        %199 = sbr.rel (%p197) target = $region16
      $region15: #{input_embedding_forward.3} parent=11 // pred_region
        _
      $region16: #{input_embedding_forward.3} parent=11 // pred_fallthru
        _
      // Predicated region
      $region17: #{input_embedding_forward.3} parent=11 // pred_check
        %p200 = pneg %p106
      $region18: #{input_embedding_forward.3} parent=11 // pred_check_branch
        %202 = sbr.rel (%p200) target = $region20
      $region19: #{input_embedding_forward.3} parent=11 // pred_region
        _
      $region20: #{input_embedding_forward.3} parent=11 // pred_fallthru
        _
      // Predicated region
      $region21: #{input_embedding_forward.3} parent=11 // pred_check
        %p203 = pneg %p127
      $region22: #{input_embedding_forward.3} parent=11 // pred_check_branch
        %205 = sbr.rel (%p203) target = $region24
      $region23: #{input_embedding_forward.3} parent=11 // pred_region
        _
      $region24: #{input_embedding_forward.3} parent=11 // pred_fallthru
        _
      // Predicated region
      $region25: #{input_embedding_forward.3} parent=11 // pred_check
        %p206 = pneg %p148
      $region26: #{input_embedding_forward.3} parent=11 // pred_check_branch
        %208 = sbr.rel (%p206) target = $region28
      $region27: #{input_embedding_forward.3} parent=11 // pred_region
        _
      $region28: #{input_embedding_forward.3} parent=11 // pred_fallthru
        _
    $region12: #{input_embedding_forward.3} parent=5 // pred_fallthru
      _
    %p209 = scmp.lt.s32.totalorder %s11, 6
    // Predicated region
    $region29: #{input_embedding_forward.3} parent=5 // pred_check
      %p210 = pneg %p209
    $region30: #{input_embedding_forward.3} parent=5 // pred_check_branch
      %212 = sbr.rel (%p210) target = $region32
    $region31: #{input_embedding_forward.3} parent=5 // pred_region
      // Predicated region
      $region33: #{input_embedding_forward.3} parent=31 // pred_check
        %p213 = pneg %p58
      $region34: #{input_embedding_forward.3} parent=31 // pred_check_branch
        %215 = sbr.rel (%p213) target = $region36
      $region35: #{input_embedding_forward.3} parent=31 // pred_region
        %p216 = scmp.eq.s32.totalorder %s18, 0
        %s217 = scalar_select %p216, %s19, 0
        %s218 = scalar_select %p216, %s20, 0
        %p219 = scmp.lt.s32.totalorder %s217, 1
        %s220 = scalar_select %p219, %s217, 1
        %p221 = scmp.lt.s32.totalorder %s218, 0
        %s222 = scalar_select %p221, %s218, 0
        %s223 = sadd.s32 %s222, %s220
        %s224 = smul.addr %s223, 4
        %s225 = scalar_lea.vmem %s0, %s224
        %p226 = scmp.eq.s32.totalorder %s18, 0
        %s227 = scalar_select %p226, %s19, 0
        %s228 = scalar_select %p226, %s20, 0
      $region36: #{input_embedding_forward.3} parent=31 // pred_fallthru
        _
    $region32: #{input_embedding_forward.3} parent=5 // pred_fallthru
      _
    %p229 = scmp.le.s32.totalorder 1, %s11
    %p230 = scmp.lt.s32.totalorder %s11, 7
    %p231 = pnand %p229, %p230
    %p232 = pneg %p231
    // Predicated region
    $region37: #{input_embedding_forward.3} parent=5 // pred_check
      _
    $region38: #{input_embedding_forward.3} parent=5 // pred_check_branch
      %234 = sbr.rel (%p231) target = $region40
    $region39: #{input_embedding_forward.3} parent=5 // pred_region
      %s235 = ssub.s32 %s11, 1
      %p236 = scmp.eq.s32.totalorder %s21, 0
      %s237 = scalar_select %p236, %s22, 0
      %s238 = scalar_select %p236, %s23, 0
      %p239 = scmp.lt.s32.totalorder %s237, 1
      %s240 = scalar_select %p239, %s237, 1
      %p241 = scmp.lt.s32.totalorder %s238, 0
      %s242 = scalar_select %p241, %s238, 0
      %s243 = sadd.s32 %s242, %s240
      %s244 = smul.addr %s243, 4
      %s245 = scalar_lea.vmem %s0, %s244
      %p246 = pneg %p64
      %p247 = pneg %p61
      %p248 = pneg %p85
      %p249 = pneg %p82
      %p250 = pneg %p106
      %p251 = pneg %p103
      %p252 = pneg %p127
      %p253 = pneg %p124
      %p254 = pneg %p148
      %p255 = pneg %p145
      %p256 = pneg %p182
      %p257 = pneg %p179
      %p258 = scmp.eq.s32.totalorder %s21, 2
      %s259 = scalar_select %p258, %s22, 0
      %s260 = scalar_select %p258, %s23, 0
      %p261 = scmp.lt.s32.totalorder %s259, 1
      %s262 = scalar_select %p261, %s259, 1
      %p263 = scmp.lt.s32.totalorder %s260, 0
      %s264 = scalar_select %p263, %s260, 0
      %s265 = smul.addr %s262, 2
      %s266 = sadd.s32 %s264, %s265
      %s267 = smul.addr %s266, 8
      %s268 = scalar_lea.vmem %s5, %s267
      %p269 = scmp.eq.s32.totalorder %s21, 0
      %s270 = scalar_select %p269, %s22, 0
      %s271 = scalar_select %p269, %s23, 0
      %p272 = scmp.lt.s32.totalorder %s270, 1
      %s273 = scalar_select %p272, %s270, 1
      %p274 = scmp.lt.s32.totalorder %s271, 0
      %s275 = scalar_select %p274, %s271, 0
      %s276 = sadd.s32 %s275, %s273
      %s277 = smul.addr %s276, 4
      %s278 = scalar_lea.vmem %s0, %s277
      %p279 = scmp.eq.s32.totalorder %s21, 0
      %s280 = scalar_select %p279, %s22, 0
      %s281 = scalar_select %p279, %s23, 0
      %p282 = scmp.eq.s32.totalorder %s21, 2
      %s283 = scalar_select %p282, %s22, 0
      %s284 = scalar_select %p282, %s23, 0
      %p285 = scmp.lt.s32.totalorder %s283, 1
      %s286 = scalar_select %p285, %s283, 1
      %p287 = scmp.lt.s32.totalorder %s284, 0
      %s288 = scalar_select %p287, %s284, 0
      %s289 = smul.addr %s286, 2
      %s290 = sadd.s32 %s288, %s289
      %s291 = smul.addr %s290, 8
      %s292 = scalar_lea.vmem %s5, %s291
      %p293 = scmp.eq.s32.totalorder %s21, 2
      %s294 = scalar_select %p293, %s22, 0
      %s295 = scalar_select %p293, %s23, 0
      %s296 = sadd.s32 %s22, %s23
      %p297 = scmp.eq.s32.totalorder %s21, 0
      %p298 = scmp.eq.s32.totalorder %s22, 0
      %p299 = pnand %p297, %p298
      %p300 = pneg %p299
      %p301 = scmp.eq.s32.totalorder %s23, 0
      %p302 = pnand %p300, %p301
      %p303 = pneg %p302
      // Predicated region
      $region41: #{input_embedding_forward.3} parent=39 // pred_check
        _
      $region42: #{input_embedding_forward.3} parent=39 // pred_check_branch
        %305 = sbr.rel (%p302) target = $region44
      $region43: #{input_embedding_forward.3} parent=39 // pred_region
        %vm306 = vcmask 7168
        %307 = vst.msk [vmem:[#allocation3] sm:$0xff] %vm306, 0.0
        %308 = vst.msk [vmem:[#allocation3 + $0x8] sm:$0xff] %vm306, 0.0
        %309 = vst.msk [vmem:[#allocation3 + $0x10] sm:$0xff] %vm306, 0.0
        %310 = vst.msk [vmem:[#allocation3 + $0x18] sm:$0xff] %vm306, 0.0
        %311 = vst.msk [vmem:[#allocation4] sm:$0xff] %vm306, 0.0
        %312 = vst.msk [vmem:[#allocation4 + $0x8] sm:$0xff] %vm306, 0.0
        %313 = vst.msk [vmem:[#allocation4 + $0x10] sm:$0xff] %vm306, 0.0
        %314 = vst.msk [vmem:[#allocation4 + $0x18] sm:$0xff] %vm306, 0.0
      $region44: #{input_embedding_forward.3} parent=39 // pred_fallthru
        _
      // Predicated region
      $region45: #{input_embedding_forward.3} parent=39 // pred_check
        %p315 = pneg %p297
      $region46: #{input_embedding_forward.3} parent=39 // pred_check_branch
        %317 = sbr.rel (%p315) target = $region48
      $region47: #{input_embedding_forward.3} parent=39 // pred_region
        %v318 = vld [vmem:[%s1] sm:$0xff]
        %v319 = vld [vmem:[%s1 + $0x8] sm:$0xff]
        %v320 = vld [vmem:[%s278] sm:$0x7]
        %vm321 = vcmask 23552
        %v323 = vsel %vm321, %v318, 0
        %v326 = vsel %vm321, %v319, 0
        %vm328 = vcmask 1042432
        %v330 = vsel %vm328, %v320, 0
        %332 = vmatprep.subr.mxu0 0.0
        %333 = vmatpush1.msra.mxu0 %v330
        %334 = vmatprep.subr.mxu0 0.0
        %335 = vmatpush1.msra.mxu0 0.0
        %336 = vmatprep.subr.mxu0 0.0
        %337 = vmatpush1.msra.mxu0 0.0
        %338 = vmatprep.subr.mxu0 0.0
        %339 = vmatpush1.msra.mxu0 0.0
        %340 = vmatprep.subr.mxu0 0.0
        %341 = vmatpush1.msra.mxu0 0.0
        %342 = vmatprep.subr.mxu0 0.0
        %343 = vmatpush1.msra.mxu0 0.0
        %344 = vmatprep.subr.mxu0 0.0
        %345 = vmatpush1.msra.mxu0 0.0
        %346 = vmatprep.subr.mxu0 0.0
        %347 = vmatpush1.msra.mxu0 0.0
        %348 = vmatprep.subr.mxu0 0.0
        %349 = vmatpush1.msra.mxu0 0.0
        %350 = vmatprep.subr.mxu0 0.0
        %351 = vmatpush1.msra.mxu0 0.0
        %352 = vmatprep.subr.mxu0 0.0
        %353 = vmatpush1.msra.mxu0 0.0
        %354 = vmatprep.subr.mxu0 0.0
        %355 = vmatpush1.msra.mxu0 0.0
        %356 = vmatprep.subr.mxu0 0.0
        %357 = vmatpush1.msra.mxu0 0.0
        %358 = vmatprep.subr.mxu0 0.0
        %359 = vmatpush1.msra.mxu0 0.0
        %360 = vmatprep.subr.mxu0 0.0
        %361 = vmatpush1.msra.mxu0 0.0
        %362 = vmatprep.subr.mxu0 0.0
        %363 = vmatpush1.msra.mxu0 0.0
        %364 = vmatprep.subr.mxu0 0.0
        %365 = vmatpush1.msra.mxu0 0.0
        %366 = vmatprep.subr.mxu0 0.0
        %367 = vmatpush1.msra.mxu0 0.0
        %368 = vmatprep.subr.mxu0 0.0
        %369 = vmatpush1.msra.mxu0 0.0
        %370 = vmatprep.subr.mxu0 0.0
        %371 = vmatpush1.msra.mxu0 0.0
        %372 = vmatprep.subr.mxu0 0.0
        %373 = vmatpush1.msra.mxu0 0.0
        %374 = vmatprep.subr.mxu0 0.0
        %375 = vmatpush1.msra.mxu0 0.0
        %376 = vmatprep.subr.mxu0 0.0
        %377 = vmatpush1.msra.mxu0 0.0
        %378 = vmatprep.subr.mxu0 0.0
        %379 = vmatpush1.msra.mxu0 0.0
        %380 = vmatprep.subr.mxu0 0.0
        %381 = vmatpush1.msra.mxu0 0.0
        %382 = vmatprep.subr.mxu0 0.0
        %383 = vmatpush1.msra.mxu0 0.0
        %384 = vmatprep.subr.mxu0 0.0
        %385 = vmatpush1.msra.mxu0 0.0
        %386 = vmatprep.subr.mxu0 0.0
        %387 = vmatpush1.msra.mxu0 0.0
        %388 = vmatprep.subr.mxu0 0.0
        %389 = vmatpush1.msra.mxu0 0.0
        %390 = vmatprep.subr.mxu0 0.0
        %391 = vmatpush1.msra.mxu0 0.0
        %392 = vmatprep.subr.mxu0 0.0
        %393 = vmatpush1.msra.mxu0 0.0
        %394 = vmatprep.subr.mxu0 0.0
        %395 = vmatpush1.msra.mxu0 0.0
        %396 = vmatprep.mubr.f32.mxu0 0.0
        %397 = vmatmul.mubr.f32.gmra.mrb[0].mxu0 %v323
        %v398 = vpop.f32.mrb[0].mxu0
        %v399 = vadd.f32 0.0, %v398
        %v400 = vpop.f32.mrb[0].mxu0
        %401 = vmatprep.mubr.f32.mxu0 0.0
        %402 = vmatmul.mubr.f32.gmra.mrb[0].mxu0 %v326
        %v403 = vpop.f32.mrb[0].mxu0
        %v404 = vadd.f32 0.0, %v403
        %v405 = vpop.f32.mrb[0].mxu0
        %406 = vdwg.mxu0
        %s407 = smul.u32 %s296, 16
        %s408 = scalar_lea.vmem [#allocation2], %s407
        %vm409 = vcmask 261120
        %410 = vst.msk [vmem:[%s408] sm:$0xff] %vm409, %v399
        %411 = vst.msk [vmem:[%s408 + $0x8] sm:$0xff] %vm409, %v404
        %v412 = vld [vmem:[#allocation3] sm:$0xff]
        %v413 = vld [vmem:[#allocation3 + $0x8] sm:$0xff]
        %v414 = vsel %vm409, %v399, 0.0
        %415 = vadd.xlane.f32.xlu0 %v414
        %v416 = vpop.xlane.xlu0 %415
        %v417 = vsel %vm409, %v404, 0.0
        %418 = vadd.xlane.f32.xlu0 %v417
        %v419 = vpop.xlane.xlu0 %418
        %v420 = vadd.f32 %v412, %v416
        %v421 = vadd.f32 %v413, %v419
        %vm422 = vcmask 7168
        %423 = vst.msk [vmem:[#allocation3] sm:$0xff] %vm422, %v420
        %424 = vst.msk [vmem:[#allocation3 + $0x8] sm:$0xff] %vm422, %v421
        %v425 = vld [vmem:[#allocation4] sm:$0xff]
        %v426 = vld [vmem:[#allocation4 + $0x8] sm:$0xff]
        %v427 = vmul.f32 %v399, %v399
        %v428 = vmul.f32 %v404, %v404
        %v429 = vsel %vm409, %v427, 0.0
        %430 = vadd.xlane.f32.xlu0 %v429
        %v431 = vpop.xlane.xlu0 %430
        %v432 = vsel %vm409, %v428, 0.0
        %433 = vadd.xlane.f32.xlu0 %v432
        %v434 = vpop.xlane.xlu0 %433
        %v435 = vadd.f32 %v425, %v431
        %v436 = vadd.f32 %v426, %v434
        %437 = vst.msk [vmem:[#allocation4] sm:$0xff] %vm422, %v435
        %438 = vst.msk [vmem:[#allocation4 + $0x8] sm:$0xff] %vm422, %v436
      $region48: #{input_embedding_forward.3} parent=39 // pred_fallthru
        _
      %p439 = scmp.ge.s32.totalorder %s21, 1
      // Predicated region
      $region49: #{input_embedding_forward.3} parent=39 // pred_check
        %p440 = pneg %p439
      $region50: #{input_embedding_forward.3} parent=39 // pred_check_branch
        %442 = sbr.rel (%p440) target = $region52
      $region51: #{input_embedding_forward.3} parent=39 // pred_region
        %s443 = ssub.s32 %s21, 1
        %s444 = smul.u32 %s296, 16
        %s445 = scalar_lea.vmem [#allocation2], %s444
        %v446 = vld [vmem:[%s445] sm:$0xff]
        %v447 = vld [vmem:[%s445 + $0x8] sm:$0xff]
        %s448 = smul.u32 %s443, 16
        %s449 = scalar_lea.vmem [#allocation3], %s448
        %v450 = vld [vmem:[%s449] sm:$0xff]
        %v451 = vld [vmem:[%s449 + $0x8] sm:$0xff]
        %v452 = vmul.f32 %v450, 0.015625
        %v453 = vmul.f32 %v451, 0.015625
        %s454 = scalar_lea.vmem [#allocation4], %s448
        %v455 = vld [vmem:[%s454] sm:$0xff]
        %v456 = vld [vmem:[%s454 + $0x8] sm:$0xff]
        %v457 = vmul.f32 %v455, 0.015625
        %v458 = vmul.f32 %v456, 0.015625
        %v459 = vmul.f32 %v452, %v452
        %v460 = vmul.f32 %v453, %v453
        %v461 = vsub.f32 %v457, %v459
        %v462 = vsub.f32 %v458, %v460
        %v463 = vmax.f32 %v461, 0.0
        %v464 = vmax.f32 %v462, 0.0
        %466 = vset.pattern.permute.xlu0 0
        %467 = vperm.xlu0 %466, %v452
        %v468 = vpop.permute.xlu0 %467
        %471 = vset.pattern.permute.xlu0 0
        %472 = vperm.xlu0 %471, %v453
        %v473 = vpop.permute.xlu0 %472
        %v475 = vsub.f32 %v446, %v468
        %v476 = vsub.f32 %v447, %v473
        %v477 = vadd.f32 %v463, 1e-05
        %v478 = vadd.f32 %v464, 1e-05
        %v479 = vrsqrt.pop %v477
        %v480 = vrsqrt.pop %v478
        %482 = vset.pattern.permute.xlu0 0
        %483 = vperm.xlu0 %482, %v479
        %v484 = vpop.permute.xlu0 %483
        %487 = vset.pattern.permute.xlu0 0
        %488 = vperm.xlu0 %487, %v480
        %v489 = vpop.permute.xlu0 %488
        %v491 = vmul.f32 %v475, %v484
        %v492 = vmul.f32 %v476, %v489
        %s493 = scalar_lea.vmem %s3, %s448
        %v494 = vld [vmem:[%s493] sm:$0xff]
        %v495 = vld [vmem:[%s493 + $0x8] sm:$0xff]
        %497 = vset.pattern.permute.xlu0 0
        %498 = vperm.xlu0 %497, %v494
        %v499 = vpop.permute.xlu0 %498
        %502 = vset.pattern.permute.xlu0 0
        %503 = vperm.xlu0 %502, %v495
        %v504 = vpop.permute.xlu0 %503
        %v506 = vmul.f32 %v491, %v499
        %v507 = vmul.f32 %v492, %v504
        %s508 = scalar_lea.vmem %s4, %s448
        %v509 = vld [vmem:[%s508] sm:$0xff]
        %v510 = vld [vmem:[%s508 + $0x8] sm:$0xff]
        %512 = vset.pattern.permute.xlu0 0
        %513 = vperm.xlu0 %512, %v509
        %v514 = vpop.permute.xlu0 %513
        %517 = vset.pattern.permute.xlu0 0
        %518 = vperm.xlu0 %517, %v510
        %v519 = vpop.permute.xlu0 %518
        %v521 = vadd.f32 %v506, %v514
        %v522 = vadd.f32 %v507, %v519
        %vm523 = vcmp.gt.f32.partialorder %v521, 0.0
        %vm524 = vcmp.gt.f32.partialorder %v522, 0.0
        %v525 = vmul.f32 %v521, 0.1
        %v526 = vmul.f32 %v522, 0.1
        %v527 = vsel %vm523, %v521, %v525
        %v528 = vsel %vm524, %v522, %v526
        %p529 = scmp.le.s32.totalorder %s21, 1
        // Predicated region
        $region53: #{input_embedding_forward.3} parent=51 // pred_check
          %p530 = pneg %p529
        $region54: #{input_embedding_forward.3} parent=51 // pred_check_branch
          %532 = sbr.rel (%p530) target = $region56
        $region55: #{input_embedding_forward.3} parent=51 // pred_region
          %s533 = scalar_lea.vmem %s2, %s448
          %v534 = vld [vmem:[%s533] sm:$0xff]
          %v535 = vld [vmem:[%s533 + $0x8] sm:$0xff]
          %vm536 = vcmask 130048
          %v538 = vsel %vm536, %v534, 0
          %v541 = vsel %vm536, %v535, 0
          %543 = vmatprep.subr.mxu0 0.0
          %544 = vmatpush1.msra.mxu0 %v527
          %545 = vmatprep.subr.mxu0 0.0
          %546 = vmatpush1.msra.mxu0 %v528
          %547 = vmatprep.subr.mxu0 0.0
          %548 = vmatpush1.msra.mxu0 0.0
          %549 = vmatprep.subr.mxu0 0.0
          %550 = vmatpush1.msra.mxu0 0.0
          %551 = vmatprep.subr.mxu0 0.0
          %552 = vmatpush1.msra.mxu0 0.0
          %553 = vmatprep.subr.mxu0 0.0
          %554 = vmatpush1.msra.mxu0 0.0
          %555 = vmatprep.subr.mxu0 0.0
          %556 = vmatpush1.msra.mxu0 0.0
          %557 = vmatprep.subr.mxu0 0.0
          %558 = vmatpush1.msra.mxu0 0.0
          %559 = vmatprep.subr.mxu0 0.0
          %560 = vmatpush1.msra.mxu0 0.0
          %561 = vmatprep.subr.mxu0 0.0
          %562 = vmatpush1.msra.mxu0 0.0
          %563 = vmatprep.subr.mxu0 0.0
          %564 = vmatpush1.msra.mxu0 0.0
          %565 = vmatprep.subr.mxu0 0.0
          %566 = vmatpush1.msra.mxu0 0.0
          %567 = vmatprep.subr.mxu0 0.0
          %568 = vmatpush1.msra.mxu0 0.0
          %569 = vmatprep.subr.mxu0 0.0
          %570 = vmatpush1.msra.mxu0 0.0
          %571 = vmatprep.subr.mxu0 0.0
          %572 = vmatpush1.msra.mxu0 0.0
          %573 = vmatprep.subr.mxu0 0.0
          %574 = vmatpush1.msra.mxu0 0.0
          %575 = vmatprep.subr.mxu0 0.0
          %576 = vmatpush1.msra.mxu0 0.0
          %577 = vmatprep.subr.mxu0 0.0
          %578 = vmatpush1.msra.mxu0 0.0
          %579 = vmatprep.subr.mxu0 0.0
          %580 = vmatpush1.msra.mxu0 0.0
          %581 = vmatprep.subr.mxu0 0.0
          %582 = vmatpush1.msra.mxu0 0.0
          %583 = vmatprep.subr.mxu0 0.0
          %584 = vmatpush1.msra.mxu0 0.0
          %585 = vmatprep.subr.mxu0 0.0
          %586 = vmatpush1.msra.mxu0 0.0
          %587 = vmatprep.subr.mxu0 0.0
          %588 = vmatpush1.msra.mxu0 0.0
          %589 = vmatprep.subr.mxu0 0.0
          %590 = vmatpush1.msra.mxu0 0.0
          %591 = vmatprep.subr.mxu0 0.0
          %592 = vmatpush1.msra.mxu0 0.0
          %593 = vmatprep.subr.mxu0 0.0
          %594 = vmatpush1.msra.mxu0 0.0
          %595 = vmatprep.subr.mxu0 0.0
          %596 = vmatpush1.msra.mxu0 0.0
          %597 = vmatprep.subr.mxu0 0.0
          %598 = vmatpush1.msra.mxu0 0.0
          %599 = vmatprep.subr.mxu0 0.0
          %600 = vmatpush1.msra.mxu0 0.0
          %601 = vmatprep.subr.mxu0 0.0
          %602 = vmatpush1.msra.mxu0 0.0
          %603 = vmatprep.subr.mxu0 0.0
          %604 = vmatpush1.msra.mxu0 0.0
          %605 = vmatprep.subr.mxu0 0.0
          %606 = vmatpush1.msra.mxu0 0.0
          %607 = vmatprep.mubr.f32.mxu0 0.0
          %608 = vmatmul.mubr.f32.gmra.mrb[0].mxu0 %v538
          %v609 = vpop.f32.mrb[0].mxu0
          %v610 = vadd.f32 0.0, %v609
          %v611 = vpop.f32.mrb[0].mxu0
          %612 = vmatprep.mubr.f32.mxu0 0.0
          %613 = vmatmul.mubr.f32.gmra.mrb[0].mxu0 %v541
          %v614 = vpop.f32.mrb[0].mxu0
          %v615 = vadd.f32 0.0, %v614
          %v616 = vpop.f32.mrb[0].mxu0
          %617 = vdwg.mxu0
          %vm618 = vcmask 261120
          %619 = vst.msk [vmem:[%s445] sm:$0xff] %vm618, %v610
          %620 = vst.msk [vmem:[%s445 + $0x8] sm:$0xff] %vm618, %v615
          %s621 = smul.u32 %s21, 16
          %s622 = scalar_lea.vmem [#allocation3], %s621
          %v623 = vld [vmem:[%s622] sm:$0xff]
          %v624 = vld [vmem:[%s622 + $0x8] sm:$0xff]
          %v625 = vsel %vm618, %v610, 0.0
          %626 = vadd.xlane.f32.xlu0 %v625
          %v627 = vpop.xlane.xlu0 %626
          %v628 = vsel %vm618, %v615, 0.0
          %629 = vadd.xlane.f32.xlu0 %v628
          %v630 = vpop.xlane.xlu0 %629
          %v631 = vadd.f32 %v623, %v627
          %v632 = vadd.f32 %v624, %v630
          %vm633 = vcmask 7168
          %634 = vst.msk [vmem:[%s622] sm:$0xff] %vm633, %v631
          %635 = vst.msk [vmem:[%s622 + $0x8] sm:$0xff] %vm633, %v632
          %s636 = scalar_lea.vmem [#allocation4], %s621
          %v637 = vld [vmem:[%s636] sm:$0xff]
          %v638 = vld [vmem:[%s636 + $0x8] sm:$0xff]
          %v639 = vmul.f32 %v610, %v610
          %v640 = vmul.f32 %v615, %v615
          %v641 = vsel %vm618, %v639, 0.0
          %642 = vadd.xlane.f32.xlu0 %v641
          %v643 = vpop.xlane.xlu0 %642
          %v644 = vsel %vm618, %v640, 0.0
          %645 = vadd.xlane.f32.xlu0 %v644
          %v646 = vpop.xlane.xlu0 %645
          %v647 = vadd.f32 %v637, %v643
          %v648 = vadd.f32 %v638, %v646
          %649 = vst.msk [vmem:[%s636] sm:$0xff] %vm633, %v647
          %650 = vst.msk [vmem:[%s636 + $0x8] sm:$0xff] %vm633, %v648
        $region56: #{input_embedding_forward.3} parent=51 // pred_fallthru
          _
        %p651 = scmp.eq.s32.totalorder %s21, 2
        // Predicated region
        $region57: #{input_embedding_forward.3} parent=51 // pred_check
          %p652 = pneg %p651
        $region58: #{input_embedding_forward.3} parent=51 // pred_check_branch
          %654 = sbr.rel (%p652) target = $region60
        $region59: #{input_embedding_forward.3} parent=51 // pred_region
          %vm655 = vcmask 261120
          %656 = vst.msk [vmem:[%s292] sm:$0xff] %vm655, %v527
          %657 = vst.msk [vmem:[%s292 + $0x8] sm:$0xff] %vm655, %v528
        $region60: #{input_embedding_forward.3} parent=51 // pred_fallthru
          _
      $region52: #{input_embedding_forward.3} parent=39 // pred_fallthru
        _
      %p658 = scmp.eq.s32.totalorder %s21, 2
      %s659 = scalar_select %p658, %s22, 0
      %s660 = scalar_select %p658, %s23, 0
      %p661 = scmp.lt.s32.totalorder %s659, 1
      %s662 = scalar_select %p661, %s659, 1
      %p663 = scmp.lt.s32.totalorder %s660, 0
      %s664 = scalar_select %p663, %s660, 0
      %s665 = smul.addr %s662, 2
      %s666 = sadd.s32 %s664, %s665
      %s667 = smul.addr %s666, 8
      %s668 = scalar_lea.vmem %s5, %s667
      // Predicated region
      $region61: #{input_embedding_forward.3} parent=39 // pred_check
        %p669 = pneg %p179
      $region62: #{input_embedding_forward.3} parent=39 // pred_check_branch
        %671 = sbr.rel (%p669) target = $region64
      $region63: #{input_embedding_forward.3} parent=39 // pred_region
        %p672 = scmp.eq.s32.totalorder %s21, 2
        %s673 = scalar_select %p672, %s22, 0
        %s674 = scalar_select %p672, %s23, 0
      $region64: #{input_embedding_forward.3} parent=39 // pred_fallthru
        _
    $region40: #{input_embedding_forward.3} parent=5 // pred_fallthru
      _
    %p675 = scmp.le.s32.totalorder 2, %s11
    // Predicated region
    $region65: #{input_embedding_forward.3} parent=5 // pred_check
      %p676 = pneg %p675
    $region66: #{input_embedding_forward.3} parent=5 // pred_check_branch
      %678 = sbr.rel (%p676) target = $region68
    $region67: #{input_embedding_forward.3} parent=5 // pred_region
      %s679 = ssub.s32 %s11, 2
      // Predicated region
      $region69: #{input_embedding_forward.3} parent=67 // pred_check
        %p680 = pneg %p185
      $region70: #{input_embedding_forward.3} parent=67 // pred_check_branch
        %682 = sbr.rel (%p680) target = $region72
      $region71: #{input_embedding_forward.3} parent=67 // pred_region
        %p683 = scmp.eq.s32.totalorder %s24, 2
        %s684 = scalar_select %p683, %s25, 0
        %s685 = scalar_select %p683, %s26, 0
        %p686 = scmp.lt.s32.totalorder %s684, 1
        %s687 = scalar_select %p686, %s684, 1
        %p688 = scmp.lt.s32.totalorder %s685, 0
        %s689 = scalar_select %p688, %s685, 0
        %s690 = smul.addr %s687, 2
        %s691 = sadd.s32 %s689, %s690
        %s692 = smul.addr %s691, 8
        %s693 = scalar_lea.vmem %s5, %s692
      $region72: #{input_embedding_forward.3} parent=67 // pred_fallthru
        _
    $region68: #{input_embedding_forward.3} parent=5 // pred_fallthru
      _
  $region6: #{input_embedding_forward.3} parent=0 // loop_footer
    %s15 = sadd.s32 1, %s11
  $region7: #{input_embedding_forward.3} parent=0 // loop_footer_branch
    %10 = sbr.rel target = $region3
  $region8: #{input_embedding_forward.3} parent=0 // loop_exit
    _

// kernel: input_embedding_forward.5
$region0: #{input_embedding_forward.5}
  #allocation0 [shape = 'u32[]', space=smem, size = 0x4, offset = 0x4, fixed_abs, tag = 'smem constant byte address 0x4 - core index']
  #allocation1 [shape = 'u32[144,128]{1,0:T(1,128)}', space=vmem, size = 0x12000, scoped, tag = 'internal scratch']
  #allocation2 [shape = 'bf16[16,32]{1,0:T(16,128)(2,1)}', space=vmem, size = 0x1000, scoped, tag = 'scratch operand']
  #allocation3 [shape = 'f32[1,16,32]{2,1,0:T(8,128)}', space=vmem, size = 0x2000, scoped, tag = 'scratch operand']
  #allocation4 [shape = 'f32[1,16,32]{2,1,0:T(8,128)}', space=vmem, size = 0x2000, scoped, tag = 'scratch operand']
  #allocation5 [shape = 'f32[3,1,1]{2,1,0:T(1,128)}', space=vmem, size = 0x600, scoped, tag = 'scratch operand']
  %s0 = inlined_call_operand.vmem [shape: f32[2,3,32], index: 0, kind: input, shape index: {}]
  %s1 = inlined_call_operand.vmem [shape: s32[2,4,32], index: 1, kind: input, shape index: {}]
  %s2 = inlined_call_operand.vmem [shape: f32[16,3], index: 2, kind: input, shape index: {}]
  %s3 = inlined_call_operand.vmem [shape: f32[16,1], index: 3, kind: input, shape index: {}]
  %s4 = inlined_call_operand.vmem [shape: f32[16,1], index: 4, kind: input, shape index: {}]
  %s5 = inlined_call_operand.vmem [shape: f32[2,16,32], index: 5, kind: output, shape index: {}]
  %s6 = sld [smem:[#allocation0]]
  $region61: #{input_embedding_forward.5} parent=0
    _
  %s8 = ssub.s32 1, %s6
  %s9 = scalar_select 0, %s8, %s6
  loop: start=0, step=1, limit=4
  $region2: #{input_embedding_forward.5} parent=0 // loop_pre_header
    _
  $region3: #{input_embedding_forward.5} parent=0 // loop_header
    %s11 = sphi 0, %s15
    %p12 = scmp.ge.s32.totalorder %s11, 4
    %s18 = sphi 0, %s30
    %s19 = sphi 0, %s26
    %s20 = sphi 0, %s18
    %s21 = sphi 0, %s19
    %s22 = sphi 0, %s20
    %s23 = sphi 0, %s21
    %s33 = sphi 0, %s35
    %s36 = sphi 0, %s33
    %s37 = sphi 0, %s36
    %s53 = sphi 0, %s37
    %s61 = sphi 0, %s63
    %s64 = sphi 0, %s61
    %s65 = sphi 0, %s64
    %s81 = sphi 0, %s65
    %s85 = sphi 0, %s85
    %s87 = sphi 0, %s85
    %s88 = sphi 0, %s87
    %s102 = sphi 0, %s88
    %s106 = sphi 0, %s106
    %s108 = sphi 0, %s106
    %s109 = sphi 0, %s108
    %s123 = sphi 0, %s109
    %s127 = sphi 0, %s127
    %s129 = sphi 0, %s127
    %s130 = sphi 0, %s129
    %s144 = sphi 0, %s130
    %s150 = sphi 0, %s152
    %s153 = sphi 0, %s150
    %s154 = sphi 0, %s153
    %s170 = sphi 0, %s154
  $region4: #{input_embedding_forward.5} parent=0 // loop_header_branch
    %14 = sbr.rel (%p12) target = $region8
  $region5: #{input_embedding_forward.5} parent=0 // loop_body
    %s16 = ssub.s32 %s11, 1
    %s17 = ssub.s32 %s11, 2
    %s24 = sadd.s32 1, %s19
    %p25 = scmp.ge.s32.totalorder %s24, 1
    %s26 = scalar_select %p25, 0, %s24
    %s27 = sadd.s32 1, %s18
    %s28 = scalar_select %p25, %s27, %s18
    %p29 = scmp.ge.s32.totalorder %s28, 2
    %s30 = scalar_select %p29, 0, %s28
    %s31 = ssub.s32 %s18, %s30
    %p32 = scmp.eq.s32.totalorder %s31, 0
    %s34 = sadd.s32 %s33, 1
    %s35 = scalar_select %p32, %s33, %s34
    %p38 = pneg %p32
    %p39 = scmp.eq.s32.totalorder %s11, 1
    %p40 = por %p38, %p39
    %p41 = scmp.ne.s32.totalorder %s33, %s36
    %p42 = scmp.eq.s32.totalorder %s11, 0
    %p43 = por %p41, %p42
    %p44 = scmp.ne.s32.totalorder %s33, %s36
    %p45 = scmp.eq.s32.totalorder %s16, 1
    %p46 = por %p44, %p45
    %p47 = scmp.ne.s32.totalorder %s36, %s37
    %p48 = scmp.eq.s32.totalorder %s16, 0
    %p49 = por %p47, %p48
    %p50 = scmp.ne.s32.totalorder %s36, %s37
    %p51 = scmp.eq.s32.totalorder %s17, 1
    %p52 = por %p50, %p51
    %p54 = scmp.ne.s32.totalorder %s37, %s53
    %p55 = scmp.eq.s32.totalorder %s17, 0
    %p56 = por %p54, %p55
    %s57 = ssub.s32 %s18, %s30
    %s58 = ssub.s32 %s19, %s26
    %s59 = sor.u32 %s57, %s58
    %p60 = scmp.eq.s32.totalorder %s59, 0
    %s62 = sadd.s32 %s61, 1
    %s63 = scalar_select %p60, %s61, %s62
    %p66 = pneg %p60
    %p67 = scmp.eq.s32.totalorder %s11, 1
    %p68 = por %p66, %p67
    %p69 = scmp.ne.s32.totalorder %s61, %s64
    %p70 = scmp.eq.s32.totalorder %s11, 0
    %p71 = por %p69, %p70
    %p72 = scmp.ne.s32.totalorder %s61, %s64
    %p73 = scmp.eq.s32.totalorder %s16, 1
    %p74 = por %p72, %p73
    %p75 = scmp.ne.s32.totalorder %s64, %s65
    %p76 = scmp.eq.s32.totalorder %s16, 0
    %p77 = por %p75, %p76
    %p78 = scmp.ne.s32.totalorder %s64, %s65
    %p79 = scmp.eq.s32.totalorder %s17, 1
    %p80 = por %p78, %p79
    %p82 = scmp.ne.s32.totalorder %s65, %s81
    %p83 = scmp.eq.s32.totalorder %s17, 0
    %p84 = por %p82, %p83
    %s86 = sadd.s32 %s85, 1
    %p89 = scmp.eq.s32.totalorder %s11, 1
    %p90 = scmp.ne.s32.totalorder %s85, %s87
    %p91 = scmp.eq.s32.totalorder %s11, 0
    %p92 = por %p90, %p91
    %p93 = scmp.ne.s32.totalorder %s85, %s87
    %p94 = scmp.eq.s32.totalorder %s16, 1
    %p95 = por %p93, %p94
    %p96 = scmp.ne.s32.totalorder %s87, %s88
    %p97 = scmp.eq.s32.totalorder %s16, 0
    %p98 = por %p96, %p97
    %p99 = scmp.ne.s32.totalorder %s87, %s88
    %p100 = scmp.eq.s32.totalorder %s17, 1
    %p101 = por %p99, %p100
    %p103 = scmp.ne.s32.totalorder %s88, %s102
    %p104 = scmp.eq.s32.totalorder %s17, 0
    %p105 = por %p103, %p104
    %s107 = sadd.s32 %s106, 1
    %p110 = scmp.eq.s32.totalorder %s11, 1
    %p111 = scmp.ne.s32.totalorder %s106, %s108
    %p112 = scmp.eq.s32.totalorder %s11, 0
    %p113 = por %p111, %p112
    %p114 = scmp.ne.s32.totalorder %s106, %s108
    %p115 = scmp.eq.s32.totalorder %s16, 1
    %p116 = por %p114, %p115
    %p117 = scmp.ne.s32.totalorder %s108, %s109
    %p118 = scmp.eq.s32.totalorder %s16, 0
    %p119 = por %p117, %p118
    %p120 = scmp.ne.s32.totalorder %s108, %s109
    %p121 = scmp.eq.s32.totalorder %s17, 1
    %p122 = por %p120, %p121
    %p124 = scmp.ne.s32.totalorder %s109, %s123
    %p125 = scmp.eq.s32.totalorder %s17, 0
    %p126 = por %p124, %p125
    %s128 = sadd.s32 %s127, 1
    %p131 = scmp.eq.s32.totalorder %s11, 1
    %p132 = scmp.ne.s32.totalorder %s127, %s129
    %p133 = scmp.eq.s32.totalorder %s11, 0
    %p134 = por %p132, %p133
    %p135 = scmp.ne.s32.totalorder %s127, %s129
    %p136 = scmp.eq.s32.totalorder %s16, 1
    %p137 = por %p135, %p136
    %p138 = scmp.ne.s32.totalorder %s129, %s130
    %p139 = scmp.eq.s32.totalorder %s16, 0
    %p140 = por %p138, %p139
    %p141 = scmp.ne.s32.totalorder %s129, %s130
    %p142 = scmp.eq.s32.totalorder %s17, 1
    %p143 = por %p141, %p142
    %p145 = scmp.ne.s32.totalorder %s130, %s144
    %p146 = scmp.eq.s32.totalorder %s17, 0
    %p147 = por %p145, %p146
    %s148 = ssub.s32 %s18, %s30
    %p149 = scmp.eq.s32.totalorder %s148, 0
    %s151 = sadd.s32 %s150, 1
    %s152 = scalar_select %p149, %s150, %s151
    %p155 = pneg %p149
    %p156 = scmp.eq.s32.totalorder %s11, 1
    %p157 = por %p155, %p156
    %p158 = scmp.ne.s32.totalorder %s150, %s153
    %p159 = scmp.eq.s32.totalorder %s11, 0
    %p160 = por %p158, %p159
    %p161 = scmp.ne.s32.totalorder %s150, %s153
    %p162 = scmp.eq.s32.totalorder %s16, 1
    %p163 = por %p161, %p162
    %p164 = scmp.ne.s32.totalorder %s153, %s154
    %p165 = scmp.eq.s32.totalorder %s16, 0
    %p166 = por %p164, %p165
    %p167 = scmp.ne.s32.totalorder %s153, %s154
    %p168 = scmp.eq.s32.totalorder %s17, 1
    %p169 = por %p167, %p168
    %p171 = scmp.ne.s32.totalorder %s154, %s170
    %p172 = scmp.eq.s32.totalorder %s17, 0
    %p173 = por %p171, %p172
    %p174 = scmp.le.s32.totalorder 1, %s11
    %p175 = scmp.lt.s32.totalorder %s11, 3
    %p176 = pnand %p174, %p175
    %p177 = pneg %p176
    // Predicated region
    $region9: #{input_embedding_forward.5} parent=5 // pred_check
      _
    $region10: #{input_embedding_forward.5} parent=5 // pred_check_branch
      %179 = sbr.rel (%p176) target = $region12
    $region11: #{input_embedding_forward.5} parent=5 // pred_region
      %s180 = ssub.s32 %s11, 1
      // Predicated region
      $region13: #{input_embedding_forward.5} parent=11 // pred_check
        %p181 = pneg %p98
      $region14: #{input_embedding_forward.5} parent=11 // pred_check_branch
        %183 = sbr.rel (%p181) target = $region16
      $region15: #{input_embedding_forward.5} parent=11 // pred_region
        _
      $region16: #{input_embedding_forward.5} parent=11 // pred_fallthru
        _
      // Predicated region
      $region17: #{input_embedding_forward.5} parent=11 // pred_check
        %p184 = pneg %p119
      $region18: #{input_embedding_forward.5} parent=11 // pred_check_branch
        %186 = sbr.rel (%p184) target = $region20
      $region19: #{input_embedding_forward.5} parent=11 // pred_region
        _
      $region20: #{input_embedding_forward.5} parent=11 // pred_fallthru
        _
      // Predicated region
      $region21: #{input_embedding_forward.5} parent=11 // pred_check
        %p187 = pneg %p140
      $region22: #{input_embedding_forward.5} parent=11 // pred_check_branch
        %189 = sbr.rel (%p187) target = $region24
      $region23: #{input_embedding_forward.5} parent=11 // pred_region
        _
      $region24: #{input_embedding_forward.5} parent=11 // pred_fallthru
        _
    $region12: #{input_embedding_forward.5} parent=5 // pred_fallthru
      _
    %p190 = scmp.lt.s32.totalorder %s11, 2
    // Predicated region
    $region25: #{input_embedding_forward.5} parent=5 // pred_check
      %p191 = pneg %p190
    $region26: #{input_embedding_forward.5} parent=5 // pred_check_branch
      %193 = sbr.rel (%p191) target = $region28
    $region27: #{input_embedding_forward.5} parent=5 // pred_region
      // Predicated region
      $region29: #{input_embedding_forward.5} parent=27 // pred_check
        %p194 = pneg %p43
      $region30: #{input_embedding_forward.5} parent=27 // pred_check_branch
        %196 = sbr.rel (%p194) target = $region32
      $region31: #{input_embedding_forward.5} parent=27 // pred_region
        %p197 = scmp.lt.s32.totalorder %s18, 1
        %s198 = scalar_select %p197, %s18, 1
        %s199 = smul.addr %s198, 4
        %s200 = scalar_lea.vmem %s0, %s199
      $region32: #{input_embedding_forward.5} parent=27 // pred_fallthru
        _
      // Predicated region
      $region33: #{input_embedding_forward.5} parent=27 // pred_check
        %p201 = pneg %p71
      $region34: #{input_embedding_forward.5} parent=27 // pred_check_branch
        %203 = sbr.rel (%p201) target = $region36
      $region35: #{input_embedding_forward.5} parent=27 // pred_region
        %p204 = scmp.lt.s32.totalorder %s18, 1
        %s205 = scalar_select %p204, %s18, 1
        %p206 = scmp.lt.s32.totalorder %s19, 0
        %s207 = scalar_select %p206, %s19, 0
        %s208 = sadd.s32 %s207, %s205
        %s209 = smul.addr %s208, 4
        %s210 = scalar_lea.vmem %s1, %s209
      $region36: #{input_embedding_forward.5} parent=27 // pred_fallthru
        _
    $region28: #{input_embedding_forward.5} parent=5 // pred_fallthru
      _
    %p211 = scmp.le.s32.totalorder 1, %s11
    %p212 = scmp.lt.s32.totalorder %s11, 3
    %p213 = pnand %p211, %p212
    %p214 = pneg %p213
    // Predicated region
    $region37: #{input_embedding_forward.5} parent=5 // pred_check
      _
    $region38: #{input_embedding_forward.5} parent=5 // pred_check_branch
      %216 = sbr.rel (%p213) target = $region40
    $region39: #{input_embedding_forward.5} parent=5 // pred_region
      %s217 = ssub.s32 %s11, 1
      %p218 = scmp.lt.s32.totalorder %s20, 1
      %s219 = scalar_select %p218, %s20, 1
      %s220 = smul.addr %s219, 4
      %s221 = scalar_lea.vmem %s0, %s220
      %p222 = pneg %p49
      %p223 = pneg %p46
      %p224 = scmp.lt.s32.totalorder %s20, 1
      %s225 = scalar_select %p224, %s20, 1
      %p226 = scmp.lt.s32.totalorder %s21, 0
      %s227 = scalar_select %p226, %s21, 0
      %s228 = sadd.s32 %s227, %s225
      %s229 = smul.addr %s228, 4
      %s230 = scalar_lea.vmem %s1, %s229
      %p231 = pneg %p77
      %p232 = pneg %p74
      %p233 = pneg %p98
      %p234 = pneg %p95
      %p235 = pneg %p119
      %p236 = pneg %p116
      %p237 = pneg %p140
      %p238 = pneg %p137
      %p239 = pneg %p166
      %p240 = pneg %p163
      %p241 = scmp.lt.s32.totalorder %s20, 1
      %s242 = scalar_select %p241, %s20, 1
      %s243 = smul.addr %s242, 2
      %s244 = smul.addr %s243, 8
      %s245 = scalar_lea.vmem %s5, %s244
      %p246 = scmp.lt.s32.totalorder %s20, 1
      %s247 = scalar_select %p246, %s20, 1
      %s248 = smul.addr %s247, 4
      %s249 = scalar_lea.vmem %s0, %s248
      %p250 = scmp.lt.s32.totalorder %s20, 1
      %s251 = scalar_select %p250, %s20, 1
      %p252 = scmp.lt.s32.totalorder %s21, 0
      %s253 = scalar_select %p252, %s21, 0
      %s254 = sadd.s32 %s253, %s251
      %s255 = smul.addr %s254, 4
      %s256 = scalar_lea.vmem %s1, %s255
      %p257 = scmp.lt.s32.totalorder %s20, 1
      %s258 = scalar_select %p257, %s20, 1
      %s259 = smul.addr %s258, 2
      %s260 = smul.addr %s259, 8
      %s261 = scalar_lea.vmem %s5, %s260
      %p263 = scmp.eq.s32.totalorder %s21, 0
      // Predicated region
      $region41: #{input_embedding_forward.5} parent=39 // pred_check
        %p264 = pneg %p263
      $region42: #{input_embedding_forward.5} parent=39 // pred_check_branch
        %266 = sbr.rel (%p264) target = $region44
      $region43: #{input_embedding_forward.5} parent=39 // pred_region
        %v267 = vld [vmem:[%s2] sm:$0xff]
        %v268 = vld [vmem:[%s2 + $0x8] sm:$0xff]
        %v269 = vld [vmem:[%s249] sm:$0x7]
        %vm270 = vcmask 23552
        %v272 = vsel %vm270, %v267, 0
        %v275 = vsel %vm270, %v268, 0
        %vm277 = vcmask 1042432
        %v279 = vsel %vm277, %v269, 0
        %281 = vmatprep.subr.mxu0 0.0
        %282 = vmatpush1.msra.mxu0 %v279
        %283 = vmatprep.subr.mxu0 0.0
        %284 = vmatpush1.msra.mxu0 0.0
        %285 = vmatprep.subr.mxu0 0.0
        %286 = vmatpush1.msra.mxu0 0.0
        %287 = vmatprep.subr.mxu0 0.0
        %288 = vmatpush1.msra.mxu0 0.0
        %289 = vmatprep.subr.mxu0 0.0
        %290 = vmatpush1.msra.mxu0 0.0
        %291 = vmatprep.subr.mxu0 0.0
        %292 = vmatpush1.msra.mxu0 0.0
        %293 = vmatprep.subr.mxu0 0.0
        %294 = vmatpush1.msra.mxu0 0.0
        %295 = vmatprep.subr.mxu0 0.0
        %296 = vmatpush1.msra.mxu0 0.0
        %297 = vmatprep.subr.mxu0 0.0
        %298 = vmatpush1.msra.mxu0 0.0
        %299 = vmatprep.subr.mxu0 0.0
        %300 = vmatpush1.msra.mxu0 0.0
        %301 = vmatprep.subr.mxu0 0.0
        %302 = vmatpush1.msra.mxu0 0.0
        %303 = vmatprep.subr.mxu0 0.0
        %304 = vmatpush1.msra.mxu0 0.0
        %305 = vmatprep.subr.mxu0 0.0
        %306 = vmatpush1.msra.mxu0 0.0
        %307 = vmatprep.subr.mxu0 0.0
        %308 = vmatpush1.msra.mxu0 0.0
        %309 = vmatprep.subr.mxu0 0.0
        %310 = vmatpush1.msra.mxu0 0.0
        %311 = vmatprep.subr.mxu0 0.0
        %312 = vmatpush1.msra.mxu0 0.0
        %313 = vmatprep.subr.mxu0 0.0
        %314 = vmatpush1.msra.mxu0 0.0
        %315 = vmatprep.subr.mxu0 0.0
        %316 = vmatpush1.msra.mxu0 0.0
        %317 = vmatprep.subr.mxu0 0.0
        %318 = vmatpush1.msra.mxu0 0.0
        %319 = vmatprep.subr.mxu0 0.0
        %320 = vmatpush1.msra.mxu0 0.0
        %321 = vmatprep.subr.mxu0 0.0
        %322 = vmatpush1.msra.mxu0 0.0
        %323 = vmatprep.subr.mxu0 0.0
        %324 = vmatpush1.msra.mxu0 0.0
        %325 = vmatprep.subr.mxu0 0.0
        %326 = vmatpush1.msra.mxu0 0.0
        %327 = vmatprep.subr.mxu0 0.0
        %328 = vmatpush1.msra.mxu0 0.0
        %329 = vmatprep.subr.mxu0 0.0
        %330 = vmatpush1.msra.mxu0 0.0
        %331 = vmatprep.subr.mxu0 0.0
        %332 = vmatpush1.msra.mxu0 0.0
        %333 = vmatprep.subr.mxu0 0.0
        %334 = vmatpush1.msra.mxu0 0.0
        %335 = vmatprep.subr.mxu0 0.0
        %336 = vmatpush1.msra.mxu0 0.0
        %337 = vmatprep.subr.mxu0 0.0
        %338 = vmatpush1.msra.mxu0 0.0
        %339 = vmatprep.subr.mxu0 0.0
        %340 = vmatpush1.msra.mxu0 0.0
        %341 = vmatprep.subr.mxu0 0.0
        %342 = vmatpush1.msra.mxu0 0.0
        %343 = vmatprep.subr.mxu0 0.0
        %344 = vmatpush1.msra.mxu0 0.0
        %345 = vmatprep.mubr.f32.mxu0 0.0
        %346 = vmatmul.mubr.f32.gmra.mrb[0].mxu0 %v272
        %v347 = vpop.f32.mrb[0].mxu0
        %v348 = vadd.f32 0.0, %v347
        %v349 = vpop.f32.mrb[0].mxu0
        %350 = vmatprep.mubr.f32.mxu0 0.0
        %351 = vmatmul.mubr.f32.gmra.mrb[0].mxu0 %v275
        %v352 = vpop.f32.mrb[0].mxu0
        %v353 = vadd.f32 0.0, %v352
        %v354 = vpop.f32.mrb[0].mxu0
        %355 = vdwg.mxu0
        %v356 = vpack.c.bf16 %v353, %v348
        %vm357 = vcmask 261120
        %358 = vst.msk [vmem:[#allocation2] sm:$0xff] %vm357, %v356
        %vm359 = vcmask 0
        %360 = vst.msk [vmem:[#allocation5] sm:$0x1] %vm359, 0.0
        %361 = vst.msk [vmem:[#allocation5 + $0x1] sm:$0x1] %vm359, 0.0
        %362 = vst.msk [vmem:[#allocation5 + $0x2] sm:$0x1] %vm359, 0.0
      $region44: #{input_embedding_forward.5} parent=39 // pred_fallthru
        _
      %s363 = smul.u32 %s21, 32
      %v364 = vlaneseq
      %v365 = vshrl.u32 %v364, 7
      %v366 = vadd.s32 %v365, 8
      %v367 = vadd.s32 %v365, 16
      %v368 = vadd.s32 %v365, 24
      %v369 = vlaneseq
      %v370 = vand.u32 %v369, 127
      %v371 = vstv %s363
      %v372 = vadd.s32 %v371, %v370
      %vm373 = vcmp.eq.s32.totalorder %v365, %v372
      %vm374 = vcmp.eq.s32.totalorder %v366, %v372
      %vm375 = vcmp.eq.s32.totalorder %v367, %v372
      %vm376 = vcmp.eq.s32.totalorder %v368, %v372
      %v377 = vsel %vm373, 1, 0
      %v378 = vsel %vm374, 1, 0
      %v379 = vsel %vm375, 1, 0
      %v380 = vsel %vm376, 1, 0
      %v381 = vcvt.s32.f32 %v377
      %v382 = vcvt.s32.f32 %v378
      %v383 = vcvt.s32.f32 %v379
      %v384 = vcvt.s32.f32 %v380
      %v385 = vpack.c.bf16 %v382, %v381
      %v386 = vpack.c.bf16 %v384, %v383
      %v387 = vld [vmem:[#allocation2] sm:$0xff]
      %v388 = vld [vmem:[#allocation5] sm:$0x1]
      %s389 = scalar_lea.vmem [#allocation5], 1
      %v390 = vld [vmem:[%s389] sm:$0x1]
      %s391 = scalar_lea.vmem [#allocation5], 2
      %v392 = vld [vmem:[%s391] sm:$0x1]
      %v393 = vld [vmem:[%s256] sm:$0x1]
      %v394 = vlaneseq
      %v395 = vshrl.u32 %v394, 7
      %v396 = vsub.s32 0, %v395
      %v397 = vrot.slane %v393, %v396
      %vm398 = vcmp.eq.s32.totalorder %v365, %v397
      %vm399 = vcmp.eq.s32.totalorder %v366, %v397
      %vm400 = vcmp.eq.s32.totalorder %v367, %v397
      %vm401 = vcmp.eq.s32.totalorder %v368, %v397
      %v402 = vsel %vm398, 1, 0
      %v403 = vsel %vm399, 1, 0
      %v404 = vsel %vm400, 1, 0
      %v405 = vsel %vm401, 1, 0
      %v406 = vcvt.s32.f32 %v402
      %v407 = vcvt.s32.f32 %v403
      %v408 = vcvt.s32.f32 %v404
      %v409 = vcvt.s32.f32 %v405
      %v410 = vpack.c.bf16 %v407, %v406
      %v411 = vpack.c.bf16 %v409, %v408
      %v412 = vsub.bf16 %v410, %v385
      %v413 = vsub.bf16 %v411, %v386
      %vm414 = vcmask 261120
      %v416 = vsel %vm414, %v387, 0
      %418 = vmatprep.subr.bf16.mxu0 0
      %419 = vmatpush1.bf16.msra.mxu0 %v412
      %420 = vmatprep.subr.bf16.mxu0 0
      %421 = vmatpush1.bf16.msra.mxu0 %v413
      %422 = vmatprep.subr.bf16.mxu0 0
      %423 = vmatpush1.bf16.msra.mxu0 0
      %424 = vmatprep.subr.bf16.mxu0 0
      %425 = vmatpush1.bf16.msra.mxu0 0
      %426 = vmatprep.subr.bf16.mxu0 0
      %427 = vmatpush1.bf16.msra.mxu0 0
      %428 = vmatprep.subr.bf16.mxu0 0
      %429 = vmatpush1.bf16.msra.mxu0 0
      %430 = vmatprep.subr.bf16.mxu0 0
      %431 = vmatpush1.bf16.msra.mxu0 0
      %432 = vmatprep.subr.bf16.mxu0 0
      %433 = vmatpush1.bf16.msra.mxu0 0
      %434 = vmatprep.subr.bf16.mxu0 0
      %435 = vmatpush1.bf16.msra.mxu0 0
      %436 = vmatprep.subr.bf16.mxu0 0
      %437 = vmatpush1.bf16.msra.mxu0 0
      %438 = vmatprep.subr.bf16.mxu0 0
      %439 = vmatpush1.bf16.msra.mxu0 0
      %440 = vmatprep.subr.bf16.mxu0 0
      %441 = vmatpush1.bf16.msra.mxu0 0
      %442 = vmatprep.subr.bf16.mxu0 0
      %443 = vmatpush1.bf16.msra.mxu0 0
      %444 = vmatprep.subr.bf16.mxu0 0
      %445 = vmatpush1.bf16.msra.mxu0 0
      %446 = vmatprep.subr.bf16.mxu0 0
      %447 = vmatpush1.bf16.msra.mxu0 0
      %448 = vmatprep.subr.bf16.mxu0 0
      %449 = vmatpush1.bf16.msra.mxu0 0
      %450 = vmatprep.mubr.bf16.mxu0 0
      %451 = vmatmul.mubr.bf16.gmra.mrb[0].mxu0 %v416
      %v452 = vpop.f32.mrb[0].mxu0
      %v453 = vadd.f32 0.0, %v452
      %v454 = vpop.f32.mrb[0].mxu0
      %v455 = vpop.f32.mrb[0].mxu0
      %v456 = vadd.f32 0.0, %v455
      %v457 = vpop.f32.mrb[0].mxu0
      %458 = vdwg.mxu0
      %v459 = vsel %vm414, %v453, 0.0
      %v460 = vsel %vm414, %v456, 0.0
      %v461 = vadd.f32 %v459, %v460
      %462 = vadd.xlane.f32.xlu0 %v461
      %v463 = vpop.xlane.xlu0 %462
      %v464 = vrot.slane %v463, 4
      %v465 = vadd.f32 %v463, %v464
      %v466 = vrot.slane %v465, 2
      %v467 = vadd.f32 %v465, %v466
      %v468 = vrot.slane %v467, 1
      %v469 = vadd.f32 %v467, %v468
      %s470 = vtos %v469
      %v471 = vstv %s470
      %v472 = vmul.f32 %v471, 0.001953125
      %v473 = vsub.f32 %v453, %v472
      %v474 = vsub.f32 %v456, %v472
      %v475 = vmul.f32 %v473, %v473
      %v476 = vmul.f32 %v474, %v474
      %v477 = vsel %vm414, %v475, 0.0
      %v478 = vsel %vm414, %v476, 0.0
      %v479 = vadd.f32 %v477, %v478
      %480 = vadd.xlane.f32.xlu0 %v479
      %v481 = vpop.xlane.xlu0 %480
      %v482 = vrot.slane %v481, 4
      %v483 = vadd.f32 %v481, %v482
      %v484 = vrot.slane %v483, 2
      %v485 = vadd.f32 %v483, %v484
      %v486 = vrot.slane %v485, 1
      %v487 = vadd.f32 %v485, %v486
      %s488 = vtos %v487
      %v489 = vstv %s488
      %v490 = vadd.f32 %v388, 512.0
      %v491 = vsub.f32 %v472, %v390
      %v492 = vrcp.pop %v490
      %v493 = vmul.f32 512.0, %v492
      %v494 = vmul.f32 %v491, %v493
      %v495 = vadd.f32 %v390, %v494
      %v496 = vadd.f32 %v392, %v489
      %v497 = vmul.f32 %v491, %v491
      %v498 = vmul.f32 %v388, %v493
      %v499 = vmul.f32 %v497, %v498
      %v500 = vadd.f32 %v496, %v499
      %v501 = vld [vmem:[%s256 + $0x1] sm:$0x1]
      %v502 = vlaneseq
      %v503 = vshrl.u32 %v502, 7
      %v504 = vsub.s32 0, %v503
      %v505 = vrot.slane %v501, %v504
      %vm506 = vcmp.eq.s32.totalorder %v365, %v505
      %vm507 = vcmp.eq.s32.totalorder %v366, %v505
      %vm508 = vcmp.eq.s32.totalorder %v367, %v505
      %vm509 = vcmp.eq.s32.totalorder %v368, %v505
      %v510 = vsel %vm506, 1, 0
      %v511 = vsel %vm507, 1, 0
      %v512 = vsel %vm508, 1, 0
      %v513 = vsel %vm509, 1, 0
      %v514 = vcvt.s32.f32 %v510
      %v515 = vcvt.s32.f32 %v511
      %v516 = vcvt.s32.f32 %v512
      %v517 = vcvt.s32.f32 %v513
      %v518 = vpack.c.bf16 %v515, %v514
      %v519 = vpack.c.bf16 %v517, %v516
      %v520 = vsub.bf16 %v518, %v385
      %v521 = vsub.bf16 %v519, %v386
      %522 = vmatprep.subr.bf16.mxu0 0
      %523 = vmatpush1.bf16.msra.mxu0 %v520
      %524 = vmatprep.subr.bf16.mxu0 0
      %525 = vmatpush1.bf16.msra.mxu0 %v521
      %526 = vmatprep.subr.bf16.mxu0 0
      %527 = vmatpush1.bf16.msra.mxu0 0
      %528 = vmatprep.subr.bf16.mxu0 0
      %529 = vmatpush1.bf16.msra.mxu0 0
      %530 = vmatprep.subr.bf16.mxu0 0
      %531 = vmatpush1.bf16.msra.mxu0 0
      %532 = vmatprep.subr.bf16.mxu0 0
      %533 = vmatpush1.bf16.msra.mxu0 0
      %534 = vmatprep.subr.bf16.mxu0 0
      %535 = vmatpush1.bf16.msra.mxu0 0
      %536 = vmatprep.subr.bf16.mxu0 0
      %537 = vmatpush1.bf16.msra.mxu0 0
      %538 = vmatprep.subr.bf16.mxu0 0
      %539 = vmatpush1.bf16.msra.mxu0 0
      %540 = vmatprep.subr.bf16.mxu0 0
      %541 = vmatpush1.bf16.msra.mxu0 0
      %542 = vmatprep.subr.bf16.mxu0 0
      %543 = vmatpush1.bf16.msra.mxu0 0
      %544 = vmatprep.subr.bf16.mxu0 0
      %545 = vmatpush1.bf16.msra.mxu0 0
      %546 = vmatprep.subr.bf16.mxu0 0
      %547 = vmatpush1.bf16.msra.mxu0 0
      %548 = vmatprep.subr.bf16.mxu0 0
      %549 = vmatpush1.bf16.msra.mxu0 0
      %550 = vmatprep.subr.bf16.mxu0 0
      %551 = vmatpush1.bf16.msra.mxu0 0
      %552 = vmatprep.subr.bf16.mxu0 0
      %553 = vmatpush1.bf16.msra.mxu0 0
      %554 = vmatprep.mubr.bf16.mxu0 0
      %555 = vmatmul.mubr.bf16.gmra.mrb[0].mxu0 %v416
      %v556 = vpop.f32.mrb[0].mxu0
      %v557 = vadd.f32 0.0, %v556
      %v558 = vpop.f32.mrb[0].mxu0
      %v559 = vpop.f32.mrb[0].mxu0
      %v560 = vadd.f32 0.0, %v559
      %v561 = vpop.f32.mrb[0].mxu0
      %562 = vdwg.mxu0
      %v563 = vmax.f32 %v453, %v557
      %v564 = vmax.f32 %v456, %v560
      %v565 = vmin.f32 %v453, %v557
      %v566 = vmin.f32 %v456, %v560
      %v567 = vsel %vm414, %v557, 0.0
      %v568 = vsel %vm414, %v560, 0.0
      %v569 = vadd.f32 %v567, %v568
      %570 = vadd.xlane.f32.xlu0 %v569
      %v571 = vpop.xlane.xlu0 %570
      %v572 = vrot.slane %v571, 4
      %v573 = vadd.f32 %v571, %v572
      %v574 = vrot.slane %v573, 2
      %v575 = vadd.f32 %v573, %v574
      %v576 = vrot.slane %v575, 1
      %v577 = vadd.f32 %v575, %v576
      %s578 = vtos %v577
      %v579 = vstv %s578
      %v580 = vmul.f32 %v579, 0.001953125
      %v581 = vsub.f32 %v557, %v580
      %v582 = vsub.f32 %v560, %v580
      %v583 = vmul.f32 %v581, %v581
      %v584 = vmul.f32 %v582, %v582
      %v585 = vsel %vm414, %v583, 0.0
      %v586 = vsel %vm414, %v584, 0.0
      %v587 = vadd.f32 %v585, %v586
      %588 = vadd.xlane.f32.xlu0 %v587
      %v589 = vpop.xlane.xlu0 %588
      %v590 = vrot.slane %v589, 4
      %v591 = vadd.f32 %v589, %v590
      %v592 = vrot.slane %v591, 2
      %v593 = vadd.f32 %v591, %v592
      %v594 = vrot.slane %v593, 1
      %v595 = vadd.f32 %v593, %v594
      %s596 = vtos %v595
      %v597 = vstv %s596
      %v598 = vadd.f32 %v490, 512.0
      %v599 = vsub.f32 %v580, %v495
      %v600 = vrcp.pop %v598
      %v601 = vmul.f32 512.0, %v600
      %v602 = vmul.f32 %v599, %v601
      %v603 = vadd.f32 %v495, %v602
      %v604 = vadd.f32 %v500, %v597
      %v605 = vmul.f32 %v599, %v599
      %v606 = vmul.f32 %v490, %v601
      %v607 = vmul.f32 %v605, %v606
      %v608 = vadd.f32 %v604, %v607
      %v609 = vld [vmem:[%s256 + $0x2] sm:$0x1]
      %v610 = vlaneseq
      %v611 = vshrl.u32 %v610, 7
      %v612 = vsub.s32 0, %v611
      %v613 = vrot.slane %v609, %v612
      %vm614 = vcmp.eq.s32.totalorder %v365, %v613
      %vm615 = vcmp.eq.s32.totalorder %v366, %v613
      %vm616 = vcmp.eq.s32.totalorder %v367, %v613
      %vm617 = vcmp.eq.s32.totalorder %v368, %v613
      %v618 = vsel %vm614, 1, 0
      %v619 = vsel %vm615, 1, 0
      %v620 = vsel %vm616, 1, 0
      %v621 = vsel %vm617, 1, 0
      %v622 = vcvt.s32.f32 %v618
      %v623 = vcvt.s32.f32 %v619
      %v624 = vcvt.s32.f32 %v620
      %v625 = vcvt.s32.f32 %v621
      %v626 = vpack.c.bf16 %v623, %v622
      %v627 = vpack.c.bf16 %v625, %v624
      %v628 = vsub.bf16 %v626, %v385
      %v629 = vsub.bf16 %v627, %v386
      %630 = vmatprep.subr.bf16.mxu0 0
      %631 = vmatpush1.bf16.msra.mxu0 %v628
      %632 = vmatprep.subr.bf16.mxu0 0
      %633 = vmatpush1.bf16.msra.mxu0 %v629
      %634 = vmatprep.subr.bf16.mxu0 0
      %635 = vmatpush1.bf16.msra.mxu0 0
      %636 = vmatprep.subr.bf16.mxu0 0
      %637 = vmatpush1.bf16.msra.mxu0 0
      %638 = vmatprep.subr.bf16.mxu0 0
      %639 = vmatpush1.bf16.msra.mxu0 0
      %640 = vmatprep.subr.bf16.mxu0 0
      %641 = vmatpush1.bf16.msra.mxu0 0
      %642 = vmatprep.subr.bf16.mxu0 0
      %643 = vmatpush1.bf16.msra.mxu0 0
      %644 = vmatprep.subr.bf16.mxu0 0
      %645 = vmatpush1.bf16.msra.mxu0 0
      %646 = vmatprep.subr.bf16.mxu0 0
      %647 = vmatpush1.bf16.msra.mxu0 0
      %648 = vmatprep.subr.bf16.mxu0 0
      %649 = vmatpush1.bf16.msra.mxu0 0
      %650 = vmatprep.subr.bf16.mxu0 0
      %651 = vmatpush1.bf16.msra.mxu0 0
      %652 = vmatprep.subr.bf16.mxu0 0
      %653 = vmatpush1.bf16.msra.mxu0 0
      %654 = vmatprep.subr.bf16.mxu0 0
      %655 = vmatpush1.bf16.msra.mxu0 0
      %656 = vmatprep.subr.bf16.mxu0 0
      %657 = vmatpush1.bf16.msra.mxu0 0
      %658 = vmatprep.subr.bf16.mxu0 0
      %659 = vmatpush1.bf16.msra.mxu0 0
      %660 = vmatprep.subr.bf16.mxu0 0
      %661 = vmatpush1.bf16.msra.mxu0 0
      %662 = vmatprep.mubr.bf16.mxu0 0
      %663 = vmatmul.mubr.bf16.gmra.mrb[0].mxu0 %v416
      %v664 = vpop.f32.mrb[0].mxu0
      %v665 = vadd.f32 0.0, %v664
      %v666 = vpop.f32.mrb[0].mxu0
      %v667 = vpop.f32.mrb[0].mxu0
      %v668 = vadd.f32 0.0, %v667
      %v669 = vpop.f32.mrb[0].mxu0
      %670 = vdwg.mxu0
      %v671 = vmax.f32 %v563, %v665
      %v672 = vmax.f32 %v564, %v668
      %v673 = vmin.f32 %v565, %v665
      %v674 = vmin.f32 %v566, %v668
      %v675 = vsel %vm414, %v665, 0.0
      %v676 = vsel %vm414, %v668, 0.0
      %v677 = vadd.f32 %v675, %v676
      %678 = vadd.xlane.f32.xlu0 %v677
      %v679 = vpop.xlane.xlu0 %678
      %v680 = vrot.slane %v679, 4
      %v681 = vadd.f32 %v679, %v680
      %v682 = vrot.slane %v681, 2
      %v683 = vadd.f32 %v681, %v682
      %v684 = vrot.slane %v683, 1
      %v685 = vadd.f32 %v683, %v684
      %s686 = vtos %v685
      %v687 = vstv %s686
      %v688 = vmul.f32 %v687, 0.001953125
      %v689 = vsub.f32 %v665, %v688
      %v690 = vsub.f32 %v668, %v688
      %v691 = vmul.f32 %v689, %v689
      %v692 = vmul.f32 %v690, %v690
      %v693 = vsel %vm414, %v691, 0.0
      %v694 = vsel %vm414, %v692, 0.0
      %v695 = vadd.f32 %v693, %v694
      %696 = vadd.xlane.f32.xlu0 %v695
      %v697 = vpop.xlane.xlu0 %696
      %v698 = vrot.slane %v697, 4
      %v699 = vadd.f32 %v697, %v698
      %v700 = vrot.slane %v699, 2
      %v701 = vadd.f32 %v699, %v700
      %v702 = vrot.slane %v701, 1
      %v703 = vadd.f32 %v701, %v702
      %s704 = vtos %v703
      %v705 = vstv %s704
      %v706 = vadd.f32 %v598, 512.0
      %v707 = vsub.f32 %v688, %v603
      %v708 = vrcp.pop %v706
      %v709 = vmul.f32 512.0, %v708
      %v710 = vmul.f32 %v707, %v709
      %v711 = vadd.f32 %v603, %v710
      %v712 = vadd.f32 %v608, %v705
      %v713 = vmul.f32 %v707, %v707
      %v714 = vmul.f32 %v598, %v709
      %v715 = vmul.f32 %v713, %v714
      %v716 = vadd.f32 %v712, %v715
      %v717 = vld [vmem:[%s256 + $0x3] sm:$0x1]
      %v718 = vlaneseq
      %v719 = vshrl.u32 %v718, 7
      %v720 = vsub.s32 0, %v719
      %v721 = vrot.slane %v717, %v720
      %vm722 = vcmp.eq.s32.totalorder %v365, %v721
      %vm723 = vcmp.eq.s32.totalorder %v366, %v721
      %vm724 = vcmp.eq.s32.totalorder %v367, %v721
      %vm725 = vcmp.eq.s32.totalorder %v368, %v721
      %v726 = vsel %vm722, 1, 0
      %v727 = vsel %vm723, 1, 0
      %v728 = vsel %vm724, 1, 0
      %v729 = vsel %vm725, 1, 0
      %v730 = vcvt.s32.f32 %v726
      %v731 = vcvt.s32.f32 %v727
      %v732 = vcvt.s32.f32 %v728
      %v733 = vcvt.s32.f32 %v729
      %v734 = vpack.c.bf16 %v731, %v730
      %v735 = vpack.c.bf16 %v733, %v732
      %v736 = vsub.bf16 %v734, %v385
      %v737 = vsub.bf16 %v735, %v386
      %738 = vmatprep.subr.bf16.mxu0 0
      %739 = vmatpush1.bf16.msra.mxu0 %v736
      %740 = vmatprep.subr.bf16.mxu0 0
      %741 = vmatpush1.bf16.msra.mxu0 %v737
      %742 = vmatprep.subr.bf16.mxu0 0
      %743 = vmatpush1.bf16.msra.mxu0 0
      %744 = vmatprep.subr.bf16.mxu0 0
      %745 = vmatpush1.bf16.msra.mxu0 0
      %746 = vmatprep.subr.bf16.mxu0 0
      %747 = vmatpush1.bf16.msra.mxu0 0
      %748 = vmatprep.subr.bf16.mxu0 0
      %749 = vmatpush1.bf16.msra.mxu0 0
      %750 = vmatprep.subr.bf16.mxu0 0
      %751 = vmatpush1.bf16.msra.mxu0 0
      %752 = vmatprep.subr.bf16.mxu0 0
      %753 = vmatpush1.bf16.msra.mxu0 0
      %754 = vmatprep.subr.bf16.mxu0 0
      %755 = vmatpush1.bf16.msra.mxu0 0
      %756 = vmatprep.subr.bf16.mxu0 0
      %757 = vmatpush1.bf16.msra.mxu0 0
      %758 = vmatprep.subr.bf16.mxu0 0
      %759 = vmatpush1.bf16.msra.mxu0 0
      %760 = vmatprep.subr.bf16.mxu0 0
      %761 = vmatpush1.bf16.msra.mxu0 0
      %762 = vmatprep.subr.bf16.mxu0 0
      %763 = vmatpush1.bf16.msra.mxu0 0
      %764 = vmatprep.subr.bf16.mxu0 0
      %765 = vmatpush1.bf16.msra.mxu0 0
      %766 = vmatprep.subr.bf16.mxu0 0
      %767 = vmatpush1.bf16.msra.mxu0 0
      %768 = vmatprep.subr.bf16.mxu0 0
      %769 = vmatpush1.bf16.msra.mxu0 0
      %770 = vmatprep.mubr.bf16.mxu0 0
      %771 = vmatmul.mubr.bf16.gmra.mrb[0].mxu0 %v416
      %v772 = vpop.f32.mrb[0].mxu0
      %v773 = vadd.f32 0.0, %v772
      %v774 = vpop.f32.mrb[0].mxu0
      %v775 = vpop.f32.mrb[0].mxu0
      %v776 = vadd.f32 0.0, %v775
      %v777 = vpop.f32.mrb[0].mxu0
      %778 = vdwg.mxu0
      %v779 = vmax.f32 %v671, %v773
      %v780 = vmax.f32 %v672, %v776
      %v781 = vmin.f32 %v673, %v773
      %v782 = vmin.f32 %v674, %v776
      %v783 = vsel %vm414, %v773, 0.0
      %v784 = vsel %vm414, %v776, 0.0
      %v785 = vadd.f32 %v783, %v784
      %786 = vadd.xlane.f32.xlu0 %v785
      %v787 = vpop.xlane.xlu0 %786
      %v788 = vrot.slane %v787, 4
      %v789 = vadd.f32 %v787, %v788
      %v790 = vrot.slane %v789, 2
      %v791 = vadd.f32 %v789, %v790
      %v792 = vrot.slane %v791, 1
      %v793 = vadd.f32 %v791, %v792
      %s794 = vtos %v793
      %v795 = vstv %s794
      %v796 = vmul.f32 %v795, 0.001953125
      %v797 = vsub.f32 %v773, %v796
      %v798 = vsub.f32 %v776, %v796
      %v799 = vmul.f32 %v797, %v797
      %v800 = vmul.f32 %v798, %v798
      %v801 = vsel %vm414, %v799, 0.0
      %v802 = vsel %vm414, %v800, 0.0
      %v803 = vadd.f32 %v801, %v802
      %804 = vadd.xlane.f32.xlu0 %v803
      %v805 = vpop.xlane.xlu0 %804
      %v806 = vrot.slane %v805, 4
      %v807 = vadd.f32 %v805, %v806
      %v808 = vrot.slane %v807, 2
      %v809 = vadd.f32 %v807, %v808
      %v810 = vrot.slane %v809, 1
      %v811 = vadd.f32 %v809, %v810
      %s812 = vtos %v811
      %v813 = vstv %s812
      %v814 = vadd.f32 %v706, 512.0
      %v815 = vsub.f32 %v796, %v711
      %v816 = vrcp.pop %v814
      %v817 = vmul.f32 512.0, %v816
      %v818 = vmul.f32 %v815, %v817
      %v819 = vadd.f32 %v711, %v818
      %v820 = vadd.f32 %v716, %v813
      %v821 = vmul.f32 %v815, %v815
      %v822 = vmul.f32 %v706, %v817
      %v823 = vmul.f32 %v821, %v822
      %v824 = vadd.f32 %v820, %v823
      %s825 = smul.u32 %s21, 16
      %s826 = scalar_lea.vmem [#allocation3], %s825
      %827 = vst.msk [vmem:[%s826] sm:$0xff] %vm414, %v779
      %828 = vst.msk [vmem:[%s826 + $0x8] sm:$0xff] %vm414, %v780
      %s829 = scalar_lea.vmem [#allocation4], %s825
      %830 = vst.msk [vmem:[%s829] sm:$0xff] %vm414, %v781
      %831 = vst.msk [vmem:[%s829 + $0x8] sm:$0xff] %vm414, %v782
      %vm832 = vcmask 0
      %833 = vst.msk [vmem:[#allocation5] sm:$0x1] %vm832, %v814
      %834 = vst.msk [vmem:[%s389] sm:$0x1] %vm832, %v819
      %835 = vst.msk [vmem:[%s391] sm:$0x1] %vm832, %v824
      // Predicated region
      $region45: #{input_embedding_forward.5} parent=39 // pred_check
        %p836 = pneg %p263
      $region46: #{input_embedding_forward.5} parent=39 // pred_check_branch
        %838 = sbr.rel (%p836) target = $region48
      $region47: #{input_embedding_forward.5} parent=39 // pred_region
        %v839 = vld [vmem:[#allocation5] sm:$0x1]
        %v840 = vld [vmem:[%s391] sm:$0x1]
        %v841 = vsub.f32 %v839, 1.0
        %v842 = vrcp.pop %v841
        %v843 = vmul.f32 %v840, %v842
        %v844 = vrsqrt.pop %v843
        %v845 = vmul.f32 %v843, %v844
        %vm846 = vcmp.eq.f32.partialorder %v843, inf
        %v847 = vsel %vm846, %v843, %v845
        %vm848 = vcmp.eq.f32.partialorder %v843, 0.0
        %v849 = vand.u32 %v843, 2147483648
        %v850 = vsel %vm848, %v849, %v847
        %v851 = vadd.f32 %v850, 1e-05
        %v852 = vrcp.pop %v851
        %v853 = vmul.f32 1.0, %v852
        %v854 = vld [vmem:[%s3] sm:$0xff]
        %v855 = vld [vmem:[%s3 + $0x8] sm:$0xff]
        %v856 = vld [vmem:[%s4] sm:$0xff]
        %v857 = vld [vmem:[%s4 + $0x8] sm:$0xff]
        %v859 = vlaneseq
        %v860 = vshrl.u32 %v859, 7
        %v861 = vsub.s32 0, %v860
        %v862 = vrot.slane %v853, %v861
        %v864 = vmul.f32 %v854, %v862
        %v865 = vmul.f32 %v855, %v862
        %vm866 = vcmp.ge.f32.partialorder %v854, 0.0
        %vm867 = vcmp.ge.f32.partialorder %v855, 0.0
        %v868 = vld [vmem:[#allocation3] sm:$0xff]
        %v869 = vld [vmem:[#allocation3 + $0x8] sm:$0xff]
        %v870 = vld [vmem:[#allocation4] sm:$0xff]
        %v871 = vld [vmem:[#allocation4 + $0x8] sm:$0xff]
        %v872 = vsel %vm866, 1, 0
        %v873 = vsel %vm867, 1, 0
        %874 = vset.pattern.permute.xlu0 0
        %875 = vperm.xlu0 %874, %v872
        %v876 = vpop.permute.xlu0 %875
        %877 = vset.pattern.permute.xlu0 0
        %878 = vperm.xlu0 %877, %v873
        %v879 = vpop.permute.xlu0 %878
        %vm880 = vcmp.eq.s32.totalorder %v876, 1
        %vm881 = vcmp.eq.s32.totalorder %v879, 1
        %v882 = vsel %vm880, %v868, %v870
        %v883 = vsel %vm881, %v869, %v871
        %885 = vset.pattern.permute.xlu0 0
        %886 = vperm.xlu0 %885, %v864
        %v887 = vpop.permute.xlu0 %886
        %890 = vset.pattern.permute.xlu0 0
        %891 = vperm.xlu0 %890, %v865
        %v892 = vpop.permute.xlu0 %891
        %v894 = vmul.f32 %v882, %v887
        %v895 = vmul.f32 %v883, %v892
        %897 = vset.pattern.permute.xlu0 0
        %898 = vperm.xlu0 %897, %v856
        %v899 = vpop.permute.xlu0 %898
        %902 = vset.pattern.permute.xlu0 0
        %903 = vperm.xlu0 %902, %v857
        %v904 = vpop.permute.xlu0 %903
        %v906 = vadd.f32 %v894, %v899
        %v907 = vadd.f32 %v895, %v904
        %908 = vst.msk [vmem:[%s261] sm:$0xff] %vm414, %v906
        %909 = vst.msk [vmem:[%s261 + $0x8] sm:$0xff] %vm414, %v907
      $region48: #{input_embedding_forward.5} parent=39 // pred_fallthru
        _
      %p910 = scmp.lt.s32.totalorder %s20, 1
      %s911 = scalar_select %p910, %s20, 1
      %s912 = smul.addr %s911, 2
      %s913 = smul.addr %s912, 8
      %s914 = scalar_lea.vmem %s5, %s913
      // Predicated region
      $region49: #{input_embedding_forward.5} parent=39 // pred_check
        %p915 = pneg %p163
      $region50: #{input_embedding_forward.5} parent=39 // pred_check_branch
        %917 = sbr.rel (%p915) target = $region52
      $region51: #{input_embedding_forward.5} parent=39 // pred_region
        _
      $region52: #{input_embedding_forward.5} parent=39 // pred_fallthru
        _
    $region40: #{input_embedding_forward.5} parent=5 // pred_fallthru
      _
    %p918 = scmp.le.s32.totalorder 2, %s11
    // Predicated region
    $region53: #{input_embedding_forward.5} parent=5 // pred_check
      %p919 = pneg %p918
    $region54: #{input_embedding_forward.5} parent=5 // pred_check_branch
      %921 = sbr.rel (%p919) target = $region56
    $region55: #{input_embedding_forward.5} parent=5 // pred_region
      %s922 = ssub.s32 %s11, 2
      // Predicated region
      $region57: #{input_embedding_forward.5} parent=55 // pred_check
        %p923 = pneg %p169
      $region58: #{input_embedding_forward.5} parent=55 // pred_check_branch
        %925 = sbr.rel (%p923) target = $region60
      $region59: #{input_embedding_forward.5} parent=55 // pred_region
        %p926 = scmp.lt.s32.totalorder %s22, 1
        %s927 = scalar_select %p926, %s22, 1
        %s928 = smul.addr %s927, 2
        %s929 = smul.addr %s928, 8
        %s930 = scalar_lea.vmem %s5, %s929
      $region60: #{input_embedding_forward.5} parent=55 // pred_fallthru
        _
    $region56: #{input_embedding_forward.5} parent=5 // pred_fallthru
      _
  $region6: #{input_embedding_forward.5} parent=0 // loop_footer
    %s15 = sadd.s32 1, %s11
  $region7: #{input_embedding_forward.5} parent=0 // loop_footer_branch
    %10 = sbr.rel target = $region3
  $region8: #{input_embedding_forward.5} parent=0 // loop_exit
    _

</llo_original>
